<compile_context>
chip_gen: v7x
topology: tpu7x:2x2x1
jax: 0.10.0
libtpu: 0.0.40
codegen_flags: <defaults>
</compile_context>

<pallas_src>
import jax
import jax.numpy as jnp
from jax import lax
from jax.experimental import pallas as pl
from jax.experimental.pallas import tpu as pltpu


# Set to jnp.bfloat16 to run the MXU matmuls in bf16 on v6e/v7x (accumulation stays
# f32, h/c recurrence state stays f32).  Kept at f32 here to match the PyTorch
# reference numerics as closely as possible.
MXU_DTYPE = jnp.float32


# ---------------------------------------------------------------------------
# Fused bidirectional LSTM recurrence kernel.
#   gx  : (2, T, B, 4H)  precomputed input-gate pre-activations (x @ Wih + b),
#                        direction 0 = forward, 1 = backward, PyTorch gate order
#                        [i, f, g, o].
#   whh : (2, H, 4H)     recurrent weights per direction.
#   out : (2, T, B, H)   hidden states at the ORIGINAL time indices.
# grid = (direction, time-chunk); direction axis is "parallel" (v7x megacore),
# the time-chunk axis is sequential with h/c carried in VMEM scratch.
# Backward direction: the index_map walks the time blocks in reverse and the
# inner loop reverses within the block, so no reversed copies are materialized.
# ---------------------------------------------------------------------------
def _bilstm_kernel(gx_ref, whh_ref, o_ref, h_scr, c_scr):
    d = pl.program_id(0)                      # 0 = forward, 1 = backward

    @pl.when(pl.program_id(1) == 0)
    def _init():
        h_scr[...] = jnp.zeros_like(h_scr)
        c_scr[...] = jnp.zeros_like(c_scr)

    whh = whh_ref[...].astype(MXU_DTYPE)      # (H, 4H), hoisted out of the loop
    Tc = gx_ref.shape[0]
    H = h_scr.shape[-1]

    def step(i, carry):
        # local time index inside the chunk: i for forward, Tc-1-i for backward
        li = i + d * (Tc - 1 - 2 * i)
        gates = gx_ref[li] + jnp.dot(h_scr[...].astype(MXU_DTYPE), whh,
                                     preferred_element_type=jnp.float32)
        i_g = jax.nn.sigmoid(gates[:, 0 * H:1 * H])
        f_g = jax.nn.sigmoid(gates[:, 1 * H:2 * H])
        g_g = jnp.tanh(gates[:, 2 * H:3 * H])
        o_g = jax.nn.sigmoid(gates[:, 3 * H:4 * H])
        c_new = f_g * c_scr[...] + i_g * g_g
        h_new = o_g * jnp.tanh(c_new)
        c_scr[...] = c_new
        h_scr[...] = h_new
        o_ref[li] = h_new.astype(o_ref.dtype)
        return carry

    lax.fori_loop(0, Tc, step, 0, unroll=True)


def bilstm_from_gates(gx, whh):
    """gx: (2, T, B, 4H) precomputed input gates; whh: (2, H, 4H).
    Returns the bidirectional LSTM output, time-major (T, B, 2H)."""
    n_dir, T, B, G = gx.shape
    H = G // 4
    # chunk the time axis (<=16 steps per grid step) to amortize grid overhead
    Tc = max(c for c in range(1, min(T, 16) + 1) if T % c == 0)
    nb = T // Tc

    def t_map(d, c):
        # forward (d=0): block c; backward (d=1): block nb-1-c (reverse traversal)
        return c + d * (nb - 1 - 2 * c)

    out = pl.pallas_call(
        _bilstm_kernel,
        out_shape=jax.ShapeDtypeStruct((n_dir, T, B, H), jnp.float32),
        grid=(n_dir, nb),
        in_specs=[
            pl.BlockSpec((pl.Squeezed(), Tc, B, G),
                         lambda d, c: (d, t_map(d, c), 0, 0)),
            pl.BlockSpec((pl.Squeezed(), H, G),
                         lambda d, c: (d, 0, 0)),
        ],
        out_specs=pl.BlockSpec((pl.Squeezed(), Tc, B, H),
                               lambda d, c: (d, t_map(d, c), 0, 0)),
        scratch_shapes=[pltpu.VMEM((B, H), jnp.float32),
                        pltpu.VMEM((B, H), jnp.float32)],
        compiler_params=pltpu.CompilerParams(
            dimension_semantics=("parallel", "arbitrary")),
    )(gx, whh)
    # [forward ; backward] feature concat, matching nn.LSTM(bidirectional=True)
    return jnp.concatenate([out[0], out[1]], axis=-1)       # (T, B, 2H)


# ---------------------------------------------------------------------------
# attn_align: score = x @ y^T, masked_fill(mask==0, -1e9), softmax over dim=1
# (the *query* axis, exactly as in the PyTorch reference), then @ y.
# Whole (small) batch processed in a single block; softmax divide uses the EUP
# approximate reciprocal.
# ---------------------------------------------------------------------------
def _attn_kernel(x_ref, y_ref, m_ref, o_ref):
    x = x_ref[...].astype(MXU_DTYPE)                         # (B, Lx, D)
    y = y_ref[...].astype(MXU_DTYPE)                         # (B, Ly, D)
    m = m_ref[...]                                           # (B, 1, Ly)
    s = jnp.einsum('bxd,byd->bxy', x, y,
                   preferred_element_type=jnp.float32)       # (B, Lx, Ly)
    s = jnp.where(m == 0, jnp.float32(-1e9), s)
    # softmax over axis 1 (== torch.softmax(attn_score, dim=1))
    s = s - jnp.max(s, axis=1, keepdims=True)
    e = jnp.exp(s)
    a = e * pl.reciprocal(jnp.sum(e, axis=1, keepdims=True), approx=True)
    z = jnp.einsum('bxy,byd->bxd', a.astype(MXU_DTYPE), y,
                   preferred_element_type=jnp.float32)
    o_ref[...] = z.astype(o_ref.dtype)


def attn_align(x, y, y_mask_keys):
    """x: (B, Lx, D), y: (B, Ly, D), y_mask_keys: (B, 1, Ly) -> (B, Lx, D)."""
    # TODO(synk): for large B/L, tile the batch axis with a grid sized to VMEM.
    B, Lx, D = x.shape
    return pl.pallas_call(
        _attn_kernel,
        out_shape=jax.ShapeDtypeStruct((B, Lx, D), jnp.float32),
    )(x, y, y_mask_keys)


# ---------------------------------------------------------------------------
# Fused tail: masked max-pool + masked avg-pool for both sequences, x_final
# concat folded into the first Linear's weight row-slices, GeLU, final Linear.
# Inputs are time-major (T, B, D) / (T, B, 1); all tiny -> single block.
# ---------------------------------------------------------------------------
def _pool_pred_kernel(v1_ref, m1_ref, v2_ref, m2_ref,
                      w1_ref, b1_ref, w2_ref, b2_ref, o_ref):
    def pools(v, m):
        mx = jnp.max(jnp.where(m == 0, -jnp.inf, v), axis=0)       # (B, D)
        sm = jnp.sum(jnp.where(m == 0, 0.0, v), axis=0)            # (B, D)
        cnt = jnp.sum(m, axis=0)                                   # (B, 1)
        # NOTE: reference has no guard for fully-masked rows (0/0); kept faithful.
        return mx, sm / cnt

    a_max, a_avg = pools(v1_ref[...], m1_ref[...])
    b_max, b_avg = pools(v2_ref[...], m2_ref[...])

    D = a_max.shape[-1]
    w1 = w1_ref[...].astype(MXU_DTYPE)
    # x_final = cat([a_avg, b_avg, a_max, b_max], -1); fold the concat into the
    # first Linear by slicing its (4D, D) weight rows.
    h = (jnp.dot(a_avg.astype(MXU_DTYPE), w1[0 * D:1 * D], preferred_element_type=jnp.float32)
         + jnp.dot(b_avg.astype(MXU_DTYPE), w1[1 * D:2 * D], preferred_element_type=jnp.float32)
         + jnp.dot(a_max.astype(MXU_DTYPE), w1[2 * D:3 * D], preferred_element_type=jnp.float32)
         + jnp.dot(b_max.astype(MXU_DTYPE), w1[3 * D:4 * D], preferred_element_type=jnp.float32)
         + b1_ref[...])
    h = jax.nn.gelu(h)        # Linear(..., activations=True); Dropout = identity (eval)
    o_ref[...] = (jnp.dot(h.astype(MXU_DTYPE), w2_ref[...].astype(MXU_DTYPE),
                          preferred_element_type=jnp.float32)
                  + b2_ref[...]).astype(o_ref.dtype)


def pool_and_predict(v1_t, m1_t, v2_t, m2_t, p):
    B = v1_t.shape[1]
    C = p['w2'].shape[1]
    return pl.pallas_call(
        _pool_pred_kernel,
        out_shape=jax.ShapeDtypeStruct((B, C), jnp.float32),
    )(v1_t, m1_t, v2_t, m2_t, p['w1'], p['b1'], p['w2'], p['b2'])


# ---------------------------------------------------------------------------
# Full ESIM forward (ib_type == 'none' path).  Sequences are time-major (T, B, D)
# everywhere except the attention kernel, which consumes batch-first slabs.
# ---------------------------------------------------------------------------
@jax.jit
def esim_forward(params, x1_ids, x2_ids, mask1, mask2):
    emb = params['emb']
    D = emb.shape[1]

    # Embedding lookup straight into time-major layout (no transpose of activations).
    e1_t = jnp.take(emb, x1_ids.T, axis=0)                   # (L1, B, D)
    e2_t = jnp.take(emb, x2_ids.T, axis=0)                   # (L2, B, D)

    # ---- BiLSTM 1: hoisted input projection (one big GEMM, both directions) ----
    p1 = params['lstm1']
    gx1 = jnp.einsum('tbd,ndg->ntbg', e1_t, p1['wih']) + p1['b'][:, None]
    gx2 = jnp.einsum('tbd,ndg->ntbg', e2_t, p1['wih']) + p1['b'][:, None]
    h1_t = bilstm_from_gates(gx1, p1['whh'])                 # (L1, B, D)
    h2_t = bilstm_from_gates(gx2, p1['whh'])                 # (L2, B, D)

    # batch-first views for attention (the only explicit activation transposes left)
    h1_b = jnp.transpose(h1_t, (1, 0, 2))                    # (B, L1, D)
    h2_b = jnp.transpose(h2_t, (1, 0, 2))                    # (B, L2, D)

    m1_keys = jnp.transpose(mask1, (0, 2, 1))                # (B, 1, L1)
    m2_keys = jnp.transpose(mask2, (0, 2, 1))                # (B, 1, L2)

    a1_b = attn_align(h1_b, h2_b, m2_keys)                   # (B, L1, D)
    a2_b = attn_align(h2_b, h1_b, m1_keys)                   # (B, L2, D)

    # ---- BiLSTM 2: fold [h, a, h-a, h*a] concat into the input projection ----
    # cat([h,a,h-a,h*a]) @ Wih == h@(W1+W3) + a@(W2-W3) + (h*a)@W4
    p2 = params['lstm2']
    w_h = p2['wih'][:, 0 * D:1 * D] + p2['wih'][:, 2 * D:3 * D]   # (2, D, 4H)
    w_a = p2['wih'][:, 1 * D:2 * D] - p2['wih'][:, 2 * D:3 * D]
    w_m = p2['wih'][:, 3 * D:4 * D]

    def lstm2_gates(h_b, a_b):
        # batch-first inputs, time-major gate output (transpose folded into GEMMs)
        return (jnp.einsum('btd,ndg->ntbg', h_b, w_h)
                + jnp.einsum('btd,ndg->ntbg', a_b, w_a)
                + jnp.einsum('btd,ndg->ntbg', h_b * a_b, w_m)
                + p2['b'][:, None])

    v1_t = bilstm_from_gates(lstm2_gates(h1_b, a1_b), p2['whh'])   # (L1, B, D)
    v2_t = bilstm_from_gates(lstm2_gates(h2_b, a2_b), p2['whh'])   # (L2, B, D)

    # ---- fused pooling + prediction head ----
    m1_tm = jnp.transpose(mask1, (1, 0, 2))                  # (L1, B, 1)
    m2_tm = jnp.transpose(mask2, (1, 0, 2))                  # (L2, B, 1)
    logit = pool_and_predict(v1_t, m1_tm, v2_t, m2_tm, params['pred'])   # (B, C)
    return logit


# ---------------------------------------------------------------------------
# Deterministic synthetic parameters (shapes follow the module's __init__).
# Direction weights are stored stacked [forward, backward]; wih is pre-transposed
# to (Din, 4H), gate order [i, f, g, o], and b holds b_ih + b_hh combined
# (when loading real nn.LSTM weights, sum the two bias vectors).
# ---------------------------------------------------------------------------
def init_params(key, vocab, D, C):
    H = D // 2
    ks = jax.random.split(key, 11)

    def w(k, shape, scale=0.1):
        return jax.random.normal(k, shape, jnp.float32) * scale

    return {
        'emb': w(ks[0], (vocab, D), 0.5),
        'lstm1': {'wih': w(ks[1], (2, D, 4 * H)),
                  'whh': w(ks[2], (2, H, 4 * H)),
                  'b':   w(ks[3], (2, 1, 4 * H))},
        'lstm2': {'wih': w(ks[4], (2, 4 * D, 4 * H)),
                  'whh': w(ks[5], (2, H, 4 * H)),
                  'b':   w(ks[6], (2, 1, 4 * H))},
        'pred': {'w1': w(ks[7], (4 * D, D)), 'b1': w(ks[8], (1, D)),
                 'w2': w(ks[9], (D, C)),     'b2': w(ks[10], (1, C))},
    }


if __name__ == "__main__":
    B, L1, L2, D, C, VOCAB = 2, 8, 10, 32, 2, 50

    key = jax.random.PRNGKey(0)
    k_param, k_x1, k_x2 = jax.random.split(key, 3)

    params = init_params(k_param, VOCAB, D, C)

    x1_ids = jax.random.randint(k_x1, (B, L1), 0, VOCAB, dtype=jnp.int32)
    x2_ids = jax.random.randint(k_x2, (B, L2), 0, VOCAB, dtype=jnp.int32)

    # masks: (B, L, 1), 1.0 for valid tokens, 0.0 for padding
    len1 = jnp.array([8, 5], dtype=jnp.int32)
    len2 = jnp.array([10, 7], dtype=jnp.int32)
    mask1 = (jnp.arange(L1)[None, :] < len1[:, None]).astype(jnp.float32)[..., None]
    mask2 = (jnp.arange(L2)[None, :] < len2[:, None]).astype(jnp.float32)[..., None]

    logit = esim_forward(params, x1_ids, x2_ids, mask1, mask2)
    logit = jax.block_until_ready(logit)

    assert logit.shape == (B, C), logit.shape
    assert bool(jnp.all(jnp.isfinite(logit)))
    print("KERNEL_OK")
</pallas_src>

<mosaic_0001>
module attributes {stable_mosaic.version = 11 : i64} {
  func.func @_bilstm_kernel(%arg0: i32, %arg1: i32, %arg2: memref<1x8x2x64xf32, #tpu.memory_space<vmem>>, %arg3: memref<1x16x64xf32, #tpu.memory_space<vmem>>, %arg4: memref<1x8x2x16xf32, #tpu.memory_space<vmem>>, %arg5: memref<2x16xf32, #tpu.memory_space<vmem>>, %arg6: memref<2x16xf32, #tpu.memory_space<vmem>>) attributes {dimension_semantics = [#tpu.dimension_semantics<parallel>, #tpu.dimension_semantics<arbitrary>], iteration_bounds = array<i64: 2, 1>, scalar_prefetch = 0 : i64, scratch_operands = 2 : i64, tpu.core_type = #tpu.core_type<tc>, window_params = [{transform_indices = @transform_0, window_bounds = array<i64: 1, 8, 2, 64>}, {transform_indices = @transform_1, window_bounds = array<i64: 1, 16, 64>}, {transform_indices = @transform_2, window_bounds = array<i64: 1, 8, 2, 16>}]} {
    %c0_i32 = arith.constant 0 : i32
    %0 = arith.cmpi eq, %arg1, %c0_i32 : i32
    %1 = arith.extui %0 : i1 to i32
    %c0_i32_0 = arith.constant 0 : i32
    %2 = arith.cmpi ne, %1, %c0_i32_0 : i32
    scf.if %2 {
      %cst_163 = arith.constant 0.000000e+00 : f32
      %341 = vector.broadcast %cst_163 : f32 to vector<2x16xf32>
      %c0_164 = arith.constant 0 : index
      %c0_165 = arith.constant 0 : index
      %342 = vector.load %arg5[%c0_164, %c0_165] : memref<2x16xf32, #tpu.memory_space<vmem>>, vector<2x16xf32>
      tpu.vector_store %arg5[%c0_164, %c0_165], %341 {strides = array<i32>} : memref<2x16xf32, #tpu.memory_space<vmem>>, vector<2x16xf32>,
      %cst_166 = arith.constant 0.000000e+00 : f32
      %343 = vector.broadcast %cst_166 : f32 to vector<2x16xf32>
      %c0_167 = arith.constant 0 : index
      %c0_168 = arith.constant 0 : index
      %344 = vector.load %arg6[%c0_167, %c0_168] : memref<2x16xf32, #tpu.memory_space<vmem>>, vector<2x16xf32>
      tpu.vector_store %arg6[%c0_167, %c0_168], %343 {strides = array<i32>} : memref<2x16xf32, #tpu.memory_space<vmem>>, vector<2x16xf32>,
    } else {
    }
    %c0 = arith.constant 0 : index
    %c0_1 = arith.constant 0 : index
    %c0_2 = arith.constant 0 : index
    %3 = vector.load %arg3[%c0, %c0_1, %c0_2] : memref<1x16x64xf32, #tpu.memory_space<vmem>>, vector<1x16x64xf32>
    %4 = vector.shape_cast %3 : vector<1x16x64xf32> to vector<16x64xf32>
    %c0_i32_3 = arith.constant 0 : i32
    %c2_i32 = arith.constant 2 : i32
    %5 = arith.muli %c2_i32, %c0_i32_3 : i32
    %c7_i32 = arith.constant 7 : i32
    %6 = arith.subi %c7_i32, %5 : i32
    %7 = arith.muli %arg0, %6 : i32
    %8 = arith.addi %c0_i32_3, %7 : i32
    %c0_4 = arith.constant 0 : index
    %9 = arith.index_cast %8 : i32 to index
    %c0_5 = arith.constant 0 : index
    %c0_6 = arith.constant 0 : index
    %10 = vector.load %arg2[%c0_4, %9, %c0_5, %c0_6] : memref<1x8x2x64xf32, #tpu.memory_space<vmem>>, vector<1x1x2x64xf32>
    %11 = vector.shape_cast %10 : vector<1x1x2x64xf32> to vector<2x64xf32>
    %c0_7 = arith.constant 0 : index
    %c0_8 = arith.constant 0 : index
    %12 = vector.load %arg5[%c0_7, %c0_8] : memref<2x16xf32, #tpu.memory_space<vmem>>, vector<2x16xf32>
    %cst = arith.constant dense<0.000000e+00> : vector<2x64xf32>
    %13 = tpu.matmul %12, %4, %cst {dimension_numbers = #tpu.dot_dimension_numbers<[1], [0], [0], [1], [0, 0, 1, 1], [], []>} : vector<2x16xf32>, vector<16x64xf32>, vector<2x64xf32> -> vector<2x64xf32>
    %14 = arith.addf %11, %13 : vector<2x64xf32>
    %15 = vector.extract_strided_slice %14 {offsets = [0, 0], sizes = [2, 16], strides = [1, 1]} : vector<2x64xf32> to vector<2x16xf32>
    %16 = arith.negf %15 : vector<2x16xf32>
    %17 = math.exp %16 : vector<2x16xf32>
    %cst_9 = arith.constant 1.000000e+00 : f32
    %18 = vector.broadcast %cst_9 : f32 to vector<2x16xf32>
    %19 = arith.addf %18, %17 : vector<2x16xf32>
    %20 = arith.divf %18, %19 : vector<2x16xf32>
    %21 = vector.extract_strided_slice %14 {offsets = [0, 16], sizes = [2, 16], strides = [1, 1]} : vector<2x64xf32> to vector<2x16xf32>
    %22 = arith.negf %21 : vector<2x16xf32>
    %23 = math.exp %22 : vector<2x16xf32>
    %cst_10 = arith.constant 1.000000e+00 : f32
    %24 = vector.broadcast %cst_10 : f32 to vector<2x16xf32>
    %25 = arith.addf %24, %23 : vector<2x16xf32>
    %26 = arith.divf %24, %25 : vector<2x16xf32>
    %27 = vector.extract_strided_slice %14 {offsets = [0, 32], sizes = [2, 16], strides = [1, 1]} : vector<2x64xf32> to vector<2x16xf32>
    %28 = math.tanh %27 : vector<2x16xf32>
    %29 = vector.extract_strided_slice %14 {offsets = [0, 48], sizes = [2, 16], strides = [1, 1]} : vector<2x64xf32> to vector<2x16xf32>
    %30 = arith.negf %29 : vector<2x16xf32>
    %31 = math.exp %30 : vector<2x16xf32>
    %cst_11 = arith.constant 1.000000e+00 : f32
    %32 = vector.broadcast %cst_11 : f32 to vector<2x16xf32>
    %33 = arith.addf %32, %31 : vector<2x16xf32>
    %34 = arith.divf %32, %33 : vector<2x16xf32>
    %c0_12 = arith.constant 0 : index
    %c0_13 = arith.constant 0 : index
    %35 = vector.load %arg6[%c0_12, %c0_13] : memref<2x16xf32, #tpu.memory_space<vmem>>, vector<2x16xf32>
    %36 = arith.mulf %26, %35 : vector<2x16xf32>
    %37 = arith.mulf %20, %28 : vector<2x16xf32>
    %38 = arith.addf %36, %37 : vector<2x16xf32>
    %39 = math.tanh %38 : vector<2x16xf32>
    %40 = arith.mulf %34, %39 : vector<2x16xf32>
    %c0_14 = arith.constant 0 : index
    %c0_15 = arith.constant 0 : index
    %41 = vector.load %arg6[%c0_14, %c0_15] : memref<2x16xf32, #tpu.memory_space<vmem>>, vector<2x16xf32>
    tpu.vector_store %arg6[%c0_14, %c0_15], %38 {strides = array<i32>} : memref<2x16xf32, #tpu.memory_space<vmem>>, vector<2x16xf32>,
    %c0_16 = arith.constant 0 : index
    %c0_17 = arith.constant 0 : index
    %42 = vector.load %arg5[%c0_16, %c0_17] : memref<2x16xf32, #tpu.memory_space<vmem>>, vector<2x16xf32>
    tpu.vector_store %arg5[%c0_16, %c0_17], %40 {strides = array<i32>} : memref<2x16xf32, #tpu.memory_space<vmem>>, vector<2x16xf32>,
    %c0_18 = arith.constant 0 : index
    %43 = arith.index_cast %8 : i32 to index
    %c0_19 = arith.constant 0 : index
    %c0_20 = arith.constant 0 : index
    %44 = vector.load %arg4[%c0_18, %43, %c0_19, %c0_20] : memref<1x8x2x16xf32, #tpu.memory_space<vmem>>, vector<1x1x2x16xf32>
    %45 = vector.shape_cast %44 : vector<1x1x2x16xf32> to vector<2x16xf32>
    %46 = vector.shape_cast %40 : vector<2x16xf32> to vector<1x1x2x16xf32>
    tpu.vector_store %arg4[%c0_18, %43, %c0_19, %c0_20], %46 {strides = array<i32>} : memref<1x8x2x16xf32, #tpu.memory_space<vmem>>, vector<1x1x2x16xf32>,
    %c1_i32 = arith.constant 1 : i32
    %c2_i32_21 = arith.constant 2 : i32
    %47 = arith.muli %c2_i32_21, %c1_i32 : i32
    %c7_i32_22 = arith.constant 7 : i32
    %48 = arith.subi %c7_i32_22, %47 : i32
    %49 = arith.muli %arg0, %48 : i32
    %50 = arith.addi %c1_i32, %49 : i32
    %c0_23 = arith.constant 0 : index
    %51 = arith.index_cast %50 : i32 to index
    %c0_24 = arith.constant 0 : index
    %c0_25 = arith.constant 0 : index
    %52 = vector.load %arg2[%c0_23, %51, %c0_24, %c0_25] : memref<1x8x2x64xf32, #tpu.memory_space<vmem>>, vector<1x1x2x64xf32>
    %53 = vector.shape_cast %52 : vector<1x1x2x64xf32> to vector<2x64xf32>
    %c0_26 = arith.constant 0 : index
    %c0_27 = arith.constant 0 : index
    %54 = vector.load %arg5[%c0_26, %c0_27] : memref<2x16xf32, #tpu.memory_space<vmem>>, vector<2x16xf32>
    %cst_28 = arith.constant dense<0.000000e+00> : vector<2x64xf32>
    %55 = tpu.matmul %54, %4, %cst_28 {dimension_numbers = #tpu.dot_dimension_numbers<[1], [0], [0], [1], [0, 0, 1, 1], [], []>} : vector<2x16xf32>, vector<16x64xf32>, vector<2x64xf32> -> vector<2x64xf32>
    %56 = arith.addf %53, %55 : vector<2x64xf32>
    %57 = vector.extract_strided_slice %56 {offsets = [0, 0], sizes = [2, 16], strides = [1, 1]} : vector<2x64xf32> to vector<2x16xf32>
    %58 = arith.negf %57 : vector<2x16xf32>
    %59 = math.exp %58 : vector<2x16xf32>
    %cst_29 = arith.constant 1.000000e+00 : f32
    %60 = vector.broadcast %cst_29 : f32 to vector<2x16xf32>
    %61 = arith.addf %60, %59 : vector<2x16xf32>
    %62 = arith.divf %60, %61 : vector<2x16xf32>
    %63 = vector.extract_strided_slice %56 {offsets = [0, 16], sizes = [2, 16], strides = [1, 1]} : vector<2x64xf32> to vector<2x16xf32>
    %64 = arith.negf %63 : vector<2x16xf32>
    %65 = math.exp %64 : vector<2x16xf32>
    %cst_30 = arith.constant 1.000000e+00 : f32
    %66 = vector.broadcast %cst_30 : f32 to vector<2x16xf32>
    %67 = arith.addf %66, %65 : vector<2x16xf32>
    %68 = arith.divf %66, %67 : vector<2x16xf32>
    %69 = vector.extract_strided_slice %56 {offsets = [0, 32], sizes = [2, 16], strides = [1, 1]} : vector<2x64xf32> to vector<2x16xf32>
    %70 = math.tanh %69 : vector<2x16xf32>
    %71 = vector.extract_strided_slice %56 {offsets = [0, 48], sizes = [2, 16], strides = [1, 1]} : vector<2x64xf32> to vector<2x16xf32>
    %72 = arith.negf %71 : vector<2x16xf32>
    %73 = math.exp %72 : vector<2x16xf32>
    %cst_31 = arith.constant 1.000000e+00 : f32
    %74 = vector.broadcast %cst_31 : f32 to vector<2x16xf32>
    %75 = arith.addf %74, %73 : vector<2x16xf32>
    %76 = arith.divf %74, %75 : vector<2x16xf32>
    %c0_32 = arith.constant 0 : index
    %c0_33 = arith.constant 0 : index
    %77 = vector.load %arg6[%c0_32, %c0_33] : memref<2x16xf32, #tpu.memory_space<vmem>>, vector<2x16xf32>
    %78 = arith.mulf %68, %77 : vector<2x16xf32>
    %79 = arith.mulf %62, %70 : vector<2x16xf32>
    %80 = arith.addf %78, %79 : vector<2x16xf32>
    %81 = math.tanh %80 : vector<2x16xf32>
    %82 = arith.mulf %76, %81 : vector<2x16xf32>
    %c0_34 = arith.constant 0 : index
    %c0_35 = arith.constant 0 : index
    %83 = vector.load %arg6[%c0_34, %c0_35] : memref<2x16xf32, #tpu.memory_space<vmem>>, vector<2x16xf32>
    tpu.vector_store %arg6[%c0_34, %c0_35], %80 {strides = array<i32>} : memref<2x16xf32, #tpu.memory_space<vmem>>, vector<2x16xf32>,
    %c0_36 = arith.constant 0 : index
    %c0_37 = arith.constant 0 : index
    %84 = vector.load %arg5[%c0_36, %c0_37] : memref<2x16xf32, #tpu.memory_space<vmem>>, vector<2x16xf32>
    tpu.vector_store %arg5[%c0_36, %c0_37], %82 {strides = array<i32>} : memref<2x16xf32, #tpu.memory_space<vmem>>, vector<2x16xf32>,
    %c0_38 = arith.constant 0 : index
    %85 = arith.index_cast %50 : i32 to index
    %c0_39 = arith.constant 0 : index
    %c0_40 = arith.constant 0 : index
    %86 = vector.load %arg4[%c0_38, %85, %c0_39, %c0_40] : memref<1x8x2x16xf32, #tpu.memory_space<vmem>>, vector<1x1x2x16xf32>
    %87 = vector.shape_cast %86 : vector<1x1x2x16xf32> to vector<2x16xf32>
    %88 = vector.shape_cast %82 : vector<2x16xf32> to vector<1x1x2x16xf32>
    tpu.vector_store %arg4[%c0_38, %85, %c0_39, %c0_40], %88 {strides = array<i32>} : memref<1x8x2x16xf32, #tpu.memory_space<vmem>>, vector<1x1x2x16xf32>,
    %c2_i32_41 = arith.constant 2 : i32
    %c2_i32_42 = arith.constant 2 : i32
    %89 = arith.muli %c2_i32_42, %c2_i32_41 : i32
    %c7_i32_43 = arith.constant 7 : i32
    %90 = arith.subi %c7_i32_43, %89 : i32
    %91 = arith.muli %arg0, %90 : i32
    %92 = arith.addi %c2_i32_41, %91 : i32
    %c0_44 = arith.constant 0 : index
    %93 = arith.index_cast %92 : i32 to index
    %c0_45 = arith.constant 0 : index
    %c0_46 = arith.constant 0 : index
    %94 = vector.load %arg2[%c0_44, %93, %c0_45, %c0_46] : memref<1x8x2x64xf32, #tpu.memory_space<vmem>>, vector<1x1x2x64xf32>
    %95 = vector.shape_cast %94 : vector<1x1x2x64xf32> to vector<2x64xf32>
    %c0_47 = arith.constant 0 : index
    %c0_48 = arith.constant 0 : index
    %96 = vector.load %arg5[%c0_47, %c0_48] : memref<2x16xf32, #tpu.memory_space<vmem>>, vector<2x16xf32>
    %cst_49 = arith.constant dense<0.000000e+00> : vector<2x64xf32>
    %97 = tpu.matmul %96, %4, %cst_49 {dimension_numbers = #tpu.dot_dimension_numbers<[1], [0], [0], [1], [0, 0, 1, 1], [], []>} : vector<2x16xf32>, vector<16x64xf32>, vector<2x64xf32> -> vector<2x64xf32>
    %98 = arith.addf %95, %97 : vector<2x64xf32>
    %99 = vector.extract_strided_slice %98 {offsets = [0, 0], sizes = [2, 16], strides = [1, 1]} : vector<2x64xf32> to vector<2x16xf32>
    %100 = arith.negf %99 : vector<2x16xf32>
    %101 = math.exp %100 : vector<2x16xf32>
    %cst_50 = arith.constant 1.000000e+00 : f32
    %102 = vector.broadcast %cst_50 : f32 to vector<2x16xf32>
    %103 = arith.addf %102, %101 : vector<2x16xf32>
    %104 = arith.divf %102, %103 : vector<2x16xf32>
    %105 = vector.extract_strided_slice %98 {offsets = [0, 16], sizes = [2, 16], strides = [1, 1]} : vector<2x64xf32> to vector<2x16xf32>
    %106 = arith.negf %105 : vector<2x16xf32>
    %107 = math.exp %106 : vector<2x16xf32>
    %cst_51 = arith.constant 1.000000e+00 : f32
    %108 = vector.broadcast %cst_51 : f32 to vector<2x16xf32>
    %109 = arith.addf %108, %107 : vector<2x16xf32>
    %110 = arith.divf %108, %109 : vector<2x16xf32>
    %111 = vector.extract_strided_slice %98 {offsets = [0, 32], sizes = [2, 16], strides = [1, 1]} : vector<2x64xf32> to vector<2x16xf32>
    %112 = math.tanh %111 : vector<2x16xf32>
    %113 = vector.extract_strided_slice %98 {offsets = [0, 48], sizes = [2, 16], strides = [1, 1]} : vector<2x64xf32> to vector<2x16xf32>
    %114 = arith.negf %113 : vector<2x16xf32>
    %115 = math.exp %114 : vector<2x16xf32>
    %cst_52 = arith.constant 1.000000e+00 : f32
    %116 = vector.broadcast %cst_52 : f32 to vector<2x16xf32>
    %117 = arith.addf %116, %115 : vector<2x16xf32>
    %118 = arith.divf %116, %117 : vector<2x16xf32>
    %c0_53 = arith.constant 0 : index
    %c0_54 = arith.constant 0 : index
    %119 = vector.load %arg6[%c0_53, %c0_54] : memref<2x16xf32, #tpu.memory_space<vmem>>, vector<2x16xf32>
    %120 = arith.mulf %110, %119 : vector<2x16xf32>
    %121 = arith.mulf %104, %112 : vector<2x16xf32>
    %122 = arith.addf %120, %121 : vector<2x16xf32>
    %123 = math.tanh %122 : vector<2x16xf32>
    %124 = arith.mulf %118, %123 : vector<2x16xf32>
    %c0_55 = arith.constant 0 : index
    %c0_56 = arith.constant 0 : index
    %125 = vector.load %arg6[%c0_55, %c0_56] : memref<2x16xf32, #tpu.memory_space<vmem>>, vector<2x16xf32>
    tpu.vector_store %arg6[%c0_55, %c0_56], %122 {strides = array<i32>} : memref<2x16xf32, #tpu.memory_space<vmem>>, vector<2x16xf32>,
    %c0_57 = arith.constant 0 : index
    %c0_58 = arith.constant 0 : index
    %126 = vector.load %arg5[%c0_57, %c0_58] : memref<2x16xf32, #tpu.memory_space<vmem>>, vector<2x16xf32>
    tpu.vector_store %arg5[%c0_57, %c0_58], %124 {strides = array<i32>} : memref<2x16xf32, #tpu.memory_space<vmem>>, vector<2x16xf32>,
    %c0_59 = arith.constant 0 : index
    %127 = arith.index_cast %92 : i32 to index
    %c0_60 = arith.constant 0 : index
    %c0_61 = arith.constant 0 : index
    %128 = vector.load %arg4[%c0_59, %127, %c0_60, %c0_61] : memref<1x8x2x16xf32, #tpu.memory_space<vmem>>, vector<1x1x2x16xf32>
    %129 = vector.shape_cast %128 : vector<1x1x2x16xf32> to vector<2x16xf32>
    %130 = vector.shape_cast %124 : vector<2x16xf32> to vector<1x1x2x16xf32>
    tpu.vector_store %arg4[%c0_59, %127, %c0_60, %c0_61], %130 {strides = array<i32>} : memref<1x8x2x16xf32, #tpu.memory_space<vmem>>, vector<1x1x2x16xf32>,
    %c3_i32 = arith.constant 3 : i32
    %c2_i32_62 = arith.constant 2 : i32
    %131 = arith.muli %c2_i32_62, %c3_i32 : i32
    %c7_i32_63 = arith.constant 7 : i32
    %132 = arith.subi %c7_i32_63, %131 : i32
    %133 = arith.muli %arg0, %132 : i32
    %134 = arith.addi %c3_i32, %133 : i32
    %c0_64 = arith.constant 0 : index
    %135 = arith.index_cast %134 : i32 to index
    %c0_65 = arith.constant 0 : index
    %c0_66 = arith.constant 0 : index
    %136 = vector.load %arg2[%c0_64, %135, %c0_65, %c0_66] : memref<1x8x2x64xf32, #tpu.memory_space<vmem>>, vector<1x1x2x64xf32>
    %137 = vector.shape_cast %136 : vector<1x1x2x64xf32> to vector<2x64xf32>
    %c0_67 = arith.constant 0 : index
    %c0_68 = arith.constant 0 : index
    %138 = vector.load %arg5[%c0_67, %c0_68] : memref<2x16xf32, #tpu.memory_space<vmem>>, vector<2x16xf32>
    %cst_69 = arith.constant dense<0.000000e+00> : vector<2x64xf32>
    %139 = tpu.matmul %138, %4, %cst_69 {dimension_numbers = #tpu.dot_dimension_numbers<[1], [0], [0], [1], [0, 0, 1, 1], [], []>} : vector<2x16xf32>, vector<16x64xf32>, vector<2x64xf32> -> vector<2x64xf32>
    %140 = arith.addf %137, %139 : vector<2x64xf32>
    %141 = vector.extract_strided_slice %140 {offsets = [0, 0], sizes = [2, 16], strides = [1, 1]} : vector<2x64xf32> to vector<2x16xf32>
    %142 = arith.negf %141 : vector<2x16xf32>
    %143 = math.exp %142 : vector<2x16xf32>
    %cst_70 = arith.constant 1.000000e+00 : f32
    %144 = vector.broadcast %cst_70 : f32 to vector<2x16xf32>
    %145 = arith.addf %144, %143 : vector<2x16xf32>
    %146 = arith.divf %144, %145 : vector<2x16xf32>
    %147 = vector.extract_strided_slice %140 {offsets = [0, 16], sizes = [2, 16], strides = [1, 1]} : vector<2x64xf32> to vector<2x16xf32>
    %148 = arith.negf %147 : vector<2x16xf32>
    %149 = math.exp %148 : vector<2x16xf32>
    %cst_71 = arith.constant 1.000000e+00 : f32
    %150 = vector.broadcast %cst_71 : f32 to vector<2x16xf32>
    %151 = arith.addf %150, %149 : vector<2x16xf32>
    %152 = arith.divf %150, %151 : vector<2x16xf32>
    %153 = vector.extract_strided_slice %140 {offsets = [0, 32], sizes = [2, 16], strides = [1, 1]} : vector<2x64xf32> to vector<2x16xf32>
    %154 = math.tanh %153 : vector<2x16xf32>
    %155 = vector.extract_strided_slice %140 {offsets = [0, 48], sizes = [2, 16], strides = [1, 1]} : vector<2x64xf32> to vector<2x16xf32>
    %156 = arith.negf %155 : vector<2x16xf32>
    %157 = math.exp %156 : vector<2x16xf32>
    %cst_72 = arith.constant 1.000000e+00 : f32
    %158 = vector.broadcast %cst_72 : f32 to vector<2x16xf32>
    %159 = arith.addf %158, %157 : vector<2x16xf32>
    %160 = arith.divf %158, %159 : vector<2x16xf32>
    %c0_73 = arith.constant 0 : index
    %c0_74 = arith.constant 0 : index
    %161 = vector.load %arg6[%c0_73, %c0_74] : memref<2x16xf32, #tpu.memory_space<vmem>>, vector<2x16xf32>
    %162 = arith.mulf %152, %161 : vector<2x16xf32>
    %163 = arith.mulf %146, %154 : vector<2x16xf32>
    %164 = arith.addf %162, %163 : vector<2x16xf32>
    %165 = math.tanh %164 : vector<2x16xf32>
    %166 = arith.mulf %160, %165 : vector<2x16xf32>
    %c0_75 = arith.constant 0 : index
    %c0_76 = arith.constant 0 : index
    %167 = vector.load %arg6[%c0_75, %c0_76] : memref<2x16xf32, #tpu.memory_space<vmem>>, vector<2x16xf32>
    tpu.vector_store %arg6[%c0_75, %c0_76], %164 {strides = array<i32>} : memref<2x16xf32, #tpu.memory_space<vmem>>, vector<2x16xf32>,
    %c0_77 = arith.constant 0 : index
    %c0_78 = arith.constant 0 : index
    %168 = vector.load %arg5[%c0_77, %c0_78] : memref<2x16xf32, #tpu.memory_space<vmem>>, vector<2x16xf32>
    tpu.vector_store %arg5[%c0_77, %c0_78], %166 {strides = array<i32>} : memref<2x16xf32, #tpu.memory_space<vmem>>, vector<2x16xf32>,
    %c0_79 = arith.constant 0 : index
    %169 = arith.index_cast %134 : i32 to index
    %c0_80 = arith.constant 0 : index
    %c0_81 = arith.constant 0 : index
    %170 = vector.load %arg4[%c0_79, %169, %c0_80, %c0_81] : memref<1x8x2x16xf32, #tpu.memory_space<vmem>>, vector<1x1x2x16xf32>
    %171 = vector.shape_cast %170 : vector<1x1x2x16xf32> to vector<2x16xf32>
    %172 = vector.shape_cast %166 : vector<2x16xf32> to vector<1x1x2x16xf32>
    tpu.vector_store %arg4[%c0_79, %169, %c0_80, %c0_81], %172 {strides = array<i32>} : memref<1x8x2x16xf32, #tpu.memory_space<vmem>>, vector<1x1x2x16xf32>,
    %c4_i32 = arith.constant 4 : i32
    %c2_i32_82 = arith.constant 2 : i32
    %173 = arith.muli %c2_i32_82, %c4_i32 : i32
    %c7_i32_83 = arith.constant 7 : i32
    %174 = arith.subi %c7_i32_83, %173 : i32
    %175 = arith.muli %arg0, %174 : i32
    %176 = arith.addi %c4_i32, %175 : i32
    %c0_84 = arith.constant 0 : index
    %177 = arith.index_cast %176 : i32 to index
    %c0_85 = arith.constant 0 : index
    %c0_86 = arith.constant 0 : index
    %178 = vector.load %arg2[%c0_84, %177, %c0_85, %c0_86] : memref<1x8x2x64xf32, #tpu.memory_space<vmem>>, vector<1x1x2x64xf32>
    %179 = vector.shape_cast %178 : vector<1x1x2x64xf32> to vector<2x64xf32>
    %c0_87 = arith.constant 0 : index
    %c0_88 = arith.constant 0 : index
    %180 = vector.load %arg5[%c0_87, %c0_88] : memref<2x16xf32, #tpu.memory_space<vmem>>, vector<2x16xf32>
    %cst_89 = arith.constant dense<0.000000e+00> : vector<2x64xf32>
    %181 = tpu.matmul %180, %4, %cst_89 {dimension_numbers = #tpu.dot_dimension_numbers<[1], [0], [0], [1], [0, 0, 1, 1], [], []>} : vector<2x16xf32>, vector<16x64xf32>, vector<2x64xf32> -> vector<2x64xf32>
    %182 = arith.addf %179, %181 : vector<2x64xf32>
    %183 = vector.extract_strided_slice %182 {offsets = [0, 0], sizes = [2, 16], strides = [1, 1]} : vector<2x64xf32> to vector<2x16xf32>
    %184 = arith.negf %183 : vector<2x16xf32>
    %185 = math.exp %184 : vector<2x16xf32>
    %cst_90 = arith.constant 1.000000e+00 : f32
    %186 = vector.broadcast %cst_90 : f32 to vector<2x16xf32>
    %187 = arith.addf %186, %185 : vector<2x16xf32>
    %188 = arith.divf %186, %187 : vector<2x16xf32>
    %189 = vector.extract_strided_slice %182 {offsets = [0, 16], sizes = [2, 16], strides = [1, 1]} : vector<2x64xf32> to vector<2x16xf32>
    %190 = arith.negf %189 : vector<2x16xf32>
    %191 = math.exp %190 : vector<2x16xf32>
    %cst_91 = arith.constant 1.000000e+00 : f32
    %192 = vector.broadcast %cst_91 : f32 to vector<2x16xf32>
    %193 = arith.addf %192, %191 : vector<2x16xf32>
    %194 = arith.divf %192, %193 : vector<2x16xf32>
    %195 = vector.extract_strided_slice %182 {offsets = [0, 32], sizes = [2, 16], strides = [1, 1]} : vector<2x64xf32> to vector<2x16xf32>
    %196 = math.tanh %195 : vector<2x16xf32>
    %197 = vector.extract_strided_slice %182 {offsets = [0, 48], sizes = [2, 16], strides = [1, 1]} : vector<2x64xf32> to vector<2x16xf32>
    %198 = arith.negf %197 : vector<2x16xf32>
    %199 = math.exp %198 : vector<2x16xf32>
    %cst_92 = arith.constant 1.000000e+00 : f32
    %200 = vector.broadcast %cst_92 : f32 to vector<2x16xf32>
    %201 = arith.addf %200, %199 : vector<2x16xf32>
    %202 = arith.divf %200, %201 : vector<2x16xf32>
    %c0_93 = arith.constant 0 : index
    %c0_94 = arith.constant 0 : index
    %203 = vector.load %arg6[%c0_93, %c0_94] : memref<2x16xf32, #tpu.memory_space<vmem>>, vector<2x16xf32>
    %204 = arith.mulf %194, %203 : vector<2x16xf32>
    %205 = arith.mulf %188, %196 : vector<2x16xf32>
    %206 = arith.addf %204, %205 : vector<2x16xf32>
    %207 = math.tanh %206 : vector<2x16xf32>
    %208 = arith.mulf %202, %207 : vector<2x16xf32>
    %c0_95 = arith.constant 0 : index
    %c0_96 = arith.constant 0 : index
    %209 = vector.load %arg6[%c0_95, %c0_96] : memref<2x16xf32, #tpu.memory_space<vmem>>, vector<2x16xf32>
    tpu.vector_store %arg6[%c0_95, %c0_96], %206 {strides = array<i32>} : memref<2x16xf32, #tpu.memory_space<vmem>>, vector<2x16xf32>,
    %c0_97 = arith.constant 0 : index
    %c0_98 = arith.constant 0 : index
    %210 = vector.load %arg5[%c0_97, %c0_98] : memref<2x16xf32, #tpu.memory_space<vmem>>, vector<2x16xf32>
    tpu.vector_store %arg5[%c0_97, %c0_98], %208 {strides = array<i32>} : memref<2x16xf32, #tpu.memory_space<vmem>>, vector<2x16xf32>,
    %c0_99 = arith.constant 0 : index
    %211 = arith.index_cast %176 : i32 to index
    %c0_100 = arith.constant 0 : index
    %c0_101 = arith.constant 0 : index
    %212 = vector.load %arg4[%c0_99, %211, %c0_100, %c0_101] : memref<1x8x2x16xf32, #tpu.memory_space<vmem>>, vector<1x1x2x16xf32>
    %213 = vector.shape_cast %212 : vector<1x1x2x16xf32> to vector<2x16xf32>
    %214 = vector.shape_cast %208 : vector<2x16xf32> to vector<1x1x2x16xf32>
    tpu.vector_store %arg4[%c0_99, %211, %c0_100, %c0_101], %214 {strides = array<i32>} : memref<1x8x2x16xf32, #tpu.memory_space<vmem>>, vector<1x1x2x16xf32>,
    %c5_i32 = arith.constant 5 : i32
    %c2_i32_102 = arith.constant 2 : i32
    %215 = arith.muli %c2_i32_102, %c5_i32 : i32
    %c7_i32_103 = arith.constant 7 : i32
    %216 = arith.subi %c7_i32_103, %215 : i32
    %217 = arith.muli %arg0, %216 : i32
    %218 = arith.addi %c5_i32, %217 : i32
    %c0_104 = arith.constant 0 : index
    %219 = arith.index_cast %218 : i32 to index
    %c0_105 = arith.constant 0 : index
    %c0_106 = arith.constant 0 : index
    %220 = vector.load %arg2[%c0_104, %219, %c0_105, %c0_106] : memref<1x8x2x64xf32, #tpu.memory_space<vmem>>, vector<1x1x2x64xf32>
    %221 = vector.shape_cast %220 : vector<1x1x2x64xf32> to vector<2x64xf32>
    %c0_107 = arith.constant 0 : index
    %c0_108 = arith.constant 0 : index
    %222 = vector.load %arg5[%c0_107, %c0_108] : memref<2x16xf32, #tpu.memory_space<vmem>>, vector<2x16xf32>
    %cst_109 = arith.constant dense<0.000000e+00> : vector<2x64xf32>
    %223 = tpu.matmul %222, %4, %cst_109 {dimension_numbers = #tpu.dot_dimension_numbers<[1], [0], [0], [1], [0, 0, 1, 1], [], []>} : vector<2x16xf32>, vector<16x64xf32>, vector<2x64xf32> -> vector<2x64xf32>
    %224 = arith.addf %221, %223 : vector<2x64xf32>
    %225 = vector.extract_strided_slice %224 {offsets = [0, 0], sizes = [2, 16], strides = [1, 1]} : vector<2x64xf32> to vector<2x16xf32>
    %226 = arith.negf %225 : vector<2x16xf32>
    %227 = math.exp %226 : vector<2x16xf32>
    %cst_110 = arith.constant 1.000000e+00 : f32
    %228 = vector.broadcast %cst_110 : f32 to vector<2x16xf32>
    %229 = arith.addf %228, %227 : vector<2x16xf32>
    %230 = arith.divf %228, %229 : vector<2x16xf32>
    %231 = vector.extract_strided_slice %224 {offsets = [0, 16], sizes = [2, 16], strides = [1, 1]} : vector<2x64xf32> to vector<2x16xf32>
    %232 = arith.negf %231 : vector<2x16xf32>
    %233 = math.exp %232 : vector<2x16xf32>
    %cst_111 = arith.constant 1.000000e+00 : f32
    %234 = vector.broadcast %cst_111 : f32 to vector<2x16xf32>
    %235 = arith.addf %234, %233 : vector<2x16xf32>
    %236 = arith.divf %234, %235 : vector<2x16xf32>
    %237 = vector.extract_strided_slice %224 {offsets = [0, 32], sizes = [2, 16], strides = [1, 1]} : vector<2x64xf32> to vector<2x16xf32>
    %238 = math.tanh %237 : vector<2x16xf32>
    %239 = vector.extract_strided_slice %224 {offsets = [0, 48], sizes = [2, 16], strides = [1, 1]} : vector<2x64xf32> to vector<2x16xf32>
    %240 = arith.negf %239 : vector<2x16xf32>
    %241 = math.exp %240 : vector<2x16xf32>
    %cst_112 = arith.constant 1.000000e+00 : f32
    %242 = vector.broadcast %cst_112 : f32 to vector<2x16xf32>
    %243 = arith.addf %242, %241 : vector<2x16xf32>
    %244 = arith.divf %242, %243 : vector<2x16xf32>
    %c0_113 = arith.constant 0 : index
    %c0_114 = arith.constant 0 : index
    %245 = vector.load %arg6[%c0_113, %c0_114] : memref<2x16xf32, #tpu.memory_space<vmem>>, vector<2x16xf32>
    %246 = arith.mulf %236, %245 : vector<2x16xf32>
    %247 = arith.mulf %230, %238 : vector<2x16xf32>
    %248 = arith.addf %246, %247 : vector<2x16xf32>
    %249 = math.tanh %248 : vector<2x16xf32>
    %250 = arith.mulf %244, %249 : vector<2x16xf32>
    %c0_115 = arith.constant 0 : index
    %c0_116 = arith.constant 0 : index
    %251 = vector.load %arg6[%c0_115, %c0_116] : memref<2x16xf32, #tpu.memory_space<vmem>>, vector<2x16xf32>
    tpu.vector_store %arg6[%c0_115, %c0_116], %248 {strides = array<i32>} : memref<2x16xf32, #tpu.memory_space<vmem>>, vector<2x16xf32>,
    %c0_117 = arith.constant 0 : index
    %c0_118 = arith.constant 0 : index
    %252 = vector.load %arg5[%c0_117, %c0_118] : memref<2x16xf32, #tpu.memory_space<vmem>>, vector<2x16xf32>
    tpu.vector_store %arg5[%c0_117, %c0_118], %250 {strides = array<i32>} : memref<2x16xf32, #tpu.memory_space<vmem>>, vector<2x16xf32>,
    %c0_119 = arith.constant 0 : index
    %253 = arith.index_cast %218 : i32 to index
    %c0_120 = arith.constant 0 : index
    %c0_121 = arith.constant 0 : index
    %254 = vector.load %arg4[%c0_119, %253, %c0_120, %c0_121] : memref<1x8x2x16xf32, #tpu.memory_space<vmem>>, vector<1x1x2x16xf32>
    %255 = vector.shape_cast %254 : vector<1x1x2x16xf32> to vector<2x16xf32>
    %256 = vector.shape_cast %250 : vector<2x16xf32> to vector<1x1x2x16xf32>
    tpu.vector_store %arg4[%c0_119, %253, %c0_120, %c0_121], %256 {strides = array<i32>} : memref<1x8x2x16xf32, #tpu.memory_space<vmem>>, vector<1x1x2x16xf32>,
    %c6_i32 = arith.constant 6 : i32
    %c2_i32_122 = arith.constant 2 : i32
    %257 = arith.muli %c2_i32_122, %c6_i32 : i32
    %c7_i32_123 = arith.constant 7 : i32
    %258 = arith.subi %c7_i32_123, %257 : i32
    %259 = arith.muli %arg0, %258 : i32
    %260 = arith.addi %c6_i32, %259 : i32
    %c0_124 = arith.constant 0 : index
    %261 = arith.index_cast %260 : i32 to index
    %c0_125 = arith.constant 0 : index
    %c0_126 = arith.constant 0 : index
    %262 = vector.load %arg2[%c0_124, %261, %c0_125, %c0_126] : memref<1x8x2x64xf32, #tpu.memory_space<vmem>>, vector<1x1x2x64xf32>
    %263 = vector.shape_cast %262 : vector<1x1x2x64xf32> to vector<2x64xf32>
    %c0_127 = arith.constant 0 : index
    %c0_128 = arith.constant 0 : index
    %264 = vector.load %arg5[%c0_127, %c0_128] : memref<2x16xf32, #tpu.memory_space<vmem>>, vector<2x16xf32>
    %cst_129 = arith.constant dense<0.000000e+00> : vector<2x64xf32>
    %265 = tpu.matmul %264, %4, %cst_129 {dimension_numbers = #tpu.dot_dimension_numbers<[1], [0], [0], [1], [0, 0, 1, 1], [], []>} : vector<2x16xf32>, vector<16x64xf32>, vector<2x64xf32> -> vector<2x64xf32>
    %266 = arith.addf %263, %265 : vector<2x64xf32>
    %267 = vector.extract_strided_slice %266 {offsets = [0, 0], sizes = [2, 16], strides = [1, 1]} : vector<2x64xf32> to vector<2x16xf32>
    %268 = arith.negf %267 : vector<2x16xf32>
    %269 = math.exp %268 : vector<2x16xf32>
    %cst_130 = arith.constant 1.000000e+00 : f32
    %270 = vector.broadcast %cst_130 : f32 to vector<2x16xf32>
    %271 = arith.addf %270, %269 : vector<2x16xf32>
    %272 = arith.divf %270, %271 : vector<2x16xf32>
    %273 = vector.extract_strided_slice %266 {offsets = [0, 16], sizes = [2, 16], strides = [1, 1]} : vector<2x64xf32> to vector<2x16xf32>
    %274 = arith.negf %273 : vector<2x16xf32>
    %275 = math.exp %274 : vector<2x16xf32>
    %cst_131 = arith.constant 1.000000e+00 : f32
    %276 = vector.broadcast %cst_131 : f32 to vector<2x16xf32>
    %277 = arith.addf %276, %275 : vector<2x16xf32>
    %278 = arith.divf %276, %277 : vector<2x16xf32>
    %279 = vector.extract_strided_slice %266 {offsets = [0, 32], sizes = [2, 16], strides = [1, 1]} : vector<2x64xf32> to vector<2x16xf32>
    %280 = math.tanh %279 : vector<2x16xf32>
    %281 = vector.extract_strided_slice %266 {offsets = [0, 48], sizes = [2, 16], strides = [1, 1]} : vector<2x64xf32> to vector<2x16xf32>
    %282 = arith.negf %281 : vector<2x16xf32>
    %283 = math.exp %282 : vector<2x16xf32>
    %cst_132 = arith.constant 1.000000e+00 : f32
    %284 = vector.broadcast %cst_132 : f32 to vector<2x16xf32>
    %285 = arith.addf %284, %283 : vector<2x16xf32>
    %286 = arith.divf %284, %285 : vector<2x16xf32>
    %c0_133 = arith.constant 0 : index
    %c0_134 = arith.constant 0 : index
    %287 = vector.load %arg6[%c0_133, %c0_134] : memref<2x16xf32, #tpu.memory_space<vmem>>, vector<2x16xf32>
    %288 = arith.mulf %278, %287 : vector<2x16xf32>
    %289 = arith.mulf %272, %280 : vector<2x16xf32>
    %290 = arith.addf %288, %289 : vector<2x16xf32>
    %291 = math.tanh %290 : vector<2x16xf32>
    %292 = arith.mulf %286, %291 : vector<2x16xf32>
    %c0_135 = arith.constant 0 : index
    %c0_136 = arith.constant 0 : index
    %293 = vector.load %arg6[%c0_135, %c0_136] : memref<2x16xf32, #tpu.memory_space<vmem>>, vector<2x16xf32>
    tpu.vector_store %arg6[%c0_135, %c0_136], %290 {strides = array<i32>} : memref<2x16xf32, #tpu.memory_space<vmem>>, vector<2x16xf32>,
    %c0_137 = arith.constant 0 : index
    %c0_138 = arith.constant 0 : index
    %294 = vector.load %arg5[%c0_137, %c0_138] : memref<2x16xf32, #tpu.memory_space<vmem>>, vector<2x16xf32>
    tpu.vector_store %arg5[%c0_137, %c0_138], %292 {strides = array<i32>} : memref<2x16xf32, #tpu.memory_space<vmem>>, vector<2x16xf32>,
    %c0_139 = arith.constant 0 : index
    %295 = arith.index_cast %260 : i32 to index
    %c0_140 = arith.constant 0 : index
    %c0_141 = arith.constant 0 : index
    %296 = vector.load %arg4[%c0_139, %295, %c0_140, %c0_141] : memref<1x8x2x16xf32, #tpu.memory_space<vmem>>, vector<1x1x2x16xf32>
    %297 = vector.shape_cast %296 : vector<1x1x2x16xf32> to vector<2x16xf32>
    %298 = vector.shape_cast %292 : vector<2x16xf32> to vector<1x1x2x16xf32>
    tpu.vector_store %arg4[%c0_139, %295, %c0_140, %c0_141], %298 {strides = array<i32>} : memref<1x8x2x16xf32, #tpu.memory_space<vmem>>, vector<1x1x2x16xf32>,
    %c7_i32_142 = arith.constant 7 : i32
    %c2_i32_143 = arith.constant 2 : i32
    %299 = arith.muli %c2_i32_143, %c7_i32_142 : i32
    %c7_i32_144 = arith.constant 7 : i32
    %300 = arith.subi %c7_i32_144, %299 : i32
    %301 = arith.muli %arg0, %300 : i32
    %302 = arith.addi %c7_i32_142, %301 : i32
    %c0_145 = arith.constant 0 : index
    %303 = arith.index_cast %302 : i32 to index
    %c0_146 = arith.constant 0 : index
    %c0_147 = arith.constant 0 : index
    %304 = vector.load %arg2[%c0_145, %303, %c0_146, %c0_147] : memref<1x8x2x64xf32, #tpu.memory_space<vmem>>, vector<1x1x2x64xf32>
    %305 = vector.shape_cast %304 : vector<1x1x2x64xf32> to vector<2x64xf32>
    %c0_148 = arith.constant 0 : index
    %c0_149 = arith.constant 0 : index
    %306 = vector.load %arg5[%c0_148, %c0_149] : memref<2x16xf32, #tpu.memory_space<vmem>>, vector<2x16xf32>
    %cst_150 = arith.constant dense<0.000000e+00> : vector<2x64xf32>
    %307 = tpu.matmul %306, %4, %cst_150 {dimension_numbers = #tpu.dot_dimension_numbers<[1], [0], [0], [1], [0, 0, 1, 1], [], []>} : vector<2x16xf32>, vector<16x64xf32>, vector<2x64xf32> -> vector<2x64xf32>
    %308 = arith.addf %305, %307 : vector<2x64xf32>
    %309 = vector.extract_strided_slice %308 {offsets = [0, 0], sizes = [2, 16], strides = [1, 1]} : vector<2x64xf32> to vector<2x16xf32>
    %310 = arith.negf %309 : vector<2x16xf32>
    %311 = math.exp %310 : vector<2x16xf32>
    %cst_151 = arith.constant 1.000000e+00 : f32
    %312 = vector.broadcast %cst_151 : f32 to vector<2x16xf32>
    %313 = arith.addf %312, %311 : vector<2x16xf32>
    %314 = arith.divf %312, %313 : vector<2x16xf32>
    %315 = vector.extract_strided_slice %308 {offsets = [0, 16], sizes = [2, 16], strides = [1, 1]} : vector<2x64xf32> to vector<2x16xf32>
    %316 = arith.negf %315 : vector<2x16xf32>
    %317 = math.exp %316 : vector<2x16xf32>
    %cst_152 = arith.constant 1.000000e+00 : f32
    %318 = vector.broadcast %cst_152 : f32 to vector<2x16xf32>
    %319 = arith.addf %318, %317 : vector<2x16xf32>
    %320 = arith.divf %318, %319 : vector<2x16xf32>
    %321 = vector.extract_strided_slice %308 {offsets = [0, 32], sizes = [2, 16], strides = [1, 1]} : vector<2x64xf32> to vector<2x16xf32>
    %322 = math.tanh %321 : vector<2x16xf32>
    %323 = vector.extract_strided_slice %308 {offsets = [0, 48], sizes = [2, 16], strides = [1, 1]} : vector<2x64xf32> to vector<2x16xf32>
    %324 = arith.negf %323 : vector<2x16xf32>
    %325 = math.exp %324 : vector<2x16xf32>
    %cst_153 = arith.constant 1.000000e+00 : f32
    %326 = vector.broadcast %cst_153 : f32 to vector<2x16xf32>
    %327 = arith.addf %326, %325 : vector<2x16xf32>
    %328 = arith.divf %326, %327 : vector<2x16xf32>
    %c0_154 = arith.constant 0 : index
    %c0_155 = arith.constant 0 : index
    %329 = vector.load %arg6[%c0_154, %c0_155] : memref<2x16xf32, #tpu.memory_space<vmem>>, vector<2x16xf32>
    %330 = arith.mulf %320, %329 : vector<2x16xf32>
    %331 = arith.mulf %314, %322 : vector<2x16xf32>
    %332 = arith.addf %330, %331 : vector<2x16xf32>
    %333 = math.tanh %332 : vector<2x16xf32>
    %334 = arith.mulf %328, %333 : vector<2x16xf32>
    %c0_156 = arith.constant 0 : index
    %c0_157 = arith.constant 0 : index
    %335 = vector.load %arg6[%c0_156, %c0_157] : memref<2x16xf32, #tpu.memory_space<vmem>>, vector<2x16xf32>
    tpu.vector_store %arg6[%c0_156, %c0_157], %332 {strides = array<i32>} : memref<2x16xf32, #tpu.memory_space<vmem>>, vector<2x16xf32>,
    %c0_158 = arith.constant 0 : index
    %c0_159 = arith.constant 0 : index
    %336 = vector.load %arg5[%c0_158, %c0_159] : memref<2x16xf32, #tpu.memory_space<vmem>>, vector<2x16xf32>
    tpu.vector_store %arg5[%c0_158, %c0_159], %334 {strides = array<i32>} : memref<2x16xf32, #tpu.memory_space<vmem>>, vector<2x16xf32>,
    %c0_160 = arith.constant 0 : index
    %337 = arith.index_cast %302 : i32 to index
    %c0_161 = arith.constant 0 : index
    %c0_162 = arith.constant 0 : index
    %338 = vector.load %arg4[%c0_160, %337, %c0_161, %c0_162] : memref<1x8x2x16xf32, #tpu.memory_space<vmem>>, vector<1x1x2x16xf32>
    %339 = vector.shape_cast %338 : vector<1x1x2x16xf32> to vector<2x16xf32>
    %340 = vector.shape_cast %334 : vector<2x16xf32> to vector<1x1x2x16xf32>
    tpu.vector_store %arg4[%c0_160, %337, %c0_161, %c0_162], %340 {strides = array<i32>} : memref<1x8x2x16xf32, #tpu.memory_space<vmem>>, vector<1x1x2x16xf32>,
    %c8_i32 = arith.constant 8 : i32
    return
  }
  func.func @transform_0(%arg0: i32, %arg1: i32) -> (i32, i32, i32, i32) {
    %c2_i32 = arith.constant 2 : i32
    %0 = arith.muli %c2_i32, %arg1 : i32
    %c0_i32 = arith.constant 0 : i32
    %1 = arith.subi %c0_i32, %0 : i32
    %2 = arith.muli %arg0, %1 : i32
    %3 = arith.addi %arg1, %2 : i32
    %c0_i32_0 = arith.constant 0 : i32
    %c0_i32_1 = arith.constant 0 : i32
    %c0_i32_2 = arith.constant 0 : i32
    return %arg0, %3, %c0_i32_0, %c0_i32_1 : i32, i32, i32, i32
  }
  func.func @transform_1(%arg0: i32, %arg1: i32) -> (i32, i32, i32) {
    %c0_i32 = arith.constant 0 : i32
    %c0_i32_0 = arith.constant 0 : i32
    %c0_i32_1 = arith.constant 0 : i32
    return %arg0, %c0_i32, %c0_i32_0 : i32, i32, i32
  }
  func.func @transform_2(%arg0: i32, %arg1: i32) -> (i32, i32, i32, i32) {
    %c2_i32 = arith.constant 2 : i32
    %0 = arith.muli %c2_i32, %arg1 : i32
    %c0_i32 = arith.constant 0 : i32
    %1 = arith.subi %c0_i32, %0 : i32
    %2 = arith.muli %arg0, %1 : i32
    %3 = arith.addi %arg1, %2 : i32
    %c0_i32_0 = arith.constant 0 : i32
    %c0_i32_1 = arith.constant 0 : i32
    %c0_i32_2 = arith.constant 0 : i32
    return %arg0, %3, %c0_i32_0, %c0_i32_1 : i32, i32, i32, i32
  }
}

module attributes {stable_mosaic.version = 11 : i64} {
  func.func @_bilstm_kernel(%arg0: i32, %arg1: i32, %arg2: memref<1x10x2x64xf32, #tpu.memory_space<vmem>>, %arg3: memref<1x16x64xf32, #tpu.memory_space<vmem>>, %arg4: memref<1x10x2x16xf32, #tpu.memory_space<vmem>>, %arg5: memref<2x16xf32, #tpu.memory_space<vmem>>, %arg6: memref<2x16xf32, #tpu.memory_space<vmem>>) attributes {dimension_semantics = [#tpu.dimension_semantics<parallel>, #tpu.dimension_semantics<arbitrary>], iteration_bounds = array<i64: 2, 1>, scalar_prefetch = 0 : i64, scratch_operands = 2 : i64, tpu.core_type = #tpu.core_type<tc>, window_params = [{transform_indices = @transform_0, window_bounds = array<i64: 1, 10, 2, 64>}, {transform_indices = @transform_1, window_bounds = array<i64: 1, 16, 64>}, {transform_indices = @transform_2, window_bounds = array<i64: 1, 10, 2, 16>}]} {
    %c0_i32 = arith.constant 0 : i32
    %0 = arith.cmpi eq, %arg1, %c0_i32 : i32
    %1 = arith.extui %0 : i1 to i32
    %c0_i32_0 = arith.constant 0 : i32
    %2 = arith.cmpi ne, %1, %c0_i32_0 : i32
    scf.if %2 {
      %cst_203 = arith.constant 0.000000e+00 : f32
      %425 = vector.broadcast %cst_203 : f32 to vector<2x16xf32>
      %c0_204 = arith.constant 0 : index
      %c0_205 = arith.constant 0 : index
      %426 = vector.load %arg5[%c0_204, %c0_205] : memref<2x16xf32, #tpu.memory_space<vmem>>, vector<2x16xf32>
      tpu.vector_store %arg5[%c0_204, %c0_205], %425 {strides = array<i32>} : memref<2x16xf32, #tpu.memory_space<vmem>>, vector<2x16xf32>,
      %cst_206 = arith.constant 0.000000e+00 : f32
      %427 = vector.broadcast %cst_206 : f32 to vector<2x16xf32>
      %c0_207 = arith.constant 0 : index
      %c0_208 = arith.constant 0 : index
      %428 = vector.load %arg6[%c0_207, %c0_208] : memref<2x16xf32, #tpu.memory_space<vmem>>, vector<2x16xf32>
      tpu.vector_store %arg6[%c0_207, %c0_208], %427 {strides = array<i32>} : memref<2x16xf32, #tpu.memory_space<vmem>>, vector<2x16xf32>,
    } else {
    }
    %c0 = arith.constant 0 : index
    %c0_1 = arith.constant 0 : index
    %c0_2 = arith.constant 0 : index
    %3 = vector.load %arg3[%c0, %c0_1, %c0_2] : memref<1x16x64xf32, #tpu.memory_space<vmem>>, vector<1x16x64xf32>
    %4 = vector.shape_cast %3 : vector<1x16x64xf32> to vector<16x64xf32>
    %c0_i32_3 = arith.constant 0 : i32
    %c2_i32 = arith.constant 2 : i32
    %5 = arith.muli %c2_i32, %c0_i32_3 : i32
    %c9_i32 = arith.constant 9 : i32
    %6 = arith.subi %c9_i32, %5 : i32
    %7 = arith.muli %arg0, %6 : i32
    %8 = arith.addi %c0_i32_3, %7 : i32
    %c0_4 = arith.constant 0 : index
    %9 = arith.index_cast %8 : i32 to index
    %c0_5 = arith.constant 0 : index
    %c0_6 = arith.constant 0 : index
    %10 = vector.load %arg2[%c0_4, %9, %c0_5, %c0_6] : memref<1x10x2x64xf32, #tpu.memory_space<vmem>>, vector<1x1x2x64xf32>
    %11 = vector.shape_cast %10 : vector<1x1x2x64xf32> to vector<2x64xf32>
    %c0_7 = arith.constant 0 : index
    %c0_8 = arith.constant 0 : index
    %12 = vector.load %arg5[%c0_7, %c0_8] : memref<2x16xf32, #tpu.memory_space<vmem>>, vector<2x16xf32>
    %cst = arith.constant dense<0.000000e+00> : vector<2x64xf32>
    %13 = tpu.matmul %12, %4, %cst {dimension_numbers = #tpu.dot_dimension_numbers<[1], [0], [0], [1], [0, 0, 1, 1], [], []>} : vector<2x16xf32>, vector<16x64xf32>, vector<2x64xf32> -> vector<2x64xf32>
    %14 = arith.addf %11, %13 : vector<2x64xf32>
    %15 = vector.extract_strided_slice %14 {offsets = [0, 0], sizes = [2, 16], strides = [1, 1]} : vector<2x64xf32> to vector<2x16xf32>
    %16 = arith.negf %15 : vector<2x16xf32>
    %17 = math.exp %16 : vector<2x16xf32>
    %cst_9 = arith.constant 1.000000e+00 : f32
    %18 = vector.broadcast %cst_9 : f32 to vector<2x16xf32>
    %19 = arith.addf %18, %17 : vector<2x16xf32>
    %20 = arith.divf %18, %19 : vector<2x16xf32>
    %21 = vector.extract_strided_slice %14 {offsets = [0, 16], sizes = [2, 16], strides = [1, 1]} : vector<2x64xf32> to vector<2x16xf32>
    %22 = arith.negf %21 : vector<2x16xf32>
    %23 = math.exp %22 : vector<2x16xf32>
    %cst_10 = arith.constant 1.000000e+00 : f32
    %24 = vector.broadcast %cst_10 : f32 to vector<2x16xf32>
    %25 = arith.addf %24, %23 : vector<2x16xf32>
    %26 = arith.divf %24, %25 : vector<2x16xf32>
    %27 = vector.extract_strided_slice %14 {offsets = [0, 32], sizes = [2, 16], strides = [1, 1]} : vector<2x64xf32> to vector<2x16xf32>
    %28 = math.tanh %27 : vector<2x16xf32>
    %29 = vector.extract_strided_slice %14 {offsets = [0, 48], sizes = [2, 16], strides = [1, 1]} : vector<2x64xf32> to vector<2x16xf32>
    %30 = arith.negf %29 : vector<2x16xf32>
    %31 = math.exp %30 : vector<2x16xf32>
    %cst_11 = arith.constant 1.000000e+00 : f32
    %32 = vector.broadcast %cst_11 : f32 to vector<2x16xf32>
    %33 = arith.addf %32, %31 : vector<2x16xf32>
    %34 = arith.divf %32, %33 : vector<2x16xf32>
    %c0_12 = arith.constant 0 : index
    %c0_13 = arith.constant 0 : index
    %35 = vector.load %arg6[%c0_12, %c0_13] : memref<2x16xf32, #tpu.memory_space<vmem>>, vector<2x16xf32>
    %36 = arith.mulf %26, %35 : vector<2x16xf32>
    %37 = arith.mulf %20, %28 : vector<2x16xf32>
    %38 = arith.addf %36, %37 : vector<2x16xf32>
    %39 = math.tanh %38 : vector<2x16xf32>
    %40 = arith.mulf %34, %39 : vector<2x16xf32>
    %c0_14 = arith.constant 0 : index
    %c0_15 = arith.constant 0 : index
    %41 = vector.load %arg6[%c0_14, %c0_15] : memref<2x16xf32, #tpu.memory_space<vmem>>, vector<2x16xf32>
    tpu.vector_store %arg6[%c0_14, %c0_15], %38 {strides = array<i32>} : memref<2x16xf32, #tpu.memory_space<vmem>>, vector<2x16xf32>,
    %c0_16 = arith.constant 0 : index
    %c0_17 = arith.constant 0 : index
    %42 = vector.load %arg5[%c0_16, %c0_17] : memref<2x16xf32, #tpu.memory_space<vmem>>, vector<2x16xf32>
    tpu.vector_store %arg5[%c0_16, %c0_17], %40 {strides = array<i32>} : memref<2x16xf32, #tpu.memory_space<vmem>>, vector<2x16xf32>,
    %c0_18 = arith.constant 0 : index
    %43 = arith.index_cast %8 : i32 to index
    %c0_19 = arith.constant 0 : index
    %c0_20 = arith.constant 0 : index
    %44 = vector.load %arg4[%c0_18, %43, %c0_19, %c0_20] : memref<1x10x2x16xf32, #tpu.memory_space<vmem>>, vector<1x1x2x16xf32>
    %45 = vector.shape_cast %44 : vector<1x1x2x16xf32> to vector<2x16xf32>
    %46 = vector.shape_cast %40 : vector<2x16xf32> to vector<1x1x2x16xf32>
    tpu.vector_store %arg4[%c0_18, %43, %c0_19, %c0_20], %46 {strides = array<i32>} : memref<1x10x2x16xf32, #tpu.memory_space<vmem>>, vector<1x1x2x16xf32>,
    %c1_i32 = arith.constant 1 : i32
    %c2_i32_21 = arith.constant 2 : i32
    %47 = arith.muli %c2_i32_21, %c1_i32 : i32
    %c9_i32_22 = arith.constant 9 : i32
    %48 = arith.subi %c9_i32_22, %47 : i32
    %49 = arith.muli %arg0, %48 : i32
    %50 = arith.addi %c1_i32, %49 : i32
    %c0_23 = arith.constant 0 : index
    %51 = arith.index_cast %50 : i32 to index
    %c0_24 = arith.constant 0 : index
    %c0_25 = arith.constant 0 : index
    %52 = vector.load %arg2[%c0_23, %51, %c0_24, %c0_25] : memref<1x10x2x64xf32, #tpu.memory_space<vmem>>, vector<1x1x2x64xf32>
    %53 = vector.shape_cast %52 : vector<1x1x2x64xf32> to vector<2x64xf32>
    %c0_26 = arith.constant 0 : index
    %c0_27 = arith.constant 0 : index
    %54 = vector.load %arg5[%c0_26, %c0_27] : memref<2x16xf32, #tpu.memory_space<vmem>>, vector<2x16xf32>
    %cst_28 = arith.constant dense<0.000000e+00> : vector<2x64xf32>
    %55 = tpu.matmul %54, %4, %cst_28 {dimension_numbers = #tpu.dot_dimension_numbers<[1], [0], [0], [1], [0, 0, 1, 1], [], []>} : vector<2x16xf32>, vector<16x64xf32>, vector<2x64xf32> -> vector<2x64xf32>
    %56 = arith.addf %53, %55 : vector<2x64xf32>
    %57 = vector.extract_strided_slice %56 {offsets = [0, 0], sizes = [2, 16], strides = [1, 1]} : vector<2x64xf32> to vector<2x16xf32>
    %58 = arith.negf %57 : vector<2x16xf32>
    %59 = math.exp %58 : vector<2x16xf32>
    %cst_29 = arith.constant 1.000000e+00 : f32
    %60 = vector.broadcast %cst_29 : f32 to vector<2x16xf32>
    %61 = arith.addf %60, %59 : vector<2x16xf32>
    %62 = arith.divf %60, %61 : vector<2x16xf32>
    %63 = vector.extract_strided_slice %56 {offsets = [0, 16], sizes = [2, 16], strides = [1, 1]} : vector<2x64xf32> to vector<2x16xf32>
    %64 = arith.negf %63 : vector<2x16xf32>
    %65 = math.exp %64 : vector<2x16xf32>
    %cst_30 = arith.constant 1.000000e+00 : f32
    %66 = vector.broadcast %cst_30 : f32 to vector<2x16xf32>
    %67 = arith.addf %66, %65 : vector<2x16xf32>
    %68 = arith.divf %66, %67 : vector<2x16xf32>
    %69 = vector.extract_strided_slice %56 {offsets = [0, 32], sizes = [2, 16], strides = [1, 1]} : vector<2x64xf32> to vector<2x16xf32>
    %70 = math.tanh %69 : vector<2x16xf32>
    %71 = vector.extract_strided_slice %56 {offsets = [0, 48], sizes = [2, 16], strides = [1, 1]} : vector<2x64xf32> to vector<2x16xf32>
    %72 = arith.negf %71 : vector<2x16xf32>
    %73 = math.exp %72 : vector<2x16xf32>
    %cst_31 = arith.constant 1.000000e+00 : f32
    %74 = vector.broadcast %cst_31 : f32 to vector<2x16xf32>
    %75 = arith.addf %74, %73 : vector<2x16xf32>
    %76 = arith.divf %74, %75 : vector<2x16xf32>
    %c0_32 = arith.constant 0 : index
    %c0_33 = arith.constant 0 : index
    %77 = vector.load %arg6[%c0_32, %c0_33] : memref<2x16xf32, #tpu.memory_space<vmem>>, vector<2x16xf32>
    %78 = arith.mulf %68, %77 : vector<2x16xf32>
    %79 = arith.mulf %62, %70 : vector<2x16xf32>
    %80 = arith.addf %78, %79 : vector<2x16xf32>
    %81 = math.tanh %80 : vector<2x16xf32>
    %82 = arith.mulf %76, %81 : vector<2x16xf32>
    %c0_34 = arith.constant 0 : index
    %c0_35 = arith.constant 0 : index
    %83 = vector.load %arg6[%c0_34, %c0_35] : memref<2x16xf32, #tpu.memory_space<vmem>>, vector<2x16xf32>
    tpu.vector_store %arg6[%c0_34, %c0_35], %80 {strides = array<i32>} : memref<2x16xf32, #tpu.memory_space<vmem>>, vector<2x16xf32>,
    %c0_36 = arith.constant 0 : index
    %c0_37 = arith.constant 0 : index
    %84 = vector.load %arg5[%c0_36, %c0_37] : memref<2x16xf32, #tpu.memory_space<vmem>>, vector<2x16xf32>
    tpu.vector_store %arg5[%c0_36, %c0_37], %82 {strides = array<i32>} : memref<2x16xf32, #tpu.memory_space<vmem>>, vector<2x16xf32>,
    %c0_38 = arith.constant 0 : index
    %85 = arith.index_cast %50 : i32 to index
    %c0_39 = arith.constant 0 : index
    %c0_40 = arith.constant 0 : index
    %86 = vector.load %arg4[%c0_38, %85, %c0_39, %c0_40] : memref<1x10x2x16xf32, #tpu.memory_space<vmem>>, vector<1x1x2x16xf32>
    %87 = vector.shape_cast %86 : vector<1x1x2x16xf32> to vector<2x16xf32>
    %88 = vector.shape_cast %82 : vector<2x16xf32> to vector<1x1x2x16xf32>
    tpu.vector_store %arg4[%c0_38, %85, %c0_39, %c0_40], %88 {strides = array<i32>} : memref<1x10x2x16xf32, #tpu.memory_space<vmem>>, vector<1x1x2x16xf32>,
    %c2_i32_41 = arith.constant 2 : i32
    %c2_i32_42 = arith.constant 2 : i32
    %89 = arith.muli %c2_i32_42, %c2_i32_41 : i32
    %c9_i32_43 = arith.constant 9 : i32
    %90 = arith.subi %c9_i32_43, %89 : i32
    %91 = arith.muli %arg0, %90 : i32
    %92 = arith.addi %c2_i32_41, %91 : i32
    %c0_44 = arith.constant 0 : index
    %93 = arith.index_cast %92 : i32 to index
    %c0_45 = arith.constant 0 : index
    %c0_46 = arith.constant 0 : index
    %94 = vector.load %arg2[%c0_44, %93, %c0_45, %c0_46] : memref<1x10x2x64xf32, #tpu.memory_space<vmem>>, vector<1x1x2x64xf32>
    %95 = vector.shape_cast %94 : vector<1x1x2x64xf32> to vector<2x64xf32>
    %c0_47 = arith.constant 0 : index
    %c0_48 = arith.constant 0 : index
    %96 = vector.load %arg5[%c0_47, %c0_48] : memref<2x16xf32, #tpu.memory_space<vmem>>, vector<2x16xf32>
    %cst_49 = arith.constant dense<0.000000e+00> : vector<2x64xf32>
    %97 = tpu.matmul %96, %4, %cst_49 {dimension_numbers = #tpu.dot_dimension_numbers<[1], [0], [0], [1], [0, 0, 1, 1], [], []>} : vector<2x16xf32>, vector<16x64xf32>, vector<2x64xf32> -> vector<2x64xf32>
    %98 = arith.addf %95, %97 : vector<2x64xf32>
    %99 = vector.extract_strided_slice %98 {offsets = [0, 0], sizes = [2, 16], strides = [1, 1]} : vector<2x64xf32> to vector<2x16xf32>
    %100 = arith.negf %99 : vector<2x16xf32>
    %101 = math.exp %100 : vector<2x16xf32>
    %cst_50 = arith.constant 1.000000e+00 : f32
    %102 = vector.broadcast %cst_50 : f32 to vector<2x16xf32>
    %103 = arith.addf %102, %101 : vector<2x16xf32>
    %104 = arith.divf %102, %103 : vector<2x16xf32>
    %105 = vector.extract_strided_slice %98 {offsets = [0, 16], sizes = [2, 16], strides = [1, 1]} : vector<2x64xf32> to vector<2x16xf32>
    %106 = arith.negf %105 : vector<2x16xf32>
    %107 = math.exp %106 : vector<2x16xf32>
    %cst_51 = arith.constant 1.000000e+00 : f32
    %108 = vector.broadcast %cst_51 : f32 to vector<2x16xf32>
    %109 = arith.addf %108, %107 : vector<2x16xf32>
    %110 = arith.divf %108, %109 : vector<2x16xf32>
    %111 = vector.extract_strided_slice %98 {offsets = [0, 32], sizes = [2, 16], strides = [1, 1]} : vector<2x64xf32> to vector<2x16xf32>
    %112 = math.tanh %111 : vector<2x16xf32>
    %113 = vector.extract_strided_slice %98 {offsets = [0, 48], sizes = [2, 16], strides = [1, 1]} : vector<2x64xf32> to vector<2x16xf32>
    %114 = arith.negf %113 : vector<2x16xf32>
    %115 = math.exp %114 : vector<2x16xf32>
    %cst_52 = arith.constant 1.000000e+00 : f32
    %116 = vector.broadcast %cst_52 : f32 to vector<2x16xf32>
    %117 = arith.addf %116, %115 : vector<2x16xf32>
    %118 = arith.divf %116, %117 : vector<2x16xf32>
    %c0_53 = arith.constant 0 : index
    %c0_54 = arith.constant 0 : index
    %119 = vector.load %arg6[%c0_53, %c0_54] : memref<2x16xf32, #tpu.memory_space<vmem>>, vector<2x16xf32>
    %120 = arith.mulf %110, %119 : vector<2x16xf32>
    %121 = arith.mulf %104, %112 : vector<2x16xf32>
    %122 = arith.addf %120, %121 : vector<2x16xf32>
    %123 = math.tanh %122 : vector<2x16xf32>
    %124 = arith.mulf %118, %123 : vector<2x16xf32>
    %c0_55 = arith.constant 0 : index
    %c0_56 = arith.constant 0 : index
    %125 = vector.load %arg6[%c0_55, %c0_56] : memref<2x16xf32, #tpu.memory_space<vmem>>, vector<2x16xf32>
    tpu.vector_store %arg6[%c0_55, %c0_56], %122 {strides = array<i32>} : memref<2x16xf32, #tpu.memory_space<vmem>>, vector<2x16xf32>,
    %c0_57 = arith.constant 0 : index
    %c0_58 = arith.constant 0 : index
    %126 = vector.load %arg5[%c0_57, %c0_58] : memref<2x16xf32, #tpu.memory_space<vmem>>, vector<2x16xf32>
    tpu.vector_store %arg5[%c0_57, %c0_58], %124 {strides = array<i32>} : memref<2x16xf32, #tpu.memory_space<vmem>>, vector<2x16xf32>,
    %c0_59 = arith.constant 0 : index
    %127 = arith.index_cast %92 : i32 to index
    %c0_60 = arith.constant 0 : index
    %c0_61 = arith.constant 0 : index
    %128 = vector.load %arg4[%c0_59, %127, %c0_60, %c0_61] : memref<1x10x2x16xf32, #tpu.memory_space<vmem>>, vector<1x1x2x16xf32>
    %129 = vector.shape_cast %128 : vector<1x1x2x16xf32> to vector<2x16xf32>
    %130 = vector.shape_cast %124 : vector<2x16xf32> to vector<1x1x2x16xf32>
    tpu.vector_store %arg4[%c0_59, %127, %c0_60, %c0_61], %130 {strides = array<i32>} : memref<1x10x2x16xf32, #tpu.memory_space<vmem>>, vector<1x1x2x16xf32>,
    %c3_i32 = arith.constant 3 : i32
    %c2_i32_62 = arith.constant 2 : i32
    %131 = arith.muli %c2_i32_62, %c3_i32 : i32
    %c9_i32_63 = arith.constant 9 : i32
    %132 = arith.subi %c9_i32_63, %131 : i32
    %133 = arith.muli %arg0, %132 : i32
    %134 = arith.addi %c3_i32, %133 : i32
    %c0_64 = arith.constant 0 : index
    %135 = arith.index_cast %134 : i32 to index
    %c0_65 = arith.constant 0 : index
    %c0_66 = arith.constant 0 : index
    %136 = vector.load %arg2[%c0_64, %135, %c0_65, %c0_66] : memref<1x10x2x64xf32, #tpu.memory_space<vmem>>, vector<1x1x2x64xf32>
    %137 = vector.shape_cast %136 : vector<1x1x2x64xf32> to vector<2x64xf32>
    %c0_67 = arith.constant 0 : index
    %c0_68 = arith.constant 0 : index
    %138 = vector.load %arg5[%c0_67, %c0_68] : memref<2x16xf32, #tpu.memory_space<vmem>>, vector<2x16xf32>
    %cst_69 = arith.constant dense<0.000000e+00> : vector<2x64xf32>
    %139 = tpu.matmul %138, %4, %cst_69 {dimension_numbers = #tpu.dot_dimension_numbers<[1], [0], [0], [1], [0, 0, 1, 1], [], []>} : vector<2x16xf32>, vector<16x64xf32>, vector<2x64xf32> -> vector<2x64xf32>
    %140 = arith.addf %137, %139 : vector<2x64xf32>
    %141 = vector.extract_strided_slice %140 {offsets = [0, 0], sizes = [2, 16], strides = [1, 1]} : vector<2x64xf32> to vector<2x16xf32>
    %142 = arith.negf %141 : vector<2x16xf32>
    %143 = math.exp %142 : vector<2x16xf32>
    %cst_70 = arith.constant 1.000000e+00 : f32
    %144 = vector.broadcast %cst_70 : f32 to vector<2x16xf32>
    %145 = arith.addf %144, %143 : vector<2x16xf32>
    %146 = arith.divf %144, %145 : vector<2x16xf32>
    %147 = vector.extract_strided_slice %140 {offsets = [0, 16], sizes = [2, 16], strides = [1, 1]} : vector<2x64xf32> to vector<2x16xf32>
    %148 = arith.negf %147 : vector<2x16xf32>
    %149 = math.exp %148 : vector<2x16xf32>
    %cst_71 = arith.constant 1.000000e+00 : f32
    %150 = vector.broadcast %cst_71 : f32 to vector<2x16xf32>
    %151 = arith.addf %150, %149 : vector<2x16xf32>
    %152 = arith.divf %150, %151 : vector<2x16xf32>
    %153 = vector.extract_strided_slice %140 {offsets = [0, 32], sizes = [2, 16], strides = [1, 1]} : vector<2x64xf32> to vector<2x16xf32>
    %154 = math.tanh %153 : vector<2x16xf32>
    %155 = vector.extract_strided_slice %140 {offsets = [0, 48], sizes = [2, 16], strides = [1, 1]} : vector<2x64xf32> to vector<2x16xf32>
    %156 = arith.negf %155 : vector<2x16xf32>
    %157 = math.exp %156 : vector<2x16xf32>
    %cst_72 = arith.constant 1.000000e+00 : f32
    %158 = vector.broadcast %cst_72 : f32 to vector<2x16xf32>
    %159 = arith.addf %158, %157 : vector<2x16xf32>
    %160 = arith.divf %158, %159 : vector<2x16xf32>
    %c0_73 = arith.constant 0 : index
    %c0_74 = arith.constant 0 : index
    %161 = vector.load %arg6[%c0_73, %c0_74] : memref<2x16xf32, #tpu.memory_space<vmem>>, vector<2x16xf32>
    %162 = arith.mulf %152, %161 : vector<2x16xf32>
    %163 = arith.mulf %146, %154 : vector<2x16xf32>
    %164 = arith.addf %162, %163 : vector<2x16xf32>
    %165 = math.tanh %164 : vector<2x16xf32>
    %166 = arith.mulf %160, %165 : vector<2x16xf32>
    %c0_75 = arith.constant 0 : index
    %c0_76 = arith.constant 0 : index
    %167 = vector.load %arg6[%c0_75, %c0_76] : memref<2x16xf32, #tpu.memory_space<vmem>>, vector<2x16xf32>
    tpu.vector_store %arg6[%c0_75, %c0_76], %164 {strides = array<i32>} : memref<2x16xf32, #tpu.memory_space<vmem>>, vector<2x16xf32>,
    %c0_77 = arith.constant 0 : index
    %c0_78 = arith.constant 0 : index
    %168 = vector.load %arg5[%c0_77, %c0_78] : memref<2x16xf32, #tpu.memory_space<vmem>>, vector<2x16xf32>
    tpu.vector_store %arg5[%c0_77, %c0_78], %166 {strides = array<i32>} : memref<2x16xf32, #tpu.memory_space<vmem>>, vector<2x16xf32>,
    %c0_79 = arith.constant 0 : index
    %169 = arith.index_cast %134 : i32 to index
    %c0_80 = arith.constant 0 : index
    %c0_81 = arith.constant 0 : index
    %170 = vector.load %arg4[%c0_79, %169, %c0_80, %c0_81] : memref<1x10x2x16xf32, #tpu.memory_space<vmem>>, vector<1x1x2x16xf32>
    %171 = vector.shape_cast %170 : vector<1x1x2x16xf32> to vector<2x16xf32>
    %172 = vector.shape_cast %166 : vector<2x16xf32> to vector<1x1x2x16xf32>
    tpu.vector_store %arg4[%c0_79, %169, %c0_80, %c0_81], %172 {strides = array<i32>} : memref<1x10x2x16xf32, #tpu.memory_space<vmem>>, vector<1x1x2x16xf32>,
    %c4_i32 = arith.constant 4 : i32
    %c2_i32_82 = arith.constant 2 : i32
    %173 = arith.muli %c2_i32_82, %c4_i32 : i32
    %c9_i32_83 = arith.constant 9 : i32
    %174 = arith.subi %c9_i32_83, %173 : i32
    %175 = arith.muli %arg0, %174 : i32
    %176 = arith.addi %c4_i32, %175 : i32
    %c0_84 = arith.constant 0 : index
    %177 = arith.index_cast %176 : i32 to index
    %c0_85 = arith.constant 0 : index
    %c0_86 = arith.constant 0 : index
    %178 = vector.load %arg2[%c0_84, %177, %c0_85, %c0_86] : memref<1x10x2x64xf32, #tpu.memory_space<vmem>>, vector<1x1x2x64xf32>
    %179 = vector.shape_cast %178 : vector<1x1x2x64xf32> to vector<2x64xf32>
    %c0_87 = arith.constant 0 : index
    %c0_88 = arith.constant 0 : index
    %180 = vector.load %arg5[%c0_87, %c0_88] : memref<2x16xf32, #tpu.memory_space<vmem>>, vector<2x16xf32>
    %cst_89 = arith.constant dense<0.000000e+00> : vector<2x64xf32>
    %181 = tpu.matmul %180, %4, %cst_89 {dimension_numbers = #tpu.dot_dimension_numbers<[1], [0], [0], [1], [0, 0, 1, 1], [], []>} : vector<2x16xf32>, vector<16x64xf32>, vector<2x64xf32> -> vector<2x64xf32>
    %182 = arith.addf %179, %181 : vector<2x64xf32>
    %183 = vector.extract_strided_slice %182 {offsets = [0, 0], sizes = [2, 16], strides = [1, 1]} : vector<2x64xf32> to vector<2x16xf32>
    %184 = arith.negf %183 : vector<2x16xf32>
    %185 = math.exp %184 : vector<2x16xf32>
    %cst_90 = arith.constant 1.000000e+00 : f32
    %186 = vector.broadcast %cst_90 : f32 to vector<2x16xf32>
    %187 = arith.addf %186, %185 : vector<2x16xf32>
    %188 = arith.divf %186, %187 : vector<2x16xf32>
    %189 = vector.extract_strided_slice %182 {offsets = [0, 16], sizes = [2, 16], strides = [1, 1]} : vector<2x64xf32> to vector<2x16xf32>
    %190 = arith.negf %189 : vector<2x16xf32>
    %191 = math.exp %190 : vector<2x16xf32>
    %cst_91 = arith.constant 1.000000e+00 : f32
    %192 = vector.broadcast %cst_91 : f32 to vector<2x16xf32>
    %193 = arith.addf %192, %191 : vector<2x16xf32>
    %194 = arith.divf %192, %193 : vector<2x16xf32>
    %195 = vector.extract_strided_slice %182 {offsets = [0, 32], sizes = [2, 16], strides = [1, 1]} : vector<2x64xf32> to vector<2x16xf32>
    %196 = math.tanh %195 : vector<2x16xf32>
    %197 = vector.extract_strided_slice %182 {offsets = [0, 48], sizes = [2, 16], strides = [1, 1]} : vector<2x64xf32> to vector<2x16xf32>
    %198 = arith.negf %197 : vector<2x16xf32>
    %199 = math.exp %198 : vector<2x16xf32>
    %cst_92 = arith.constant 1.000000e+00 : f32
    %200 = vector.broadcast %cst_92 : f32 to vector<2x16xf32>
    %201 = arith.addf %200, %199 : vector<2x16xf32>
    %202 = arith.divf %200, %201 : vector<2x16xf32>
    %c0_93 = arith.constant 0 : index
    %c0_94 = arith.constant 0 : index
    %203 = vector.load %arg6[%c0_93, %c0_94] : memref<2x16xf32, #tpu.memory_space<vmem>>, vector<2x16xf32>
    %204 = arith.mulf %194, %203 : vector<2x16xf32>
    %205 = arith.mulf %188, %196 : vector<2x16xf32>
    %206 = arith.addf %204, %205 : vector<2x16xf32>
    %207 = math.tanh %206 : vector<2x16xf32>
    %208 = arith.mulf %202, %207 : vector<2x16xf32>
    %c0_95 = arith.constant 0 : index
    %c0_96 = arith.constant 0 : index
    %209 = vector.load %arg6[%c0_95, %c0_96] : memref<2x16xf32, #tpu.memory_space<vmem>>, vector<2x16xf32>
    tpu.vector_store %arg6[%c0_95, %c0_96], %206 {strides = array<i32>} : memref<2x16xf32, #tpu.memory_space<vmem>>, vector<2x16xf32>,
    %c0_97 = arith.constant 0 : index
    %c0_98 = arith.constant 0 : index
    %210 = vector.load %arg5[%c0_97, %c0_98] : memref<2x16xf32, #tpu.memory_space<vmem>>, vector<2x16xf32>
    tpu.vector_store %arg5[%c0_97, %c0_98], %208 {strides = array<i32>} : memref<2x16xf32, #tpu.memory_space<vmem>>, vector<2x16xf32>,
    %c0_99 = arith.constant 0 : index
    %211 = arith.index_cast %176 : i32 to index
    %c0_100 = arith.constant 0 : index
    %c0_101 = arith.constant 0 : index
    %212 = vector.load %arg4[%c0_99, %211, %c0_100, %c0_101] : memref<1x10x2x16xf32, #tpu.memory_space<vmem>>, vector<1x1x2x16xf32>
    %213 = vector.shape_cast %212 : vector<1x1x2x16xf32> to vector<2x16xf32>
    %214 = vector.shape_cast %208 : vector<2x16xf32> to vector<1x1x2x16xf32>
    tpu.vector_store %arg4[%c0_99, %211, %c0_100, %c0_101], %214 {strides = array<i32>} : memref<1x10x2x16xf32, #tpu.memory_space<vmem>>, vector<1x1x2x16xf32>,
    %c5_i32 = arith.constant 5 : i32
    %c2_i32_102 = arith.constant 2 : i32
    %215 = arith.muli %c2_i32_102, %c5_i32 : i32
    %c9_i32_103 = arith.constant 9 : i32
    %216 = arith.subi %c9_i32_103, %215 : i32
    %217 = arith.muli %arg0, %216 : i32
    %218 = arith.addi %c5_i32, %217 : i32
    %c0_104 = arith.constant 0 : index
    %219 = arith.index_cast %218 : i32 to index
    %c0_105 = arith.constant 0 : index
    %c0_106 = arith.constant 0 : index
    %220 = vector.load %arg2[%c0_104, %219, %c0_105, %c0_106] : memref<1x10x2x64xf32, #tpu.memory_space<vmem>>, vector<1x1x2x64xf32>
    %221 = vector.shape_cast %220 : vector<1x1x2x64xf32> to vector<2x64xf32>
    %c0_107 = arith.constant 0 : index
    %c0_108 = arith.constant 0 : index
    %222 = vector.load %arg5[%c0_107, %c0_108] : memref<2x16xf32, #tpu.memory_space<vmem>>, vector<2x16xf32>
    %cst_109 = arith.constant dense<0.000000e+00> : vector<2x64xf32>
    %223 = tpu.matmul %222, %4, %cst_109 {dimension_numbers = #tpu.dot_dimension_numbers<[1], [0], [0], [1], [0, 0, 1, 1], [], []>} : vector<2x16xf32>, vector<16x64xf32>, vector<2x64xf32> -> vector<2x64xf32>
    %224 = arith.addf %221, %223 : vector<2x64xf32>
    %225 = vector.extract_strided_slice %224 {offsets = [0, 0], sizes = [2, 16], strides = [1, 1]} : vector<2x64xf32> to vector<2x16xf32>
    %226 = arith.negf %225 : vector<2x16xf32>
    %227 = math.exp %226 : vector<2x16xf32>
    %cst_110 = arith.constant 1.000000e+00 : f32
    %228 = vector.broadcast %cst_110 : f32 to vector<2x16xf32>
    %229 = arith.addf %228, %227 : vector<2x16xf32>
    %230 = arith.divf %228, %229 : vector<2x16xf32>
    %231 = vector.extract_strided_slice %224 {offsets = [0, 16], sizes = [2, 16], strides = [1, 1]} : vector<2x64xf32> to vector<2x16xf32>
    %232 = arith.negf %231 : vector<2x16xf32>
    %233 = math.exp %232 : vector<2x16xf32>
    %cst_111 = arith.constant 1.000000e+00 : f32
    %234 = vector.broadcast %cst_111 : f32 to vector<2x16xf32>
    %235 = arith.addf %234, %233 : vector<2x16xf32>
    %236 = arith.divf %234, %235 : vector<2x16xf32>
    %237 = vector.extract_strided_slice %224 {offsets = [0, 32], sizes = [2, 16], strides = [1, 1]} : vector<2x64xf32> to vector<2x16xf32>
    %238 = math.tanh %237 : vector<2x16xf32>
    %239 = vector.extract_strided_slice %224 {offsets = [0, 48], sizes = [2, 16], strides = [1, 1]} : vector<2x64xf32> to vector<2x16xf32>
    %240 = arith.negf %239 : vector<2x16xf32>
    %241 = math.exp %240 : vector<2x16xf32>
    %cst_112 = arith.constant 1.000000e+00 : f32
    %242 = vector.broadcast %cst_112 : f32 to vector<2x16xf32>
    %243 = arith.addf %242, %241 : vector<2x16xf32>
    %244 = arith.divf %242, %243 : vector<2x16xf32>
    %c0_113 = arith.constant 0 : index
    %c0_114 = arith.constant 0 : index
    %245 = vector.load %arg6[%c0_113, %c0_114] : memref<2x16xf32, #tpu.memory_space<vmem>>, vector<2x16xf32>
    %246 = arith.mulf %236, %245 : vector<2x16xf32>
    %247 = arith.mulf %230, %238 : vector<2x16xf32>
    %248 = arith.addf %246, %247 : vector<2x16xf32>
    %249 = math.tanh %248 : vector<2x16xf32>
    %250 = arith.mulf %244, %249 : vector<2x16xf32>
    %c0_115 = arith.constant 0 : index
    %c0_116 = arith.constant 0 : index
    %251 = vector.load %arg6[%c0_115, %c0_116] : memref<2x16xf32, #tpu.memory_space<vmem>>, vector<2x16xf32>
    tpu.vector_store %arg6[%c0_115, %c0_116], %248 {strides = array<i32>} : memref<2x16xf32, #tpu.memory_space<vmem>>, vector<2x16xf32>,
    %c0_117 = arith.constant 0 : index
    %c0_118 = arith.constant 0 : index
    %252 = vector.load %arg5[%c0_117, %c0_118] : memref<2x16xf32, #tpu.memory_space<vmem>>, vector<2x16xf32>
    tpu.vector_store %arg5[%c0_117, %c0_118], %250 {strides = array<i32>} : memref<2x16xf32, #tpu.memory_space<vmem>>, vector<2x16xf32>,
    %c0_119 = arith.constant 0 : index
    %253 = arith.index_cast %218 : i32 to index
    %c0_120 = arith.constant 0 : index
    %c0_121 = arith.constant 0 : index
    %254 = vector.load %arg4[%c0_119, %253, %c0_120, %c0_121] : memref<1x10x2x16xf32, #tpu.memory_space<vmem>>, vector<1x1x2x16xf32>
    %255 = vector.shape_cast %254 : vector<1x1x2x16xf32> to vector<2x16xf32>
    %256 = vector.shape_cast %250 : vector<2x16xf32> to vector<1x1x2x16xf32>
    tpu.vector_store %arg4[%c0_119, %253, %c0_120, %c0_121], %256 {strides = array<i32>} : memref<1x10x2x16xf32, #tpu.memory_space<vmem>>, vector<1x1x2x16xf32>,
    %c6_i32 = arith.constant 6 : i32
    %c2_i32_122 = arith.constant 2 : i32
    %257 = arith.muli %c2_i32_122, %c6_i32 : i32
    %c9_i32_123 = arith.constant 9 : i32
    %258 = arith.subi %c9_i32_123, %257 : i32
    %259 = arith.muli %arg0, %258 : i32
    %260 = arith.addi %c6_i32, %259 : i32
    %c0_124 = arith.constant 0 : index
    %261 = arith.index_cast %260 : i32 to index
    %c0_125 = arith.constant 0 : index
    %c0_126 = arith.constant 0 : index
    %262 = vector.load %arg2[%c0_124, %261, %c0_125, %c0_126] : memref<1x10x2x64xf32, #tpu.memory_space<vmem>>, vector<1x1x2x64xf32>
    %263 = vector.shape_cast %262 : vector<1x1x2x64xf32> to vector<2x64xf32>
    %c0_127 = arith.constant 0 : index
    %c0_128 = arith.constant 0 : index
    %264 = vector.load %arg5[%c0_127, %c0_128] : memref<2x16xf32, #tpu.memory_space<vmem>>, vector<2x16xf32>
    %cst_129 = arith.constant dense<0.000000e+00> : vector<2x64xf32>
    %265 = tpu.matmul %264, %4, %cst_129 {dimension_numbers = #tpu.dot_dimension_numbers<[1], [0], [0], [1], [0, 0, 1, 1], [], []>} : vector<2x16xf32>, vector<16x64xf32>, vector<2x64xf32> -> vector<2x64xf32>
    %266 = arith.addf %263, %265 : vector<2x64xf32>
    %267 = vector.extract_strided_slice %266 {offsets = [0, 0], sizes = [2, 16], strides = [1, 1]} : vector<2x64xf32> to vector<2x16xf32>
    %268 = arith.negf %267 : vector<2x16xf32>
    %269 = math.exp %268 : vector<2x16xf32>
    %cst_130 = arith.constant 1.000000e+00 : f32
    %270 = vector.broadcast %cst_130 : f32 to vector<2x16xf32>
    %271 = arith.addf %270, %269 : vector<2x16xf32>
    %272 = arith.divf %270, %271 : vector<2x16xf32>
    %273 = vector.extract_strided_slice %266 {offsets = [0, 16], sizes = [2, 16], strides = [1, 1]} : vector<2x64xf32> to vector<2x16xf32>
    %274 = arith.negf %273 : vector<2x16xf32>
    %275 = math.exp %274 : vector<2x16xf32>
    %cst_131 = arith.constant 1.000000e+00 : f32
    %276 = vector.broadcast %cst_131 : f32 to vector<2x16xf32>
    %277 = arith.addf %276, %275 : vector<2x16xf32>
    %278 = arith.divf %276, %277 : vector<2x16xf32>
    %279 = vector.extract_strided_slice %266 {offsets = [0, 32], sizes = [2, 16], strides = [1, 1]} : vector<2x64xf32> to vector<2x16xf32>
    %280 = math.tanh %279 : vector<2x16xf32>
    %281 = vector.extract_strided_slice %266 {offsets = [0, 48], sizes = [2, 16], strides = [1, 1]} : vector<2x64xf32> to vector<2x16xf32>
    %282 = arith.negf %281 : vector<2x16xf32>
    %283 = math.exp %282 : vector<2x16xf32>
    %cst_132 = arith.constant 1.000000e+00 : f32
    %284 = vector.broadcast %cst_132 : f32 to vector<2x16xf32>
    %285 = arith.addf %284, %283 : vector<2x16xf32>
    %286 = arith.divf %284, %285 : vector<2x16xf32>
    %c0_133 = arith.constant 0 : index
    %c0_134 = arith.constant 0 : index
    %287 = vector.load %arg6[%c0_133, %c0_134] : memref<2x16xf32, #tpu.memory_space<vmem>>, vector<2x16xf32>
    %288 = arith.mulf %278, %287 : vector<2x16xf32>
    %289 = arith.mulf %272, %280 : vector<2x16xf32>
    %290 = arith.addf %288, %289 : vector<2x16xf32>
    %291 = math.tanh %290 : vector<2x16xf32>
    %292 = arith.mulf %286, %291 : vector<2x16xf32>
    %c0_135 = arith.constant 0 : index
    %c0_136 = arith.constant 0 : index
    %293 = vector.load %arg6[%c0_135, %c0_136] : memref<2x16xf32, #tpu.memory_space<vmem>>, vector<2x16xf32>
    tpu.vector_store %arg6[%c0_135, %c0_136], %290 {strides = array<i32>} : memref<2x16xf32, #tpu.memory_space<vmem>>, vector<2x16xf32>,
    %c0_137 = arith.constant 0 : index
    %c0_138 = arith.constant 0 : index
    %294 = vector.load %arg5[%c0_137, %c0_138] : memref<2x16xf32, #tpu.memory_space<vmem>>, vector<2x16xf32>
    tpu.vector_store %arg5[%c0_137, %c0_138], %292 {strides = array<i32>} : memref<2x16xf32, #tpu.memory_space<vmem>>, vector<2x16xf32>,
    %c0_139 = arith.constant 0 : index
    %295 = arith.index_cast %260 : i32 to index
    %c0_140 = arith.constant 0 : index
    %c0_141 = arith.constant 0 : index
    %296 = vector.load %arg4[%c0_139, %295, %c0_140, %c0_141] : memref<1x10x2x16xf32, #tpu.memory_space<vmem>>, vector<1x1x2x16xf32>
    %297 = vector.shape_cast %296 : vector<1x1x2x16xf32> to vector<2x16xf32>
    %298 = vector.shape_cast %292 : vector<2x16xf32> to vector<1x1x2x16xf32>
    tpu.vector_store %arg4[%c0_139, %295, %c0_140, %c0_141], %298 {strides = array<i32>} : memref<1x10x2x16xf32, #tpu.memory_space<vmem>>, vector<1x1x2x16xf32>,
    %c7_i32 = arith.constant 7 : i32
    %c2_i32_142 = arith.constant 2 : i32
    %299 = arith.muli %c2_i32_142, %c7_i32 : i32
    %c9_i32_143 = arith.constant 9 : i32
    %300 = arith.subi %c9_i32_143, %299 : i32
    %301 = arith.muli %arg0, %300 : i32
    %302 = arith.addi %c7_i32, %301 : i32
    %c0_144 = arith.constant 0 : index
    %303 = arith.index_cast %302 : i32 to index
    %c0_145 = arith.constant 0 : index
    %c0_146 = arith.constant 0 : index
    %304 = vector.load %arg2[%c0_144, %303, %c0_145, %c0_146] : memref<1x10x2x64xf32, #tpu.memory_space<vmem>>, vector<1x1x2x64xf32>
    %305 = vector.shape_cast %304 : vector<1x1x2x64xf32> to vector<2x64xf32>
    %c0_147 = arith.constant 0 : index
    %c0_148 = arith.constant 0 : index
    %306 = vector.load %arg5[%c0_147, %c0_148] : memref<2x16xf32, #tpu.memory_space<vmem>>, vector<2x16xf32>
    %cst_149 = arith.constant dense<0.000000e+00> : vector<2x64xf32>
    %307 = tpu.matmul %306, %4, %cst_149 {dimension_numbers = #tpu.dot_dimension_numbers<[1], [0], [0], [1], [0, 0, 1, 1], [], []>} : vector<2x16xf32>, vector<16x64xf32>, vector<2x64xf32> -> vector<2x64xf32>
    %308 = arith.addf %305, %307 : vector<2x64xf32>
    %309 = vector.extract_strided_slice %308 {offsets = [0, 0], sizes = [2, 16], strides = [1, 1]} : vector<2x64xf32> to vector<2x16xf32>
    %310 = arith.negf %309 : vector<2x16xf32>
    %311 = math.exp %310 : vector<2x16xf32>
    %cst_150 = arith.constant 1.000000e+00 : f32
    %312 = vector.broadcast %cst_150 : f32 to vector<2x16xf32>
    %313 = arith.addf %312, %311 : vector<2x16xf32>
    %314 = arith.divf %312, %313 : vector<2x16xf32>
    %315 = vector.extract_strided_slice %308 {offsets = [0, 16], sizes = [2, 16], strides = [1, 1]} : vector<2x64xf32> to vector<2x16xf32>
    %316 = arith.negf %315 : vector<2x16xf32>
    %317 = math.exp %316 : vector<2x16xf32>
    %cst_151 = arith.constant 1.000000e+00 : f32
    %318 = vector.broadcast %cst_151 : f32 to vector<2x16xf32>
    %319 = arith.addf %318, %317 : vector<2x16xf32>
    %320 = arith.divf %318, %319 : vector<2x16xf32>
    %321 = vector.extract_strided_slice %308 {offsets = [0, 32], sizes = [2, 16], strides = [1, 1]} : vector<2x64xf32> to vector<2x16xf32>
    %322 = math.tanh %321 : vector<2x16xf32>
    %323 = vector.extract_strided_slice %308 {offsets = [0, 48], sizes = [2, 16], strides = [1, 1]} : vector<2x64xf32> to vector<2x16xf32>
    %324 = arith.negf %323 : vector<2x16xf32>
    %325 = math.exp %324 : vector<2x16xf32>
    %cst_152 = arith.constant 1.000000e+00 : f32
    %326 = vector.broadcast %cst_152 : f32 to vector<2x16xf32>
    %327 = arith.addf %326, %325 : vector<2x16xf32>
    %328 = arith.divf %326, %327 : vector<2x16xf32>
    %c0_153 = arith.constant 0 : index
    %c0_154 = arith.constant 0 : index
    %329 = vector.load %arg6[%c0_153, %c0_154] : memref<2x16xf32, #tpu.memory_space<vmem>>, vector<2x16xf32>
    %330 = arith.mulf %320, %329 : vector<2x16xf32>
    %331 = arith.mulf %314, %322 : vector<2x16xf32>
    %332 = arith.addf %330, %331 : vector<2x16xf32>
    %333 = math.tanh %332 : vector<2x16xf32>
    %334 = arith.mulf %328, %333 : vector<2x16xf32>
    %c0_155 = arith.constant 0 : index
    %c0_156 = arith.constant 0 : index
    %335 = vector.load %arg6[%c0_155, %c0_156] : memref<2x16xf32, #tpu.memory_space<vmem>>, vector<2x16xf32>
    tpu.vector_store %arg6[%c0_155, %c0_156], %332 {strides = array<i32>} : memref<2x16xf32, #tpu.memory_space<vmem>>, vector<2x16xf32>,
    %c0_157 = arith.constant 0 : index
    %c0_158 = arith.constant 0 : index
    %336 = vector.load %arg5[%c0_157, %c0_158] : memref<2x16xf32, #tpu.memory_space<vmem>>, vector<2x16xf32>
    tpu.vector_store %arg5[%c0_157, %c0_158], %334 {strides = array<i32>} : memref<2x16xf32, #tpu.memory_space<vmem>>, vector<2x16xf32>,
    %c0_159 = arith.constant 0 : index
    %337 = arith.index_cast %302 : i32 to index
    %c0_160 = arith.constant 0 : index
    %c0_161 = arith.constant 0 : index
    %338 = vector.load %arg4[%c0_159, %337, %c0_160, %c0_161] : memref<1x10x2x16xf32, #tpu.memory_space<vmem>>, vector<1x1x2x16xf32>
    %339 = vector.shape_cast %338 : vector<1x1x2x16xf32> to vector<2x16xf32>
    %340 = vector.shape_cast %334 : vector<2x16xf32> to vector<1x1x2x16xf32>
    tpu.vector_store %arg4[%c0_159, %337, %c0_160, %c0_161], %340 {strides = array<i32>} : memref<1x10x2x16xf32, #tpu.memory_space<vmem>>, vector<1x1x2x16xf32>,
    %c8_i32 = arith.constant 8 : i32
    %c2_i32_162 = arith.constant 2 : i32
    %341 = arith.muli %c2_i32_162, %c8_i32 : i32
    %c9_i32_163 = arith.constant 9 : i32
    %342 = arith.subi %c9_i32_163, %341 : i32
    %343 = arith.muli %arg0, %342 : i32
    %344 = arith.addi %c8_i32, %343 : i32
    %c0_164 = arith.constant 0 : index
    %345 = arith.index_cast %344 : i32 to index
    %c0_165 = arith.constant 0 : index
    %c0_166 = arith.constant 0 : index
    %346 = vector.load %arg2[%c0_164, %345, %c0_165, %c0_166] : memref<1x10x2x64xf32, #tpu.memory_space<vmem>>, vector<1x1x2x64xf32>
    %347 = vector.shape_cast %346 : vector<1x1x2x64xf32> to vector<2x64xf32>
    %c0_167 = arith.constant 0 : index
    %c0_168 = arith.constant 0 : index
    %348 = vector.load %arg5[%c0_167, %c0_168] : memref<2x16xf32, #tpu.memory_space<vmem>>, vector<2x16xf32>
    %cst_169 = arith.constant dense<0.000000e+00> : vector<2x64xf32>
    %349 = tpu.matmul %348, %4, %cst_169 {dimension_numbers = #tpu.dot_dimension_numbers<[1], [0], [0], [1], [0, 0, 1, 1], [], []>} : vector<2x16xf32>, vector<16x64xf32>, vector<2x64xf32> -> vector<2x64xf32>
    %350 = arith.addf %347, %349 : vector<2x64xf32>
    %351 = vector.extract_strided_slice %350 {offsets = [0, 0], sizes = [2, 16], strides = [1, 1]} : vector<2x64xf32> to vector<2x16xf32>
    %352 = arith.negf %351 : vector<2x16xf32>
    %353 = math.exp %352 : vector<2x16xf32>
    %cst_170 = arith.constant 1.000000e+00 : f32
    %354 = vector.broadcast %cst_170 : f32 to vector<2x16xf32>
    %355 = arith.addf %354, %353 : vector<2x16xf32>
    %356 = arith.divf %354, %355 : vector<2x16xf32>
    %357 = vector.extract_strided_slice %350 {offsets = [0, 16], sizes = [2, 16], strides = [1, 1]} : vector<2x64xf32> to vector<2x16xf32>
    %358 = arith.negf %357 : vector<2x16xf32>
    %359 = math.exp %358 : vector<2x16xf32>
    %cst_171 = arith.constant 1.000000e+00 : f32
    %360 = vector.broadcast %cst_171 : f32 to vector<2x16xf32>
    %361 = arith.addf %360, %359 : vector<2x16xf32>
    %362 = arith.divf %360, %361 : vector<2x16xf32>
    %363 = vector.extract_strided_slice %350 {offsets = [0, 32], sizes = [2, 16], strides = [1, 1]} : vector<2x64xf32> to vector<2x16xf32>
    %364 = math.tanh %363 : vector<2x16xf32>
    %365 = vector.extract_strided_slice %350 {offsets = [0, 48], sizes = [2, 16], strides = [1, 1]} : vector<2x64xf32> to vector<2x16xf32>
    %366 = arith.negf %365 : vector<2x16xf32>
    %367 = math.exp %366 : vector<2x16xf32>
    %cst_172 = arith.constant 1.000000e+00 : f32
    %368 = vector.broadcast %cst_172 : f32 to vector<2x16xf32>
    %369 = arith.addf %368, %367 : vector<2x16xf32>
    %370 = arith.divf %368, %369 : vector<2x16xf32>
    %c0_173 = arith.constant 0 : index
    %c0_174 = arith.constant 0 : index
    %371 = vector.load %arg6[%c0_173, %c0_174] : memref<2x16xf32, #tpu.memory_space<vmem>>, vector<2x16xf32>
    %372 = arith.mulf %362, %371 : vector<2x16xf32>
    %373 = arith.mulf %356, %364 : vector<2x16xf32>
    %374 = arith.addf %372, %373 : vector<2x16xf32>
    %375 = math.tanh %374 : vector<2x16xf32>
    %376 = arith.mulf %370, %375 : vector<2x16xf32>
    %c0_175 = arith.constant 0 : index
    %c0_176 = arith.constant 0 : index
    %377 = vector.load %arg6[%c0_175, %c0_176] : memref<2x16xf32, #tpu.memory_space<vmem>>, vector<2x16xf32>
    tpu.vector_store %arg6[%c0_175, %c0_176], %374 {strides = array<i32>} : memref<2x16xf32, #tpu.memory_space<vmem>>, vector<2x16xf32>,
    %c0_177 = arith.constant 0 : index
    %c0_178 = arith.constant 0 : index
    %378 = vector.load %arg5[%c0_177, %c0_178] : memref<2x16xf32, #tpu.memory_space<vmem>>, vector<2x16xf32>
    tpu.vector_store %arg5[%c0_177, %c0_178], %376 {strides = array<i32>} : memref<2x16xf32, #tpu.memory_space<vmem>>, vector<2x16xf32>,
    %c0_179 = arith.constant 0 : index
    %379 = arith.index_cast %344 : i32 to index
    %c0_180 = arith.constant 0 : index
    %c0_181 = arith.constant 0 : index
    %380 = vector.load %arg4[%c0_179, %379, %c0_180, %c0_181] : memref<1x10x2x16xf32, #tpu.memory_space<vmem>>, vector<1x1x2x16xf32>
    %381 = vector.shape_cast %380 : vector<1x1x2x16xf32> to vector<2x16xf32>
    %382 = vector.shape_cast %376 : vector<2x16xf32> to vector<1x1x2x16xf32>
    tpu.vector_store %arg4[%c0_179, %379, %c0_180, %c0_181], %382 {strides = array<i32>} : memref<1x10x2x16xf32, #tpu.memory_space<vmem>>, vector<1x1x2x16xf32>,
    %c9_i32_182 = arith.constant 9 : i32
    %c2_i32_183 = arith.constant 2 : i32
    %383 = arith.muli %c2_i32_183, %c9_i32_182 : i32
    %c9_i32_184 = arith.constant 9 : i32
    %384 = arith.subi %c9_i32_184, %383 : i32
    %385 = arith.muli %arg0, %384 : i32
    %386 = arith.addi %c9_i32_182, %385 : i32
    %c0_185 = arith.constant 0 : index
    %387 = arith.index_cast %386 : i32 to index
    %c0_186 = arith.constant 0 : index
    %c0_187 = arith.constant 0 : index
    %388 = vector.load %arg2[%c0_185, %387, %c0_186, %c0_187] : memref<1x10x2x64xf32, #tpu.memory_space<vmem>>, vector<1x1x2x64xf32>
    %389 = vector.shape_cast %388 : vector<1x1x2x64xf32> to vector<2x64xf32>
    %c0_188 = arith.constant 0 : index
    %c0_189 = arith.constant 0 : index
    %390 = vector.load %arg5[%c0_188, %c0_189] : memref<2x16xf32, #tpu.memory_space<vmem>>, vector<2x16xf32>
    %cst_190 = arith.constant dense<0.000000e+00> : vector<2x64xf32>
    %391 = tpu.matmul %390, %4, %cst_190 {dimension_numbers = #tpu.dot_dimension_numbers<[1], [0], [0], [1], [0, 0, 1, 1], [], []>} : vector<2x16xf32>, vector<16x64xf32>, vector<2x64xf32> -> vector<2x64xf32>
    %392 = arith.addf %389, %391 : vector<2x64xf32>
    %393 = vector.extract_strided_slice %392 {offsets = [0, 0], sizes = [2, 16], strides = [1, 1]} : vector<2x64xf32> to vector<2x16xf32>
    %394 = arith.negf %393 : vector<2x16xf32>
    %395 = math.exp %394 : vector<2x16xf32>
    %cst_191 = arith.constant 1.000000e+00 : f32
    %396 = vector.broadcast %cst_191 : f32 to vector<2x16xf32>
    %397 = arith.addf %396, %395 : vector<2x16xf32>
    %398 = arith.divf %396, %397 : vector<2x16xf32>
    %399 = vector.extract_strided_slice %392 {offsets = [0, 16], sizes = [2, 16], strides = [1, 1]} : vector<2x64xf32> to vector<2x16xf32>
    %400 = arith.negf %399 : vector<2x16xf32>
    %401 = math.exp %400 : vector<2x16xf32>
    %cst_192 = arith.constant 1.000000e+00 : f32
    %402 = vector.broadcast %cst_192 : f32 to vector<2x16xf32>
    %403 = arith.addf %402, %401 : vector<2x16xf32>
    %404 = arith.divf %402, %403 : vector<2x16xf32>
    %405 = vector.extract_strided_slice %392 {offsets = [0, 32], sizes = [2, 16], strides = [1, 1]} : vector<2x64xf32> to vector<2x16xf32>
    %406 = math.tanh %405 : vector<2x16xf32>
    %407 = vector.extract_strided_slice %392 {offsets = [0, 48], sizes = [2, 16], strides = [1, 1]} : vector<2x64xf32> to vector<2x16xf32>
    %408 = arith.negf %407 : vector<2x16xf32>
    %409 = math.exp %408 : vector<2x16xf32>
    %cst_193 = arith.constant 1.000000e+00 : f32
    %410 = vector.broadcast %cst_193 : f32 to vector<2x16xf32>
    %411 = arith.addf %410, %409 : vector<2x16xf32>
    %412 = arith.divf %410, %411 : vector<2x16xf32>
    %c0_194 = arith.constant 0 : index
    %c0_195 = arith.constant 0 : index
    %413 = vector.load %arg6[%c0_194, %c0_195] : memref<2x16xf32, #tpu.memory_space<vmem>>, vector<2x16xf32>
    %414 = arith.mulf %404, %413 : vector<2x16xf32>
    %415 = arith.mulf %398, %406 : vector<2x16xf32>
    %416 = arith.addf %414, %415 : vector<2x16xf32>
    %417 = math.tanh %416 : vector<2x16xf32>
    %418 = arith.mulf %412, %417 : vector<2x16xf32>
    %c0_196 = arith.constant 0 : index
    %c0_197 = arith.constant 0 : index
    %419 = vector.load %arg6[%c0_196, %c0_197] : memref<2x16xf32, #tpu.memory_space<vmem>>, vector<2x16xf32>
    tpu.vector_store %arg6[%c0_196, %c0_197], %416 {strides = array<i32>} : memref<2x16xf32, #tpu.memory_space<vmem>>, vector<2x16xf32>,
    %c0_198 = arith.constant 0 : index
    %c0_199 = arith.constant 0 : index
    %420 = vector.load %arg5[%c0_198, %c0_199] : memref<2x16xf32, #tpu.memory_space<vmem>>, vector<2x16xf32>
    tpu.vector_store %arg5[%c0_198, %c0_199], %418 {strides = array<i32>} : memref<2x16xf32, #tpu.memory_space<vmem>>, vector<2x16xf32>,
    %c0_200 = arith.constant 0 : index
    %421 = arith.index_cast %386 : i32 to index
    %c0_201 = arith.constant 0 : index
    %c0_202 = arith.constant 0 : index
    %422 = vector.load %arg4[%c0_200, %421, %c0_201, %c0_202] : memref<1x10x2x16xf32, #tpu.memory_space<vmem>>, vector<1x1x2x16xf32>
    %423 = vector.shape_cast %422 : vector<1x1x2x16xf32> to vector<2x16xf32>
    %424 = vector.shape_cast %418 : vector<2x16xf32> to vector<1x1x2x16xf32>
    tpu.vector_store %arg4[%c0_200, %421, %c0_201, %c0_202], %424 {strides = array<i32>} : memref<1x10x2x16xf32, #tpu.memory_space<vmem>>, vector<1x1x2x16xf32>,
    %c10_i32 = arith.constant 10 : i32
    return
  }
  func.func @transform_0(%arg0: i32, %arg1: i32) -> (i32, i32, i32, i32) {
    %c2_i32 = arith.constant 2 : i32
    %0 = arith.muli %c2_i32, %arg1 : i32
    %c0_i32 = arith.constant 0 : i32
    %1 = arith.subi %c0_i32, %0 : i32
    %2 = arith.muli %arg0, %1 : i32
    %3 = arith.addi %arg1, %2 : i32
    %c0_i32_0 = arith.constant 0 : i32
    %c0_i32_1 = arith.constant 0 : i32
    %c0_i32_2 = arith.constant 0 : i32
    return %arg0, %3, %c0_i32_0, %c0_i32_1 : i32, i32, i32, i32
  }
  func.func @transform_1(%arg0: i32, %arg1: i32) -> (i32, i32, i32) {
    %c0_i32 = arith.constant 0 : i32
    %c0_i32_0 = arith.constant 0 : i32
    %c0_i32_1 = arith.constant 0 : i32
    return %arg0, %c0_i32, %c0_i32_0 : i32, i32, i32
  }
  func.func @transform_2(%arg0: i32, %arg1: i32) -> (i32, i32, i32, i32) {
    %c2_i32 = arith.constant 2 : i32
    %0 = arith.muli %c2_i32, %arg1 : i32
    %c0_i32 = arith.constant 0 : i32
    %1 = arith.subi %c0_i32, %0 : i32
    %2 = arith.muli %arg0, %1 : i32
    %3 = arith.addi %arg1, %2 : i32
    %c0_i32_0 = arith.constant 0 : i32
    %c0_i32_1 = arith.constant 0 : i32
    %c0_i32_2 = arith.constant 0 : i32
    return %arg0, %3, %c0_i32_0, %c0_i32_1 : i32, i32, i32, i32
  }
}

module attributes {stable_mosaic.version = 11 : i64} {
  func.func @_attn_kernel(%arg0: memref<2x8x32xf32, #tpu.memory_space<vmem>>, %arg1: memref<2x10x32xf32, #tpu.memory_space<vmem>>, %arg2: memref<2x1x10xf32, #tpu.memory_space<vmem>>, %arg3: memref<2x8x32xf32, #tpu.memory_space<vmem>>) attributes {dimension_semantics = [], scalar_prefetch = 0 : i64, scratch_operands = 0 : i64, tpu.core_type = #tpu.core_type<tc>} {
    %c0 = arith.constant 0 : index
    %c0_0 = arith.constant 0 : index
    %c0_1 = arith.constant 0 : index
    %0 = vector.load %arg0[%c0, %c0_0, %c0_1] : memref<2x8x32xf32, #tpu.memory_space<vmem>>, vector<2x8x32xf32>
    %c0_2 = arith.constant 0 : index
    %c0_3 = arith.constant 0 : index
    %c0_4 = arith.constant 0 : index
    %1 = vector.load %arg1[%c0_2, %c0_3, %c0_4] : memref<2x10x32xf32, #tpu.memory_space<vmem>>, vector<2x10x32xf32>
    %c0_5 = arith.constant 0 : index
    %c0_6 = arith.constant 0 : index
    %c0_7 = arith.constant 0 : index
    %2 = vector.load %arg2[%c0_5, %c0_6, %c0_7] : memref<2x1x10xf32, #tpu.memory_space<vmem>>, vector<2x1x10xf32>
    "tpu.trace_start"() <{level = 10 : i32, message = "bxd,byd->bxy"}> : () -> ()
    %cst = arith.constant dense<0.000000e+00> : vector<2x8x10xf32>
    %3 = tpu.matmul %0, %1, %cst {dimension_numbers = #tpu.dot_dimension_numbers<[2], [2], [1], [1], [0, 0, 0, 1, 1, 1], [0], [0]>} : vector<2x8x32xf32>, vector<2x10x32xf32>, vector<2x8x10xf32> -> vector<2x8x10xf32>
    %cst_8 = arith.constant 0.000000e+00 : f32
    "tpu.trace_stop"() : () -> ()
    %4 = vector.broadcast %cst_8 : f32 to vector<2x1x10xf32>
    %5 = arith.cmpf oeq, %2, %4 : vector<2x1x10xf32>
    %cst_9 = arith.constant -1.000000e+09 : f32
    %6 = vector.shape_cast %5 : vector<2x1x10xi1> to vector<2x1x10xi1>
    %7 = vector.broadcast %6 : vector<2x1x10xi1> to vector<2x8x10xi1>
    %8 = vector.broadcast %cst_9 : f32 to vector<2x8x10xf32>
    %9 = arith.select %7, %8, %3 : vector<2x8x10xi1>, vector<2x8x10xf32>
    %cst_10 = arith.constant dense<0xFF800000> : vector<2x10xf32>
    %10 = vector.multi_reduction <maximumf>, %9, %cst_10 [1] : vector<2x8x10xf32> to vector<2x10xf32>
    %11 = vector.shape_cast %10 : vector<2x10xf32> to vector<2x1x10xf32>
    %12 = vector.broadcast %11 : vector<2x1x10xf32> to vector<2x8x10xf32>
    %13 = arith.subf %9, %12 : vector<2x8x10xf32>
    %14 = math.exp %13 : vector<2x8x10xf32>
    %cst_11 = arith.constant dense<0.000000e+00> : vector<2x10xf32>
    %15 = vector.multi_reduction <add>, %14, %cst_11 [1] : vector<2x8x10xf32> to vector<2x10xf32>
    %16 = vector.shape_cast %15 : vector<2x10xf32> to vector<2x1x10xf32>
    %17 = tpu.reciprocal %16 {approx = true} : vector<2x1x10xf32> -> vector<2x1x10xf32>
    %18 = vector.broadcast %17 : vector<2x1x10xf32> to vector<2x8x10xf32>
    %19 = arith.mulf %14, %18 : vector<2x8x10xf32>
    "tpu.trace_start"() <{level = 10 : i32, message = "bxy,byd->bxd"}> : () -> ()
    %cst_12 = arith.constant dense<0.000000e+00> : vector<2x8x32xf32>
    %20 = tpu.matmul %19, %1, %cst_12 {dimension_numbers = #tpu.dot_dimension_numbers<[2], [1], [1], [2], [0, 0, 0, 1, 1, 2], [0], [0]>} : vector<2x8x10xf32>, vector<2x10x32xf32>, vector<2x8x32xf32> -> vector<2x8x32xf32>
    "tpu.trace_stop"() : () -> ()
    %c0_13 = arith.constant 0 : index
    %c0_14 = arith.constant 0 : index
    %c0_15 = arith.constant 0 : index
    %21 = vector.load %arg3[%c0_13, %c0_14, %c0_15] : memref<2x8x32xf32, #tpu.memory_space<vmem>>, vector<2x8x32xf32>
    tpu.vector_store %arg3[%c0_13, %c0_14, %c0_15], %20 {strides = array<i32>} : memref<2x8x32xf32, #tpu.memory_space<vmem>>, vector<2x8x32xf32>,
    return
  }
}

module attributes {stable_mosaic.version = 11 : i64} {
  func.func @_attn_kernel(%arg0: memref<2x10x32xf32, #tpu.memory_space<vmem>>, %arg1: memref<2x8x32xf32, #tpu.memory_space<vmem>>, %arg2: memref<2x1x8xf32, #tpu.memory_space<vmem>>, %arg3: memref<2x10x32xf32, #tpu.memory_space<vmem>>) attributes {dimension_semantics = [], scalar_prefetch = 0 : i64, scratch_operands = 0 : i64, tpu.core_type = #tpu.core_type<tc>} {
    %c0 = arith.constant 0 : index
    %c0_0 = arith.constant 0 : index
    %c0_1 = arith.constant 0 : index
    %0 = vector.load %arg0[%c0, %c0_0, %c0_1] : memref<2x10x32xf32, #tpu.memory_space<vmem>>, vector<2x10x32xf32>
    %c0_2 = arith.constant 0 : index
    %c0_3 = arith.constant 0 : index
    %c0_4 = arith.constant 0 : index
    %1 = vector.load %arg1[%c0_2, %c0_3, %c0_4] : memref<2x8x32xf32, #tpu.memory_space<vmem>>, vector<2x8x32xf32>
    %c0_5 = arith.constant 0 : index
    %c0_6 = arith.constant 0 : index
    %c0_7 = arith.constant 0 : index
    %2 = vector.load %arg2[%c0_5, %c0_6, %c0_7] : memref<2x1x8xf32, #tpu.memory_space<vmem>>, vector<2x1x8xf32>
    "tpu.trace_start"() <{level = 10 : i32, message = "bxd,byd->bxy"}> : () -> ()
    %cst = arith.constant dense<0.000000e+00> : vector<2x10x8xf32>
    %3 = tpu.matmul %0, %1, %cst {dimension_numbers = #tpu.dot_dimension_numbers<[2], [2], [1], [1], [0, 0, 0, 1, 1, 1], [0], [0]>} : vector<2x10x32xf32>, vector<2x8x32xf32>, vector<2x10x8xf32> -> vector<2x10x8xf32>
    %cst_8 = arith.constant 0.000000e+00 : f32
    "tpu.trace_stop"() : () -> ()
    %4 = vector.broadcast %cst_8 : f32 to vector<2x1x8xf32>
    %5 = arith.cmpf oeq, %2, %4 : vector<2x1x8xf32>
    %cst_9 = arith.constant -1.000000e+09 : f32
    %6 = vector.shape_cast %5 : vector<2x1x8xi1> to vector<2x1x8xi1>
    %7 = vector.broadcast %6 : vector<2x1x8xi1> to vector<2x10x8xi1>
    %8 = vector.broadcast %cst_9 : f32 to vector<2x10x8xf32>
    %9 = arith.select %7, %8, %3 : vector<2x10x8xi1>, vector<2x10x8xf32>
    %cst_10 = arith.constant dense<0xFF800000> : vector<2x8xf32>
    %10 = vector.multi_reduction <maximumf>, %9, %cst_10 [1] : vector<2x10x8xf32> to vector<2x8xf32>
    %11 = vector.shape_cast %10 : vector<2x8xf32> to vector<2x1x8xf32>
    %12 = vector.broadcast %11 : vector<2x1x8xf32> to vector<2x10x8xf32>
    %13 = arith.subf %9, %12 : vector<2x10x8xf32>
    %14 = math.exp %13 : vector<2x10x8xf32>
    %cst_11 = arith.constant dense<0.000000e+00> : vector<2x8xf32>
    %15 = vector.multi_reduction <add>, %14, %cst_11 [1] : vector<2x10x8xf32> to vector<2x8xf32>
    %16 = vector.shape_cast %15 : vector<2x8xf32> to vector<2x1x8xf32>
    %17 = tpu.reciprocal %16 {approx = true} : vector<2x1x8xf32> -> vector<2x1x8xf32>
    %18 = vector.broadcast %17 : vector<2x1x8xf32> to vector<2x10x8xf32>
    %19 = arith.mulf %14, %18 : vector<2x10x8xf32>
    "tpu.trace_start"() <{level = 10 : i32, message = "bxy,byd->bxd"}> : () -> ()
    %cst_12 = arith.constant dense<0.000000e+00> : vector<2x10x32xf32>
    %20 = tpu.matmul %19, %1, %cst_12 {dimension_numbers = #tpu.dot_dimension_numbers<[2], [1], [1], [2], [0, 0, 0, 1, 1, 2], [0], [0]>} : vector<2x10x8xf32>, vector<2x8x32xf32>, vector<2x10x32xf32> -> vector<2x10x32xf32>
    "tpu.trace_stop"() : () -> ()
    %c0_13 = arith.constant 0 : index
    %c0_14 = arith.constant 0 : index
    %c0_15 = arith.constant 0 : index
    %21 = vector.load %arg3[%c0_13, %c0_14, %c0_15] : memref<2x10x32xf32, #tpu.memory_space<vmem>>, vector<2x10x32xf32>
    tpu.vector_store %arg3[%c0_13, %c0_14, %c0_15], %20 {strides = array<i32>} : memref<2x10x32xf32, #tpu.memory_space<vmem>>, vector<2x10x32xf32>,
    return
  }
}

module attributes {stable_mosaic.version = 11 : i64} {
  func.func @_pool_pred_kernel(%arg0: memref<8x2x32xf32, #tpu.memory_space<vmem>>, %arg1: memref<8x2x1xf32, #tpu.memory_space<vmem>>, %arg2: memref<10x2x32xf32, #tpu.memory_space<vmem>>, %arg3: memref<10x2x1xf32, #tpu.memory_space<vmem>>, %arg4: memref<128x32xf32, #tpu.memory_space<vmem>>, %arg5: memref<1x32xf32, #tpu.memory_space<vmem>>, %arg6: memref<32x2xf32, #tpu.memory_space<vmem>>, %arg7: memref<1x2xf32, #tpu.memory_space<vmem>>, %arg8: memref<2x2xf32, #tpu.memory_space<vmem>>) attributes {dimension_semantics = [], scalar_prefetch = 0 : i64, scratch_operands = 0 : i64, tpu.core_type = #tpu.core_type<tc>} {
    %c0 = arith.constant 0 : index
    %c0_0 = arith.constant 0 : index
    %c0_1 = arith.constant 0 : index
    %0 = vector.load %arg0[%c0, %c0_0, %c0_1] : memref<8x2x32xf32, #tpu.memory_space<vmem>>, vector<8x2x32xf32>
    %c0_2 = arith.constant 0 : index
    %c0_3 = arith.constant 0 : index
    %c0_4 = arith.constant 0 : index
    %1 = vector.load %arg1[%c0_2, %c0_3, %c0_4] : memref<8x2x1xf32, #tpu.memory_space<vmem>>, vector<8x2x1xf32>
    %cst = arith.constant 0.000000e+00 : f32
    %2 = vector.broadcast %cst : f32 to vector<8x2x1xf32>
    %3 = arith.cmpf oeq, %1, %2 : vector<8x2x1xf32>
    %cst_5 = arith.constant 0xFF800000 : f32
    %4 = vector.shape_cast %3 : vector<8x2x1xi1> to vector<8x2x1xi1>
    %5 = vector.broadcast %4 : vector<8x2x1xi1> to vector<8x2x32xi1>
    %6 = vector.broadcast %cst_5 : f32 to vector<8x2x32xf32>
    %7 = arith.select %5, %6, %0 : vector<8x2x32xi1>, vector<8x2x32xf32>
    %cst_6 = arith.constant dense<0xFF800000> : vector<2x32xf32>
    %8 = vector.multi_reduction <maximumf>, %7, %cst_6 [0] : vector<8x2x32xf32> to vector<2x32xf32>
    %cst_7 = arith.constant 0.000000e+00 : f32
    %9 = vector.broadcast %cst_7 : f32 to vector<8x2x1xf32>
    %10 = arith.cmpf oeq, %1, %9 : vector<8x2x1xf32>
    %cst_8 = arith.constant 0.000000e+00 : f32
    %11 = vector.shape_cast %10 : vector<8x2x1xi1> to vector<8x2x1xi1>
    %12 = vector.broadcast %11 : vector<8x2x1xi1> to vector<8x2x32xi1>
    %13 = vector.broadcast %cst_8 : f32 to vector<8x2x32xf32>
    %14 = arith.select %12, %13, %0 : vector<8x2x32xi1>, vector<8x2x32xf32>
    %cst_9 = arith.constant dense<0.000000e+00> : vector<2x32xf32>
    %15 = vector.multi_reduction <add>, %14, %cst_9 [0] : vector<8x2x32xf32> to vector<2x32xf32>
    %cst_10 = arith.constant dense<0.000000e+00> : vector<2x1xf32>
    %16 = vector.multi_reduction <add>, %1, %cst_10 [0] : vector<8x2x1xf32> to vector<2x1xf32>
    %17 = vector.broadcast %16 : vector<2x1xf32> to vector<2x32xf32>
    %18 = arith.divf %15, %17 : vector<2x32xf32>
    %c0_11 = arith.constant 0 : index
    %c0_12 = arith.constant 0 : index
    %c0_13 = arith.constant 0 : index
    %19 = vector.load %arg2[%c0_11, %c0_12, %c0_13] : memref<10x2x32xf32, #tpu.memory_space<vmem>>, vector<10x2x32xf32>
    %c0_14 = arith.constant 0 : index
    %c0_15 = arith.constant 0 : index
    %c0_16 = arith.constant 0 : index
    %20 = vector.load %arg3[%c0_14, %c0_15, %c0_16] : memref<10x2x1xf32, #tpu.memory_space<vmem>>, vector<10x2x1xf32>
    %cst_17 = arith.constant 0.000000e+00 : f32
    %21 = vector.broadcast %cst_17 : f32 to vector<10x2x1xf32>
    %22 = arith.cmpf oeq, %20, %21 : vector<10x2x1xf32>
    %cst_18 = arith.constant 0xFF800000 : f32
    %23 = vector.shape_cast %22 : vector<10x2x1xi1> to vector<10x2x1xi1>
    %24 = vector.broadcast %23 : vector<10x2x1xi1> to vector<10x2x32xi1>
    %25 = vector.broadcast %cst_18 : f32 to vector<10x2x32xf32>
    %26 = arith.select %24, %25, %19 : vector<10x2x32xi1>, vector<10x2x32xf32>
    %cst_19 = arith.constant dense<0xFF800000> : vector<2x32xf32>
    %27 = vector.multi_reduction <maximumf>, %26, %cst_19 [0] : vector<10x2x32xf32> to vector<2x32xf32>
    %cst_20 = arith.constant 0.000000e+00 : f32
    %28 = vector.broadcast %cst_20 : f32 to vector<10x2x1xf32>
    %29 = arith.cmpf oeq, %20, %28 : vector<10x2x1xf32>
    %cst_21 = arith.constant 0.000000e+00 : f32
    %30 = vector.shape_cast %29 : vector<10x2x1xi1> to vector<10x2x1xi1>
    %31 = vector.broadcast %30 : vector<10x2x1xi1> to vector<10x2x32xi1>
    %32 = vector.broadcast %cst_21 : f32 to vector<10x2x32xf32>
    %33 = arith.select %31, %32, %19 : vector<10x2x32xi1>, vector<10x2x32xf32>
    %cst_22 = arith.constant dense<0.000000e+00> : vector<2x32xf32>
    %34 = vector.multi_reduction <add>, %33, %cst_22 [0] : vector<10x2x32xf32> to vector<2x32xf32>
    %cst_23 = arith.constant dense<0.000000e+00> : vector<2x1xf32>
    %35 = vector.multi_reduction <add>, %20, %cst_23 [0] : vector<10x2x1xf32> to vector<2x1xf32>
    %36 = vector.broadcast %35 : vector<2x1xf32> to vector<2x32xf32>
    %37 = arith.divf %34, %36 : vector<2x32xf32>
    %c0_24 = arith.constant 0 : index
    %c0_25 = arith.constant 0 : index
    %38 = vector.load %arg4[%c0_24, %c0_25] : memref<128x32xf32, #tpu.memory_space<vmem>>, vector<128x32xf32>
    %39 = vector.extract_strided_slice %38 {offsets = [0, 0], sizes = [32, 32], strides = [1, 1]} : vector<128x32xf32> to vector<32x32xf32>
    %cst_26 = arith.constant dense<0.000000e+00> : vector<2x32xf32>
    %40 = tpu.matmul %18, %39, %cst_26 {dimension_numbers = #tpu.dot_dimension_numbers<[1], [0], [0], [1], [0, 0, 1, 1], [], []>} : vector<2x32xf32>, vector<32x32xf32>, vector<2x32xf32> -> vector<2x32xf32>
    %41 = vector.extract_strided_slice %38 {offsets = [32, 0], sizes = [32, 32], strides = [1, 1]} : vector<128x32xf32> to vector<32x32xf32>
    %cst_27 = arith.constant dense<0.000000e+00> : vector<2x32xf32>
    %42 = tpu.matmul %37, %41, %cst_27 {dimension_numbers = #tpu.dot_dimension_numbers<[1], [0], [0], [1], [0, 0, 1, 1], [], []>} : vector<2x32xf32>, vector<32x32xf32>, vector<2x32xf32> -> vector<2x32xf32>
    %43 = arith.addf %40, %42 : vector<2x32xf32>
    %44 = vector.extract_strided_slice %38 {offsets = [64, 0], sizes = [32, 32], strides = [1, 1]} : vector<128x32xf32> to vector<32x32xf32>
    %cst_28 = arith.constant dense<0.000000e+00> : vector<2x32xf32>
    %45 = tpu.matmul %8, %44, %cst_28 {dimension_numbers = #tpu.dot_dimension_numbers<[1], [0], [0], [1], [0, 0, 1, 1], [], []>} : vector<2x32xf32>, vector<32x32xf32>, vector<2x32xf32> -> vector<2x32xf32>
    %46 = arith.addf %43, %45 : vector<2x32xf32>
    %47 = vector.extract_strided_slice %38 {offsets = [96, 0], sizes = [32, 32], strides = [1, 1]} : vector<128x32xf32> to vector<32x32xf32>
    %cst_29 = arith.constant dense<0.000000e+00> : vector<2x32xf32>
    %48 = tpu.matmul %27, %47, %cst_29 {dimension_numbers = #tpu.dot_dimension_numbers<[1], [0], [0], [1], [0, 0, 1, 1], [], []>} : vector<2x32xf32>, vector<32x32xf32>, vector<2x32xf32> -> vector<2x32xf32>
    %49 = arith.addf %46, %48 : vector<2x32xf32>
    %c0_30 = arith.constant 0 : index
    %c0_31 = arith.constant 0 : index
    %50 = vector.load %arg5[%c0_30, %c0_31] : memref<1x32xf32, #tpu.memory_space<vmem>>, vector<1x32xf32>
    %51 = vector.broadcast %50 : vector<1x32xf32> to vector<2x32xf32>
    %52 = arith.addf %49, %51 : vector<2x32xf32>
    %53 = arith.mulf %52, %52 : vector<2x32xf32>
    %54 = arith.mulf %52, %53 : vector<2x32xf32>
    %cst_32 = arith.constant 4.471500e-02 : f32
    %55 = vector.broadcast %cst_32 : f32 to vector<2x32xf32>
    %56 = arith.mulf %55, %54 : vector<2x32xf32>
    %57 = arith.addf %52, %56 : vector<2x32xf32>
    %cst_33 = arith.constant 0.797884583 : f32
    %58 = vector.broadcast %cst_33 : f32 to vector<2x32xf32>
    %59 = arith.mulf %58, %57 : vector<2x32xf32>
    %60 = math.tanh %59 : vector<2x32xf32>
    %cst_34 = arith.constant 1.000000e+00 : f32
    %61 = vector.broadcast %cst_34 : f32 to vector<2x32xf32>
    %62 = arith.addf %61, %60 : vector<2x32xf32>
    %cst_35 = arith.constant 5.000000e-01 : f32
    %63 = vector.broadcast %cst_35 : f32 to vector<2x32xf32>
    %64 = arith.mulf %63, %62 : vector<2x32xf32>
    %65 = arith.mulf %52, %64 : vector<2x32xf32>
    %c0_36 = arith.constant 0 : index
    %c0_37 = arith.constant 0 : index
    %66 = vector.load %arg6[%c0_36, %c0_37] : memref<32x2xf32, #tpu.memory_space<vmem>>, vector<32x2xf32>
    %cst_38 = arith.constant dense<0.000000e+00> : vector<2x2xf32>
    %67 = tpu.matmul %65, %66, %cst_38 {dimension_numbers = #tpu.dot_dimension_numbers<[1], [0], [0], [1], [0, 0, 1, 1], [], []>} : vector<2x32xf32>, vector<32x2xf32>, vector<2x2xf32> -> vector<2x2xf32>
    %c0_39 = arith.constant 0 : index
    %c0_40 = arith.constant 0 : index
    %68 = vector.load %arg7[%c0_39, %c0_40] : memref<1x2xf32, #tpu.memory_space<vmem>>, vector<1x2xf32>
    %69 = vector.broadcast %68 : vector<1x2xf32> to vector<2x2xf32>
    %70 = arith.addf %67, %69 : vector<2x2xf32>
    %c0_41 = arith.constant 0 : index
    %c0_42 = arith.constant 0 : index
    %71 = vector.load %arg8[%c0_41, %c0_42] : memref<2x2xf32, #tpu.memory_space<vmem>>, vector<2x2xf32>
    tpu.vector_store %arg8[%c0_41, %c0_42], %70 {strides = array<i32>} : memref<2x2xf32, #tpu.memory_space<vmem>>, vector<2x2xf32>,
    return
  }
}

</mosaic_0001>

<llo_original>
// kernel: esim_forward.9
$region0: #{esim_forward.9}
  #allocation0 [shape = 'u32[]', space=smem, size = 0x4, offset = 0x4, fixed_abs, tag = 'smem constant byte address 0x4 - core index']
  #allocation1 [shape = 'u32[144,128]{1,0:T(1,128)}', space=vmem, size = 0x12000, scoped, tag = 'internal scratch']
  %s0 = inlined_call_operand.vmem [shape: f32[2,8,32], index: 0, kind: input, shape index: {}]
  %s1 = inlined_call_operand.vmem [shape: f32[2,10,32], index: 1, kind: input, shape index: {}]
  %s2 = inlined_call_operand.vmem [shape: f32[2,1,10], index: 2, kind: input, shape index: {}]
  %s3 = inlined_call_operand.vmem [shape: f32[2,8,32], index: 3, kind: output, shape index: {}]
  %s4 = sld [smem:[#allocation0]]
  $region22: #{esim_forward.9} parent=0
    _
  %s6 = ssub.s32 1, %s4
  %s7 = scalar_select 0, %s6, %s4
  // Predicated region
  $region2: #{esim_forward.9} parent=0 // pred_check
    _
  $region3: #{esim_forward.9} parent=0 // pred_check_branch
    %9 = sbr.rel (0) target = $region5
  $region4: #{esim_forward.9} parent=0 // pred_region
    _
  $region5: #{esim_forward.9} parent=0 // pred_fallthru
    _
  // Predicated region
  $region6: #{esim_forward.9} parent=0 // pred_check
    _
  $region7: #{esim_forward.9} parent=0 // pred_check_branch
    %11 = sbr.rel (0) target = $region9
  $region8: #{esim_forward.9} parent=0 // pred_region
    _
  $region9: #{esim_forward.9} parent=0 // pred_fallthru
    _
  // Predicated region
  $region10: #{esim_forward.9} parent=0 // pred_check
    _
  $region11: #{esim_forward.9} parent=0 // pred_check_branch
    %13 = sbr.rel (0) target = $region13
  $region12: #{esim_forward.9} parent=0 // pred_region
    _
  $region13: #{esim_forward.9} parent=0 // pred_fallthru
    _
  %v14 = vld [vmem:[%s0] sm:$0xff]
  %v15 = vld [vmem:[%s0 + $0x8] sm:$0xff]
  %v16 = vld [vmem:[%s1] sm:$0xff]
  %v17 = vld [vmem:[%s1 + $0x8] sm:$0x3]
  %v18 = vld [vmem:[%s1 + $0x10] sm:$0xff]
  %v19 = vld [vmem:[%s1 + $0x18] sm:$0x3]
  %v20 = vld [vmem:[%s2] sm:$0x1]
  %v21 = vld [vmem:[%s2 + $0x1] sm:$0x1]
  %vm22 = vcmask 261120
  %v24 = vsel %vm22, %v14, 0
  %v27 = vsel %vm22, %v16, 0
  %v30 = vsel %vm22, %v17, 0
  %32 = vmatprep.subr.mxu0 0.0
  %33 = vmatpush1.xpose.msra.mxu0 %v27
  %34 = vmatprep.subr.mxu0 0.0
  %35 = vmatpush1.xpose.msra.mxu0 %v30
  %36 = vmatprep.subr.mxu0 0.0
  %37 = vmatpush1.xpose.msra.mxu0 0.0
  %38 = vmatprep.subr.mxu0 0.0
  %39 = vmatpush1.xpose.msra.mxu0 0.0
  %40 = vmatprep.subr.mxu0 0.0
  %41 = vmatpush1.xpose.msra.mxu0 0.0
  %42 = vmatprep.subr.mxu0 0.0
  %43 = vmatpush1.xpose.msra.mxu0 0.0
  %44 = vmatprep.subr.mxu0 0.0
  %45 = vmatpush1.xpose.msra.mxu0 0.0
  %46 = vmatprep.subr.mxu0 0.0
  %47 = vmatpush1.xpose.msra.mxu0 0.0
  %48 = vmatprep.subr.mxu0 0.0
  %49 = vmatpush1.xpose.msra.mxu0 0.0
  %50 = vmatprep.subr.mxu0 0.0
  %51 = vmatpush1.xpose.msra.mxu0 0.0
  %52 = vmatprep.subr.mxu0 0.0
  %53 = vmatpush1.xpose.msra.mxu0 0.0
  %54 = vmatprep.subr.mxu0 0.0
  %55 = vmatpush1.xpose.msra.mxu0 0.0
  %56 = vmatprep.subr.mxu0 0.0
  %57 = vmatpush1.xpose.msra.mxu0 0.0
  %58 = vmatprep.subr.mxu0 0.0
  %59 = vmatpush1.xpose.msra.mxu0 0.0
  %60 = vmatprep.subr.mxu0 0.0
  %61 = vmatpush1.xpose.msra.mxu0 0.0
  %62 = vmatprep.subr.mxu0 0.0
  %63 = vmatpush1.xpose.msra.mxu0 0.0
  %64 = vmatprep.subr.mxu0 0.0
  %65 = vmatpush1.xpose.msra.mxu0 0.0
  %66 = vmatprep.subr.mxu0 0.0
  %67 = vmatpush1.xpose.msra.mxu0 0.0
  %68 = vmatprep.subr.mxu0 0.0
  %69 = vmatpush1.xpose.msra.mxu0 0.0
  %70 = vmatprep.subr.mxu0 0.0
  %71 = vmatpush1.xpose.msra.mxu0 0.0
  %72 = vmatprep.subr.mxu0 0.0
  %73 = vmatpush1.xpose.msra.mxu0 0.0
  %74 = vmatprep.subr.mxu0 0.0
  %75 = vmatpush1.xpose.msra.mxu0 0.0
  %76 = vmatprep.subr.mxu0 0.0
  %77 = vmatpush1.xpose.msra.mxu0 0.0
  %78 = vmatprep.subr.mxu0 0.0
  %79 = vmatpush1.xpose.msra.mxu0 0.0
  %80 = vmatprep.subr.mxu0 0.0
  %81 = vmatpush1.xpose.msra.mxu0 0.0
  %82 = vmatprep.subr.mxu0 0.0
  %83 = vmatpush1.xpose.msra.mxu0 0.0
  %84 = vmatprep.subr.mxu0 0.0
  %85 = vmatpush1.xpose.msra.mxu0 0.0
  %86 = vmatprep.subr.mxu0 0.0
  %87 = vmatpush1.xpose.msra.mxu0 0.0
  %88 = vmatprep.subr.mxu0 0.0
  %89 = vmatpush1.xpose.msra.mxu0 0.0
  %90 = vmatprep.subr.mxu0 0.0
  %91 = vmatpush1.xpose.msra.mxu0 0.0
  %92 = vmatprep.subr.mxu0 0.0
  %93 = vmatpush1.xpose.msra.mxu0 0.0
  %94 = vmatprep.subr.mxu0 0.0
  %95 = vmatpush1.xpose.msra.mxu0 0.0
  %96 = vmatprep.mubr.f32.mxu0 0.0
  %97 = vmatmul.mubr.f32.gmra.mrb[0].mxu0 %v24
  %v98 = vpop.f32.mrb[0].mxu0
  %v99 = vadd.f32 0.0, %v98
  %v100 = vpop.f32.mrb[0].mxu0
  %101 = vdwg.mxu0
  %v103 = vsel %vm22, %v15, 0
  %v106 = vsel %vm22, %v18, 0
  %v109 = vsel %vm22, %v19, 0
  %111 = vmatprep.subr.mxu0 0.0
  %112 = vmatpush1.xpose.msra.mxu0 %v106
  %113 = vmatprep.subr.mxu0 0.0
  %114 = vmatpush1.xpose.msra.mxu0 %v109
  %115 = vmatprep.subr.mxu0 0.0
  %116 = vmatpush1.xpose.msra.mxu0 0.0
  %117 = vmatprep.subr.mxu0 0.0
  %118 = vmatpush1.xpose.msra.mxu0 0.0
  %119 = vmatprep.subr.mxu0 0.0
  %120 = vmatpush1.xpose.msra.mxu0 0.0
  %121 = vmatprep.subr.mxu0 0.0
  %122 = vmatpush1.xpose.msra.mxu0 0.0
  %123 = vmatprep.subr.mxu0 0.0
  %124 = vmatpush1.xpose.msra.mxu0 0.0
  %125 = vmatprep.subr.mxu0 0.0
  %126 = vmatpush1.xpose.msra.mxu0 0.0
  %127 = vmatprep.subr.mxu0 0.0
  %128 = vmatpush1.xpose.msra.mxu0 0.0
  %129 = vmatprep.subr.mxu0 0.0
  %130 = vmatpush1.xpose.msra.mxu0 0.0
  %131 = vmatprep.subr.mxu0 0.0
  %132 = vmatpush1.xpose.msra.mxu0 0.0
  %133 = vmatprep.subr.mxu0 0.0
  %134 = vmatpush1.xpose.msra.mxu0 0.0
  %135 = vmatprep.subr.mxu0 0.0
  %136 = vmatpush1.xpose.msra.mxu0 0.0
  %137 = vmatprep.subr.mxu0 0.0
  %138 = vmatpush1.xpose.msra.mxu0 0.0
  %139 = vmatprep.subr.mxu0 0.0
  %140 = vmatpush1.xpose.msra.mxu0 0.0
  %141 = vmatprep.subr.mxu0 0.0
  %142 = vmatpush1.xpose.msra.mxu0 0.0
  %143 = vmatprep.subr.mxu0 0.0
  %144 = vmatpush1.xpose.msra.mxu0 0.0
  %145 = vmatprep.subr.mxu0 0.0
  %146 = vmatpush1.xpose.msra.mxu0 0.0
  %147 = vmatprep.subr.mxu0 0.0
  %148 = vmatpush1.xpose.msra.mxu0 0.0
  %149 = vmatprep.subr.mxu0 0.0
  %150 = vmatpush1.xpose.msra.mxu0 0.0
  %151 = vmatprep.subr.mxu0 0.0
  %152 = vmatpush1.xpose.msra.mxu0 0.0
  %153 = vmatprep.subr.mxu0 0.0
  %154 = vmatpush1.xpose.msra.mxu0 0.0
  %155 = vmatprep.subr.mxu0 0.0
  %156 = vmatpush1.xpose.msra.mxu0 0.0
  %157 = vmatprep.subr.mxu0 0.0
  %158 = vmatpush1.xpose.msra.mxu0 0.0
  %159 = vmatprep.subr.mxu0 0.0
  %160 = vmatpush1.xpose.msra.mxu0 0.0
  %161 = vmatprep.subr.mxu0 0.0
  %162 = vmatpush1.xpose.msra.mxu0 0.0
  %163 = vmatprep.subr.mxu0 0.0
  %164 = vmatpush1.xpose.msra.mxu0 0.0
  %165 = vmatprep.subr.mxu0 0.0
  %166 = vmatpush1.xpose.msra.mxu0 0.0
  %167 = vmatprep.subr.mxu0 0.0
  %168 = vmatpush1.xpose.msra.mxu0 0.0
  %169 = vmatprep.subr.mxu0 0.0
  %170 = vmatpush1.xpose.msra.mxu0 0.0
  %171 = vmatprep.subr.mxu0 0.0
  %172 = vmatpush1.xpose.msra.mxu0 0.0
  %173 = vmatprep.subr.mxu0 0.0
  %174 = vmatpush1.xpose.msra.mxu0 0.0
  %175 = vmatprep.mubr.f32.mxu0 0.0
  %176 = vmatmul.mubr.f32.gmra.mrb[0].mxu0 %v103
  %v177 = vpop.f32.mrb[0].mxu0
  %v178 = vadd.f32 0.0, %v177
  %v179 = vpop.f32.mrb[0].mxu0
  %180 = vdwg.mxu0
  %vm181 = vcmp.eq.f32.partialorder %v20, 0.0
  %vm182 = vcmp.eq.f32.partialorder %v21, 0.0
  %v183 = vsel %vm181, 1, 0
  %v184 = vsel %vm182, 1, 0
  %v185 = vlaneseq
  %v186 = vshrl.u32 %v185, 7
  %v187 = vsub.s32 0, %v186
  %v188 = vrot.slane %v183, %v187
  %v189 = vlaneseq
  %v190 = vshrl.u32 %v189, 7
  %v191 = vsub.s32 0, %v190
  %v192 = vrot.slane %v184, %v191
  %vm193 = vcmp.eq.s32.totalorder %v188, 1
  %vm194 = vcmp.eq.s32.totalorder %v192, 1
  %v195 = vsel %vm193, -1e+09, %v99
  %v196 = vsel %vm194, -1e+09, %v178
  %vm197 = vcmask 80896
  %v198 = vsel %vm197, %v195, -inf
  %v199 = vrot.slane %v198, 4
  %v200 = vmax.f32 %v198, %v199
  %v201 = vrot.slane %v200, 2
  %v202 = vmax.f32 %v200, %v201
  %v203 = vrot.slane %v202, 1
  %v204 = vmax.f32 %v202, %v203
  %v205 = vsel %vm197, %v196, -inf
  %v206 = vrot.slane %v205, 4
  %v207 = vmax.f32 %v205, %v206
  %v208 = vrot.slane %v207, 2
  %v209 = vmax.f32 %v207, %v208
  %v210 = vrot.slane %v209, 1
  %v211 = vmax.f32 %v209, %v210
  %v212 = vsub.f32 %v195, %v204
  %v213 = vsub.f32 %v196, %v211
  %v214 = vmul.f32 %v212, 1.442695
  %v215 = vpow.pop %v214
  %v216 = vmul.f32 %v213, 1.442695
  %v217 = vpow.pop %v216
  %v218 = vsel %vm197, %v215, 0.0
  %v219 = vrot.slane %v218, 4
  %v220 = vadd.f32 %v218, %v219
  %v221 = vrot.slane %v220, 2
  %v222 = vadd.f32 %v220, %v221
  %v223 = vrot.slane %v222, 1
  %v224 = vadd.f32 %v222, %v223
  %v225 = vsel %vm197, %v217, 0.0
  %v226 = vrot.slane %v225, 4
  %v227 = vadd.f32 %v225, %v226
  %v228 = vrot.slane %v227, 2
  %v229 = vadd.f32 %v227, %v228
  %v230 = vrot.slane %v229, 1
  %v231 = vadd.f32 %v229, %v230
  %v232 = vrcp.pop %v224
  %v233 = vrcp.pop %v231
  %v234 = vmul.f32 %v215, %v232
  %v235 = vmul.f32 %v217, %v233
  %v237 = vsel %vm197, %v234, 0
  %vm239 = vcmask 1041408
  %v240 = vsel %vm239, %v17, 0
  %242 = vmatprep.subr.mxu0 0.0
  %243 = vmatpush1.msra.mxu0 %v16
  %244 = vmatprep.subr.mxu0 0.0
  %245 = vmatpush1.msra.mxu0 %v240
  %246 = vmatprep.subr.mxu0 0.0
  %247 = vmatpush1.msra.mxu0 0.0
  %248 = vmatprep.subr.mxu0 0.0
  %249 = vmatpush1.msra.mxu0 0.0
  %250 = vmatprep.subr.mxu0 0.0
  %251 = vmatpush1.msra.mxu0 0.0
  %252 = vmatprep.subr.mxu0 0.0
  %253 = vmatpush1.msra.mxu0 0.0
  %254 = vmatprep.subr.mxu0 0.0
  %255 = vmatpush1.msra.mxu0 0.0
  %256 = vmatprep.subr.mxu0 0.0
  %257 = vmatpush1.msra.mxu0 0.0
  %258 = vmatprep.subr.mxu0 0.0
  %259 = vmatpush1.msra.mxu0 0.0
  %260 = vmatprep.subr.mxu0 0.0
  %261 = vmatpush1.msra.mxu0 0.0
  %262 = vmatprep.subr.mxu0 0.0
  %263 = vmatpush1.msra.mxu0 0.0
  %264 = vmatprep.subr.mxu0 0.0
  %265 = vmatpush1.msra.mxu0 0.0
  %266 = vmatprep.subr.mxu0 0.0
  %267 = vmatpush1.msra.mxu0 0.0
  %268 = vmatprep.subr.mxu0 0.0
  %269 = vmatpush1.msra.mxu0 0.0
  %270 = vmatprep.subr.mxu0 0.0
  %271 = vmatpush1.msra.mxu0 0.0
  %272 = vmatprep.subr.mxu0 0.0
  %273 = vmatpush1.msra.mxu0 0.0
  %274 = vmatprep.subr.mxu0 0.0
  %275 = vmatpush1.msra.mxu0 0.0
  %276 = vmatprep.subr.mxu0 0.0
  %277 = vmatpush1.msra.mxu0 0.0
  %278 = vmatprep.subr.mxu0 0.0
  %279 = vmatpush1.msra.mxu0 0.0
  %280 = vmatprep.subr.mxu0 0.0
  %281 = vmatpush1.msra.mxu0 0.0
  %282 = vmatprep.subr.mxu0 0.0
  %283 = vmatpush1.msra.mxu0 0.0
  %284 = vmatprep.subr.mxu0 0.0
  %285 = vmatpush1.msra.mxu0 0.0
  %286 = vmatprep.subr.mxu0 0.0
  %287 = vmatpush1.msra.mxu0 0.0
  %288 = vmatprep.subr.mxu0 0.0
  %289 = vmatpush1.msra.mxu0 0.0
  %290 = vmatprep.subr.mxu0 0.0
  %291 = vmatpush1.msra.mxu0 0.0
  %292 = vmatprep.subr.mxu0 0.0
  %293 = vmatpush1.msra.mxu0 0.0
  %294 = vmatprep.subr.mxu0 0.0
  %295 = vmatpush1.msra.mxu0 0.0
  %296 = vmatprep.subr.mxu0 0.0
  %297 = vmatpush1.msra.mxu0 0.0
  %298 = vmatprep.subr.mxu0 0.0
  %299 = vmatpush1.msra.mxu0 0.0
  %300 = vmatprep.subr.mxu0 0.0
  %301 = vmatpush1.msra.mxu0 0.0
  %302 = vmatprep.subr.mxu0 0.0
  %303 = vmatpush1.msra.mxu0 0.0
  %304 = vmatprep.subr.mxu0 0.0
  %305 = vmatpush1.msra.mxu0 0.0
  %306 = vmatprep.mubr.f32.mxu0 0.0
  %307 = vmatmul.mubr.f32.gmra.mrb[0].mxu0 %v237
  %v308 = vpop.f32.mrb[0].mxu0
  %v309 = vadd.f32 0.0, %v308
  %v310 = vpop.f32.mrb[0].mxu0
  %311 = vdwg.mxu0
  %v313 = vsel %vm197, %v235, 0
  %v315 = vsel %vm239, %v19, 0
  %317 = vmatprep.subr.mxu0 0.0
  %318 = vmatpush1.msra.mxu0 %v18
  %319 = vmatprep.subr.mxu0 0.0
  %320 = vmatpush1.msra.mxu0 %v315
  %321 = vmatprep.subr.mxu0 0.0
  %322 = vmatpush1.msra.mxu0 0.0
  %323 = vmatprep.subr.mxu0 0.0
  %324 = vmatpush1.msra.mxu0 0.0
  %325 = vmatprep.subr.mxu0 0.0
  %326 = vmatpush1.msra.mxu0 0.0
  %327 = vmatprep.subr.mxu0 0.0
  %328 = vmatpush1.msra.mxu0 0.0
  %329 = vmatprep.subr.mxu0 0.0
  %330 = vmatpush1.msra.mxu0 0.0
  %331 = vmatprep.subr.mxu0 0.0
  %332 = vmatpush1.msra.mxu0 0.0
  %333 = vmatprep.subr.mxu0 0.0
  %334 = vmatpush1.msra.mxu0 0.0
  %335 = vmatprep.subr.mxu0 0.0
  %336 = vmatpush1.msra.mxu0 0.0
  %337 = vmatprep.subr.mxu0 0.0
  %338 = vmatpush1.msra.mxu0 0.0
  %339 = vmatprep.subr.mxu0 0.0
  %340 = vmatpush1.msra.mxu0 0.0
  %341 = vmatprep.subr.mxu0 0.0
  %342 = vmatpush1.msra.mxu0 0.0
  %343 = vmatprep.subr.mxu0 0.0
  %344 = vmatpush1.msra.mxu0 0.0
  %345 = vmatprep.subr.mxu0 0.0
  %346 = vmatpush1.msra.mxu0 0.0
  %347 = vmatprep.subr.mxu0 0.0
  %348 = vmatpush1.msra.mxu0 0.0
  %349 = vmatprep.subr.mxu0 0.0
  %350 = vmatpush1.msra.mxu0 0.0
  %351 = vmatprep.subr.mxu0 0.0
  %352 = vmatpush1.msra.mxu0 0.0
  %353 = vmatprep.subr.mxu0 0.0
  %354 = vmatpush1.msra.mxu0 0.0
  %355 = vmatprep.subr.mxu0 0.0
  %356 = vmatpush1.msra.mxu0 0.0
  %357 = vmatprep.subr.mxu0 0.0
  %358 = vmatpush1.msra.mxu0 0.0
  %359 = vmatprep.subr.mxu0 0.0
  %360 = vmatpush1.msra.mxu0 0.0
  %361 = vmatprep.subr.mxu0 0.0
  %362 = vmatpush1.msra.mxu0 0.0
  %363 = vmatprep.subr.mxu0 0.0
  %364 = vmatpush1.msra.mxu0 0.0
  %365 = vmatprep.subr.mxu0 0.0
  %366 = vmatpush1.msra.mxu0 0.0
  %367 = vmatprep.subr.mxu0 0.0
  %368 = vmatpush1.msra.mxu0 0.0
  %369 = vmatprep.subr.mxu0 0.0
  %370 = vmatpush1.msra.mxu0 0.0
  %371 = vmatprep.subr.mxu0 0.0
  %372 = vmatpush1.msra.mxu0 0.0
  %373 = vmatprep.subr.mxu0 0.0
  %374 = vmatpush1.msra.mxu0 0.0
  %375 = vmatprep.subr.mxu0 0.0
  %376 = vmatpush1.msra.mxu0 0.0
  %377 = vmatprep.subr.mxu0 0.0
  %378 = vmatpush1.msra.mxu0 0.0
  %379 = vmatprep.subr.mxu0 0.0
  %380 = vmatpush1.msra.mxu0 0.0
  %381 = vmatprep.mubr.f32.mxu0 0.0
  %382 = vmatmul.mubr.f32.gmra.mrb[0].mxu0 %v313
  %v383 = vpop.f32.mrb[0].mxu0
  %v384 = vadd.f32 0.0, %v383
  %v385 = vpop.f32.mrb[0].mxu0
  %386 = vdwg.mxu0
  %387 = vst.msk [vmem:[%s3] sm:$0xff] %vm22, %v309
  %388 = vst.msk [vmem:[%s3 + $0x8] sm:$0xff] %vm22, %v384
  // Predicated region
  $region14: #{esim_forward.9} parent=0 // pred_check
    _
  $region15: #{esim_forward.9} parent=0 // pred_check_branch
    %390 = sbr.rel (0) target = $region17
  $region16: #{esim_forward.9} parent=0 // pred_region
    _
  $region17: #{esim_forward.9} parent=0 // pred_fallthru
    _
  // Predicated region
  $region18: #{esim_forward.9} parent=0 // pred_check
    _
  $region19: #{esim_forward.9} parent=0 // pred_check_branch
    %392 = sbr.rel (0) target = $region21
  $region20: #{esim_forward.9} parent=0 // pred_region
    _
  $region21: #{esim_forward.9} parent=0 // pred_fallthru
    _

// kernel: esim_forward.7
$region0: #{esim_forward.7}
  #allocation0 [shape = 'u32[]', space=smem, size = 0x4, offset = 0x4, fixed_abs, tag = 'smem constant byte address 0x4 - core index']
  #allocation1 [shape = 'u32[144,128]{1,0:T(1,128)}', space=vmem, size = 0x12000, scoped, tag = 'internal scratch']
  #allocation2 [shape = 'f32[2,16]{1,0:T(2,128)}', space=vmem, size = 0x400, scoped, tag = 'scratch operand']
  #allocation3 [shape = 'f32[2,16]{1,0:T(2,128)}', space=vmem, size = 0x400, scoped, tag = 'scratch operand']
  %s0 = inlined_call_operand.vmem [shape: f32[2,8,2,64], index: 0, kind: input, shape index: {}]
  %s1 = inlined_call_operand.vmem [shape: f32[2,16,64], index: 1, kind: input, shape index: {}]
  %s2 = inlined_call_operand.vmem [shape: f32[2,8,2,16], index: 2, kind: output, shape index: {}]
  %s3 = sld [smem:[#allocation0]]
  $region45: #{esim_forward.7} parent=0
    _
  %s5 = ssub.s32 1, %s3
  %s6 = scalar_select 0, %s5, %s3
  loop: start=0, step=1, limit=4
  $region2: #{esim_forward.7} parent=0 // loop_pre_header
    _
  $region3: #{esim_forward.7} parent=0 // loop_header
    %s8 = sphi 0, %s12
    %p9 = scmp.ge.s32.totalorder %s8, 4
    %s15 = sphi 0, %s27
    %s16 = sphi 0, %s23
    %s17 = sphi 0, %s15
    %s18 = sphi 0, %s16
    %s19 = sphi 0, %s17
    %s20 = sphi 0, %s18
    %s40 = sphi 0, %s42
    %s43 = sphi 0, %s40
    %s44 = sphi 0, %s43
    %s60 = sphi 0, %s44
    %s66 = sphi 0, %s68
    %s69 = sphi 0, %s66
    %s70 = sphi 0, %s69
    %s86 = sphi 0, %s70
    %s102 = sphi 0, %s104
    %s105 = sphi 0, %s102
    %s106 = sphi 0, %s105
    %s122 = sphi 0, %s106
  $region4: #{esim_forward.7} parent=0 // loop_header_branch
    %11 = sbr.rel (%p9) target = $region8
  $region5: #{esim_forward.7} parent=0 // loop_body
    %s13 = ssub.s32 %s8, 1
    %s14 = ssub.s32 %s8, 2
    %s21 = sadd.s32 1, %s16
    %p22 = scmp.ge.s32.totalorder %s21, 1
    %s23 = scalar_select %p22, 0, %s21
    %s24 = sadd.s32 1, %s15
    %s25 = scalar_select %p22, %s24, %s15
    %p26 = scmp.ge.s32.totalorder %s25, 2
    %s27 = scalar_select %p26, 0, %s25
    %s28 = smul.u32 %s16, 2
    %s29 = ssub.s32 0, %s28
    %s30 = smul.u32 %s15, %s29
    %s31 = sadd.s32 %s16, %s30
    %s32 = smul.u32 %s23, 2
    %s33 = ssub.s32 0, %s32
    %s34 = smul.u32 %s27, %s33
    %s35 = sadd.s32 %s23, %s34
    %s36 = ssub.s32 %s15, %s27
    %s37 = ssub.s32 %s31, %s35
    %s38 = sor.u32 %s36, %s37
    %p39 = scmp.eq.s32.totalorder %s38, 0
    %s41 = sadd.s32 %s40, 1
    %s42 = scalar_select %p39, %s40, %s41
    %p45 = pneg %p39
    %p46 = scmp.eq.s32.totalorder %s8, 1
    %p47 = por %p45, %p46
    %p48 = scmp.ne.s32.totalorder %s40, %s43
    %p49 = scmp.eq.s32.totalorder %s8, 0
    %p50 = por %p48, %p49
    %p51 = scmp.ne.s32.totalorder %s40, %s43
    %p52 = scmp.eq.s32.totalorder %s13, 1
    %p53 = por %p51, %p52
    %p54 = scmp.ne.s32.totalorder %s43, %s44
    %p55 = scmp.eq.s32.totalorder %s13, 0
    %p56 = por %p54, %p55
    %p57 = scmp.ne.s32.totalorder %s43, %s44
    %p58 = scmp.eq.s32.totalorder %s14, 1
    %p59 = por %p57, %p58
    %p61 = scmp.ne.s32.totalorder %s44, %s60
    %p62 = scmp.eq.s32.totalorder %s14, 0
    %p63 = por %p61, %p62
    %s64 = ssub.s32 %s15, %s27
    %p65 = scmp.eq.s32.totalorder %s64, 0
    %s67 = sadd.s32 %s66, 1
    %s68 = scalar_select %p65, %s66, %s67
    %p71 = pneg %p65
    %p72 = scmp.eq.s32.totalorder %s8, 1
    %p73 = por %p71, %p72
    %p74 = scmp.ne.s32.totalorder %s66, %s69
    %p75 = scmp.eq.s32.totalorder %s8, 0
    %p76 = por %p74, %p75
    %p77 = scmp.ne.s32.totalorder %s66, %s69
    %p78 = scmp.eq.s32.totalorder %s13, 1
    %p79 = por %p77, %p78
    %p80 = scmp.ne.s32.totalorder %s69, %s70
    %p81 = scmp.eq.s32.totalorder %s13, 0
    %p82 = por %p80, %p81
    %p83 = scmp.ne.s32.totalorder %s69, %s70
    %p84 = scmp.eq.s32.totalorder %s14, 1
    %p85 = por %p83, %p84
    %p87 = scmp.ne.s32.totalorder %s70, %s86
    %p88 = scmp.eq.s32.totalorder %s14, 0
    %p89 = por %p87, %p88
    %s90 = smul.u32 %s16, 2
    %s91 = ssub.s32 0, %s90
    %s92 = smul.u32 %s15, %s91
    %s93 = sadd.s32 %s16, %s92
    %s94 = smul.u32 %s23, 2
    %s95 = ssub.s32 0, %s94
    %s96 = smul.u32 %s27, %s95
    %s97 = sadd.s32 %s23, %s96
    %s98 = ssub.s32 %s15, %s27
    %s99 = ssub.s32 %s93, %s97
    %s100 = sor.u32 %s98, %s99
    %p101 = scmp.eq.s32.totalorder %s100, 0
    %s103 = sadd.s32 %s102, 1
    %s104 = scalar_select %p101, %s102, %s103
    %p107 = pneg %p101
    %p108 = scmp.eq.s32.totalorder %s8, 1
    %p109 = por %p107, %p108
    %p110 = scmp.ne.s32.totalorder %s102, %s105
    %p111 = scmp.eq.s32.totalorder %s8, 0
    %p112 = por %p110, %p111
    %p113 = scmp.ne.s32.totalorder %s102, %s105
    %p114 = scmp.eq.s32.totalorder %s13, 1
    %p115 = por %p113, %p114
    %p116 = scmp.ne.s32.totalorder %s105, %s106
    %p117 = scmp.eq.s32.totalorder %s13, 0
    %p118 = por %p116, %p117
    %p119 = scmp.ne.s32.totalorder %s105, %s106
    %p120 = scmp.eq.s32.totalorder %s14, 1
    %p121 = por %p119, %p120
    %p123 = scmp.ne.s32.totalorder %s106, %s122
    %p124 = scmp.eq.s32.totalorder %s14, 0
    %p125 = por %p123, %p124
    %p126 = scmp.le.s32.totalorder 1, %s8
    %p127 = scmp.lt.s32.totalorder %s8, 3
    %p128 = pnand %p126, %p127
    %p129 = pneg %p128
    // Predicated region
    $region9: #{esim_forward.7} parent=5 // pred_check
      _
    $region10: #{esim_forward.7} parent=5 // pred_check_branch
      %131 = sbr.rel (%p128) target = $region12
    $region11: #{esim_forward.7} parent=5 // pred_region
      %s132 = ssub.s32 %s8, 1
    $region12: #{esim_forward.7} parent=5 // pred_fallthru
      _
    %p133 = scmp.lt.s32.totalorder %s8, 2
    // Predicated region
    $region13: #{esim_forward.7} parent=5 // pred_check
      %p134 = pneg %p133
    $region14: #{esim_forward.7} parent=5 // pred_check_branch
      %136 = sbr.rel (%p134) target = $region16
    $region15: #{esim_forward.7} parent=5 // pred_region
      // Predicated region
      $region17: #{esim_forward.7} parent=15 // pred_check
        %p137 = pneg %p50
      $region18: #{esim_forward.7} parent=15 // pred_check_branch
        %139 = sbr.rel (%p137) target = $region20
      $region19: #{esim_forward.7} parent=15 // pred_region
        %s140 = smul.u32 %s16, 2
        %s141 = ssub.s32 0, %s140
        %s142 = smul.u32 %s15, %s141
        %s143 = sadd.s32 %s16, %s142
        %s144 = smul.u32 8, %s143
        %p145 = scmp.lt.s32.totalorder %s15, 1
        %s146 = scalar_select %p145, %s15, 1
        %p147 = scmp.lt.s32.totalorder %s144, 7
        %s148 = scalar_select %p147, %s144, 7
        %s149 = smul.addr %s146, 8
        %s150 = sadd.s32 %s148, %s149
        %s151 = smul.addr %s150, 2
        %s152 = scalar_lea.vmem %s0, %s151
        %s153 = smul.u32 %s16, 2
        %s154 = ssub.s32 0, %s153
        %s155 = smul.u32 %s15, %s154
        %s156 = sadd.s32 %s16, %s155
        %s157 = smul.u32 8, %s156
      $region20: #{esim_forward.7} parent=15 // pred_fallthru
        _
      // Predicated region
      $region21: #{esim_forward.7} parent=15 // pred_check
        %p158 = pneg %p76
      $region22: #{esim_forward.7} parent=15 // pred_check_branch
        %160 = sbr.rel (%p158) target = $region24
      $region23: #{esim_forward.7} parent=15 // pred_region
        %p161 = scmp.lt.s32.totalorder %s15, 1
        %s162 = scalar_select %p161, %s15, 1
        %s163 = smul.addr %s162, 2
        %s164 = smul.addr %s163, 8
        %s165 = scalar_lea.vmem %s1, %s164
      $region24: #{esim_forward.7} parent=15 // pred_fallthru
        _
    $region16: #{esim_forward.7} parent=5 // pred_fallthru
      _
    %p166 = scmp.le.s32.totalorder 1, %s8
    %p167 = scmp.lt.s32.totalorder %s8, 3
    %p168 = pnand %p166, %p167
    %p169 = pneg %p168
    // Predicated region
    $region25: #{esim_forward.7} parent=5 // pred_check
      _
    $region26: #{esim_forward.7} parent=5 // pred_check_branch
      %171 = sbr.rel (%p168) target = $region28
    $region27: #{esim_forward.7} parent=5 // pred_region
      %s172 = ssub.s32 %s8, 1
      %s173 = smul.u32 %s18, 2
      %s174 = ssub.s32 0, %s173
      %s175 = smul.u32 %s17, %s174
      %s176 = sadd.s32 %s18, %s175
      %s177 = smul.u32 8, %s176
      %p178 = scmp.lt.s32.totalorder %s17, 1
      %s179 = scalar_select %p178, %s17, 1
      %p180 = scmp.lt.s32.totalorder %s177, 7
      %s181 = scalar_select %p180, %s177, 7
      %s182 = smul.addr %s179, 8
      %s183 = sadd.s32 %s181, %s182
      %s184 = smul.addr %s183, 2
      %s185 = scalar_lea.vmem %s0, %s184
      %p186 = pneg %p56
      %p187 = pneg %p53
      %p188 = scmp.lt.s32.totalorder %s17, 1
      %s189 = scalar_select %p188, %s17, 1
      %s190 = smul.addr %s189, 2
      %s191 = smul.addr %s190, 8
      %s192 = scalar_lea.vmem %s1, %s191
      %p193 = pneg %p82
      %p194 = pneg %p79
      %p195 = pneg %p118
      %p196 = pneg %p115
      %s197 = smul.u32 %s18, 2
      %s198 = ssub.s32 0, %s197
      %s199 = smul.u32 %s17, %s198
      %s200 = sadd.s32 %s18, %s199
      %s201 = smul.u32 8, %s200
      %p202 = scmp.lt.s32.totalorder %s17, 1
      %s203 = scalar_select %p202, %s17, 1
      %p204 = scmp.lt.s32.totalorder %s201, 7
      %s205 = scalar_select %p204, %s201, 7
      %s206 = smul.addr %s203, 8
      %s207 = sadd.s32 %s205, %s206
      %s208 = smul.addr %s207, 2
      %s209 = scalar_lea.vmem %s2, %s208
      %s210 = smul.u32 %s18, 2
      %s211 = ssub.s32 0, %s210
      %s212 = smul.u32 %s17, %s211
      %s213 = sadd.s32 %s18, %s212
      %s214 = smul.u32 8, %s213
      %p215 = scmp.lt.s32.totalorder %s17, 1
      %s216 = scalar_select %p215, %s17, 1
      %p217 = scmp.lt.s32.totalorder %s214, 7
      %s218 = scalar_select %p217, %s214, 7
      %s219 = smul.addr %s216, 8
      %s220 = sadd.s32 %s218, %s219
      %s221 = smul.addr %s220, 2
      %s222 = scalar_lea.vmem %s0, %s221
      %s223 = smul.u32 %s18, 2
      %s224 = ssub.s32 0, %s223
      %s225 = smul.u32 %s17, %s224
      %s226 = sadd.s32 %s18, %s225
      %s227 = smul.u32 8, %s226
      %p228 = scmp.lt.s32.totalorder %s17, 1
      %s229 = scalar_select %p228, %s17, 1
      %s230 = smul.addr %s229, 2
      %s231 = smul.addr %s230, 8
      %s232 = scalar_lea.vmem %s1, %s231
      %s233 = smul.u32 %s18, 2
      %s234 = ssub.s32 0, %s233
      %s235 = smul.u32 %s17, %s234
      %s236 = sadd.s32 %s18, %s235
      %s237 = smul.u32 8, %s236
      %p238 = scmp.lt.s32.totalorder %s17, 1
      %s239 = scalar_select %p238, %s17, 1
      %p240 = scmp.lt.s32.totalorder %s237, 7
      %s241 = scalar_select %p240, %s237, 7
      %s242 = smul.addr %s239, 8
      %s243 = sadd.s32 %s241, %s242
      %s244 = smul.addr %s243, 2
      %s245 = scalar_lea.vmem %s2, %s244
      %s246 = smul.u32 %s18, 2
      %s247 = ssub.s32 0, %s246
      %s248 = smul.u32 %s17, %s247
      %s249 = sadd.s32 %s18, %s248
      %s250 = smul.u32 8, %s249
      %p251 = scmp.eq.s32.totalorder %s18, 0
      // Predicated region
      $region29: #{esim_forward.7} parent=27 // pred_check
        %p252 = pneg %p251
      $region30: #{esim_forward.7} parent=27 // pred_check_branch
        %254 = sbr.rel (%p252) target = $region32
      $region31: #{esim_forward.7} parent=27 // pred_region
        %vm255 = vcmask 123904
        %256 = vst.msk [vmem:[#allocation2] sm:$0x3] %vm255, 0.0
        %257 = vst.msk [vmem:[#allocation3] sm:$0x3] %vm255, 0.0
      $region32: #{esim_forward.7} parent=27 // pred_fallthru
        _
      %v258 = vld [vmem:[%s232] sm:$0xff]
      %v259 = vld [vmem:[%s232 + $0x8] sm:$0xff]
      %s260 = smul.u32 %s17, 7
      %s261 = smul.u32 %s260, 2
      %s262 = scalar_lea.vmem %s222, %s261
      %v263 = vld [vmem:[%s262] sm:$0x3]
      %v264 = vld [vmem:[#allocation2] sm:$0x3]
      %vm265 = vcmask 130048
      %v267 = vsel %vm265, %v264, 0
      %269 = vmatprep.subr.mxu0 0.0
      %270 = vmatpush1.msra.mxu0 %v258
      %271 = vmatprep.subr.mxu0 0.0
      %272 = vmatpush1.msra.mxu0 %v259
      %273 = vmatprep.subr.mxu0 0.0
      %274 = vmatpush1.msra.mxu0 0.0
      %275 = vmatprep.subr.mxu0 0.0
      %276 = vmatpush1.msra.mxu0 0.0
      %277 = vmatprep.subr.mxu0 0.0
      %278 = vmatpush1.msra.mxu0 0.0
      %279 = vmatprep.subr.mxu0 0.0
      %280 = vmatpush1.msra.mxu0 0.0
      %281 = vmatprep.subr.mxu0 0.0
      %282 = vmatpush1.msra.mxu0 0.0
      %283 = vmatprep.subr.mxu0 0.0
      %284 = vmatpush1.msra.mxu0 0.0
      %285 = vmatprep.subr.mxu0 0.0
      %286 = vmatpush1.msra.mxu0 0.0
      %287 = vmatprep.subr.mxu0 0.0
      %288 = vmatpush1.msra.mxu0 0.0
      %289 = vmatprep.subr.mxu0 0.0
      %290 = vmatpush1.msra.mxu0 0.0
      %291 = vmatprep.subr.mxu0 0.0
      %292 = vmatpush1.msra.mxu0 0.0
      %293 = vmatprep.subr.mxu0 0.0
      %294 = vmatpush1.msra.mxu0 0.0
      %295 = vmatprep.subr.mxu0 0.0
      %296 = vmatpush1.msra.mxu0 0.0
      %297 = vmatprep.subr.mxu0 0.0
      %298 = vmatpush1.msra.mxu0 0.0
      %299 = vmatprep.subr.mxu0 0.0
      %300 = vmatpush1.msra.mxu0 0.0
      %301 = vmatprep.subr.mxu0 0.0
      %302 = vmatpush1.msra.mxu0 0.0
      %303 = vmatprep.subr.mxu0 0.0
      %304 = vmatpush1.msra.mxu0 0.0
      %305 = vmatprep.subr.mxu0 0.0
      %306 = vmatpush1.msra.mxu0 0.0
      %307 = vmatprep.subr.mxu0 0.0
      %308 = vmatpush1.msra.mxu0 0.0
      %309 = vmatprep.subr.mxu0 0.0
      %310 = vmatpush1.msra.mxu0 0.0
      %311 = vmatprep.subr.mxu0 0.0
      %312 = vmatpush1.msra.mxu0 0.0
      %313 = vmatprep.subr.mxu0 0.0
      %314 = vmatpush1.msra.mxu0 0.0
      %315 = vmatprep.subr.mxu0 0.0
      %316 = vmatpush1.msra.mxu0 0.0
      %317 = vmatprep.subr.mxu0 0.0
      %318 = vmatpush1.msra.mxu0 0.0
      %319 = vmatprep.subr.mxu0 0.0
      %320 = vmatpush1.msra.mxu0 0.0
      %321 = vmatprep.subr.mxu0 0.0
      %322 = vmatpush1.msra.mxu0 0.0
      %323 = vmatprep.subr.mxu0 0.0
      %324 = vmatpush1.msra.mxu0 0.0
      %325 = vmatprep.subr.mxu0 0.0
      %326 = vmatpush1.msra.mxu0 0.0
      %327 = vmatprep.subr.mxu0 0.0
      %328 = vmatpush1.msra.mxu0 0.0
      %329 = vmatprep.subr.mxu0 0.0
      %330 = vmatpush1.msra.mxu0 0.0
      %331 = vmatprep.subr.mxu0 0.0
      %332 = vmatpush1.msra.mxu0 0.0
      %333 = vmatprep.mubr.f32.mxu0 0.0
      %334 = vmatmul.mubr.f32.gmra.mrb[0].mxu0 %v267
      %v335 = vpop.f32.mrb[0].mxu0
      %v336 = vadd.f32 0.0, %v335
      %v337 = vpop.f32.mrb[0].mxu0
      %338 = vdwg.mxu0
      %v339 = vadd.f32 %v263, %v336
      %v340 = vxor.u32 %v339, 2147483648
      %v341 = vmul.f32 %v340, 1.442695
      %v342 = vpow.pop %v341
      %v343 = vadd.f32 %v342, 1.0
      %v344 = vrcp.pop %v343
      %v345 = vmul.f32 1.0, %v344
      %v346 = vtanh.pop %v339
      %v347 = vld [vmem:[#allocation3] sm:$0x3]
      %349 = vrot.lane.b32.xlu0 %v347, 16
      %v350 = vpop.permute.xlu0 %349
      %v352 = vmul.f32 %v345, %v350
      %354 = vrot.lane.b32.xlu0 %v346, 96
      %v355 = vpop.permute.xlu0 %354
      %v357 = vmul.f32 %v345, %v355
      %359 = vrot.lane.b32.xlu0 %v357, 16
      %v360 = vpop.permute.xlu0 %359
      %v362 = vadd.f32 %v352, %v360
      %v363 = vtanh.pop %v362
      %365 = vrot.lane.b32.xlu0 %v363, 32
      %v366 = vpop.permute.xlu0 %365
      %v368 = vmul.f32 %v345, %v366
      %370 = vrot.lane.b32.xlu0 %v362, 112
      %v371 = vpop.permute.xlu0 %370
      %vm373 = vcmask 123904
      %374 = vst.msk [vmem:[#allocation3] sm:$0x3] %vm373, %v371
      %376 = vrot.lane.b32.xlu0 %v368, 80
      %v377 = vpop.permute.xlu0 %376
      %379 = vst.msk [vmem:[#allocation2] sm:$0x3] %vm373, %v377
      %s380 = scalar_lea.vmem %s245, %s261
      %381 = vst.msk [vmem:[%s380] sm:$0x3] %vm373, %v377
      %s382 = smul.u32 %s17, 5
      %s383 = sadd.s32 %s382, 1
      %s384 = smul.u32 %s383, 2
      %s385 = scalar_lea.vmem %s222, %s384
      %v386 = vld [vmem:[%s385] sm:$0x3]
      %v387 = vld [vmem:[#allocation2] sm:$0x3]
      %v389 = vsel %vm265, %v387, 0
      %391 = vmatprep.subr.mxu0 0.0
      %392 = vmatpush1.msra.mxu0 %v258
      %393 = vmatprep.subr.mxu0 0.0
      %394 = vmatpush1.msra.mxu0 %v259
      %395 = vmatprep.subr.mxu0 0.0
      %396 = vmatpush1.msra.mxu0 0.0
      %397 = vmatprep.subr.mxu0 0.0
      %398 = vmatpush1.msra.mxu0 0.0
      %399 = vmatprep.subr.mxu0 0.0
      %400 = vmatpush1.msra.mxu0 0.0
      %401 = vmatprep.subr.mxu0 0.0
      %402 = vmatpush1.msra.mxu0 0.0
      %403 = vmatprep.subr.mxu0 0.0
      %404 = vmatpush1.msra.mxu0 0.0
      %405 = vmatprep.subr.mxu0 0.0
      %406 = vmatpush1.msra.mxu0 0.0
      %407 = vmatprep.subr.mxu0 0.0
      %408 = vmatpush1.msra.mxu0 0.0
      %409 = vmatprep.subr.mxu0 0.0
      %410 = vmatpush1.msra.mxu0 0.0
      %411 = vmatprep.subr.mxu0 0.0
      %412 = vmatpush1.msra.mxu0 0.0
      %413 = vmatprep.subr.mxu0 0.0
      %414 = vmatpush1.msra.mxu0 0.0
      %415 = vmatprep.subr.mxu0 0.0
      %416 = vmatpush1.msra.mxu0 0.0
      %417 = vmatprep.subr.mxu0 0.0
      %418 = vmatpush1.msra.mxu0 0.0
      %419 = vmatprep.subr.mxu0 0.0
      %420 = vmatpush1.msra.mxu0 0.0
      %421 = vmatprep.subr.mxu0 0.0
      %422 = vmatpush1.msra.mxu0 0.0
      %423 = vmatprep.subr.mxu0 0.0
      %424 = vmatpush1.msra.mxu0 0.0
      %425 = vmatprep.subr.mxu0 0.0
      %426 = vmatpush1.msra.mxu0 0.0
      %427 = vmatprep.subr.mxu0 0.0
      %428 = vmatpush1.msra.mxu0 0.0
      %429 = vmatprep.subr.mxu0 0.0
      %430 = vmatpush1.msra.mxu0 0.0
      %431 = vmatprep.subr.mxu0 0.0
      %432 = vmatpush1.msra.mxu0 0.0
      %433 = vmatprep.subr.mxu0 0.0
      %434 = vmatpush1.msra.mxu0 0.0
      %435 = vmatprep.subr.mxu0 0.0
      %436 = vmatpush1.msra.mxu0 0.0
      %437 = vmatprep.subr.mxu0 0.0
      %438 = vmatpush1.msra.mxu0 0.0
      %439 = vmatprep.subr.mxu0 0.0
      %440 = vmatpush1.msra.mxu0 0.0
      %441 = vmatprep.subr.mxu0 0.0
      %442 = vmatpush1.msra.mxu0 0.0
      %443 = vmatprep.subr.mxu0 0.0
      %444 = vmatpush1.msra.mxu0 0.0
      %445 = vmatprep.subr.mxu0 0.0
      %446 = vmatpush1.msra.mxu0 0.0
      %447 = vmatprep.subr.mxu0 0.0
      %448 = vmatpush1.msra.mxu0 0.0
      %449 = vmatprep.subr.mxu0 0.0
      %450 = vmatpush1.msra.mxu0 0.0
      %451 = vmatprep.subr.mxu0 0.0
      %452 = vmatpush1.msra.mxu0 0.0
      %453 = vmatprep.subr.mxu0 0.0
      %454 = vmatpush1.msra.mxu0 0.0
      %455 = vmatprep.mubr.f32.mxu0 0.0
      %456 = vmatmul.mubr.f32.gmra.mrb[0].mxu0 %v389
      %v457 = vpop.f32.mrb[0].mxu0
      %v458 = vadd.f32 0.0, %v457
      %v459 = vpop.f32.mrb[0].mxu0
      %460 = vdwg.mxu0
      %v461 = vadd.f32 %v386, %v458
      %v462 = vxor.u32 %v461, 2147483648
      %v463 = vmul.f32 %v462, 1.442695
      %v464 = vpow.pop %v463
      %v465 = vadd.f32 %v464, 1.0
      %v466 = vrcp.pop %v465
      %v467 = vmul.f32 1.0, %v466
      %v468 = vtanh.pop %v461
      %v469 = vld [vmem:[#allocation3] sm:$0x3]
      %471 = vrot.lane.b32.xlu0 %v469, 16
      %v472 = vpop.permute.xlu0 %471
      %v474 = vmul.f32 %v467, %v472
      %476 = vrot.lane.b32.xlu0 %v468, 96
      %v477 = vpop.permute.xlu0 %476
      %v479 = vmul.f32 %v467, %v477
      %481 = vrot.lane.b32.xlu0 %v479, 16
      %v482 = vpop.permute.xlu0 %481
      %v484 = vadd.f32 %v474, %v482
      %v485 = vtanh.pop %v484
      %487 = vrot.lane.b32.xlu0 %v485, 32
      %v488 = vpop.permute.xlu0 %487
      %v490 = vmul.f32 %v467, %v488
      %492 = vrot.lane.b32.xlu0 %v484, 112
      %v493 = vpop.permute.xlu0 %492
      %495 = vst.msk [vmem:[#allocation3] sm:$0x3] %vm373, %v493
      %497 = vrot.lane.b32.xlu0 %v490, 80
      %v498 = vpop.permute.xlu0 %497
      %500 = vst.msk [vmem:[#allocation2] sm:$0x3] %vm373, %v498
      %s501 = scalar_lea.vmem %s245, %s384
      %502 = vst.msk [vmem:[%s501] sm:$0x3] %vm373, %v498
      %s503 = smul.u32 %s17, 3
      %s504 = sadd.s32 %s503, 2
      %s505 = smul.u32 %s504, 2
      %s506 = scalar_lea.vmem %s222, %s505
      %v507 = vld [vmem:[%s506] sm:$0x3]
      %v508 = vld [vmem:[#allocation2] sm:$0x3]
      %v510 = vsel %vm265, %v508, 0
      %512 = vmatprep.subr.mxu0 0.0
      %513 = vmatpush1.msra.mxu0 %v258
      %514 = vmatprep.subr.mxu0 0.0
      %515 = vmatpush1.msra.mxu0 %v259
      %516 = vmatprep.subr.mxu0 0.0
      %517 = vmatpush1.msra.mxu0 0.0
      %518 = vmatprep.subr.mxu0 0.0
      %519 = vmatpush1.msra.mxu0 0.0
      %520 = vmatprep.subr.mxu0 0.0
      %521 = vmatpush1.msra.mxu0 0.0
      %522 = vmatprep.subr.mxu0 0.0
      %523 = vmatpush1.msra.mxu0 0.0
      %524 = vmatprep.subr.mxu0 0.0
      %525 = vmatpush1.msra.mxu0 0.0
      %526 = vmatprep.subr.mxu0 0.0
      %527 = vmatpush1.msra.mxu0 0.0
      %528 = vmatprep.subr.mxu0 0.0
      %529 = vmatpush1.msra.mxu0 0.0
      %530 = vmatprep.subr.mxu0 0.0
      %531 = vmatpush1.msra.mxu0 0.0
      %532 = vmatprep.subr.mxu0 0.0
      %533 = vmatpush1.msra.mxu0 0.0
      %534 = vmatprep.subr.mxu0 0.0
      %535 = vmatpush1.msra.mxu0 0.0
      %536 = vmatprep.subr.mxu0 0.0
      %537 = vmatpush1.msra.mxu0 0.0
      %538 = vmatprep.subr.mxu0 0.0
      %539 = vmatpush1.msra.mxu0 0.0
      %540 = vmatprep.subr.mxu0 0.0
      %541 = vmatpush1.msra.mxu0 0.0
      %542 = vmatprep.subr.mxu0 0.0
      %543 = vmatpush1.msra.mxu0 0.0
      %544 = vmatprep.subr.mxu0 0.0
      %545 = vmatpush1.msra.mxu0 0.0
      %546 = vmatprep.subr.mxu0 0.0
      %547 = vmatpush1.msra.mxu0 0.0
      %548 = vmatprep.subr.mxu0 0.0
      %549 = vmatpush1.msra.mxu0 0.0
      %550 = vmatprep.subr.mxu0 0.0
      %551 = vmatpush1.msra.mxu0 0.0
      %552 = vmatprep.subr.mxu0 0.0
      %553 = vmatpush1.msra.mxu0 0.0
      %554 = vmatprep.subr.mxu0 0.0
      %555 = vmatpush1.msra.mxu0 0.0
      %556 = vmatprep.subr.mxu0 0.0
      %557 = vmatpush1.msra.mxu0 0.0
      %558 = vmatprep.subr.mxu0 0.0
      %559 = vmatpush1.msra.mxu0 0.0
      %560 = vmatprep.subr.mxu0 0.0
      %561 = vmatpush1.msra.mxu0 0.0
      %562 = vmatprep.subr.mxu0 0.0
      %563 = vmatpush1.msra.mxu0 0.0
      %564 = vmatprep.subr.mxu0 0.0
      %565 = vmatpush1.msra.mxu0 0.0
      %566 = vmatprep.subr.mxu0 0.0
      %567 = vmatpush1.msra.mxu0 0.0
      %568 = vmatprep.subr.mxu0 0.0
      %569 = vmatpush1.msra.mxu0 0.0
      %570 = vmatprep.subr.mxu0 0.0
      %571 = vmatpush1.msra.mxu0 0.0
      %572 = vmatprep.subr.mxu0 0.0
      %573 = vmatpush1.msra.mxu0 0.0
      %574 = vmatprep.subr.mxu0 0.0
      %575 = vmatpush1.msra.mxu0 0.0
      %576 = vmatprep.mubr.f32.mxu0 0.0
      %577 = vmatmul.mubr.f32.gmra.mrb[0].mxu0 %v510
      %v578 = vpop.f32.mrb[0].mxu0
      %v579 = vadd.f32 0.0, %v578
      %v580 = vpop.f32.mrb[0].mxu0
      %581 = vdwg.mxu0
      %v582 = vadd.f32 %v507, %v579
      %v583 = vxor.u32 %v582, 2147483648
      %v584 = vmul.f32 %v583, 1.442695
      %v585 = vpow.pop %v584
      %v586 = vadd.f32 %v585, 1.0
      %v587 = vrcp.pop %v586
      %v588 = vmul.f32 1.0, %v587
      %v589 = vtanh.pop %v582
      %v590 = vld [vmem:[#allocation3] sm:$0x3]
      %592 = vrot.lane.b32.xlu0 %v590, 16
      %v593 = vpop.permute.xlu0 %592
      %v595 = vmul.f32 %v588, %v593
      %597 = vrot.lane.b32.xlu0 %v589, 96
      %v598 = vpop.permute.xlu0 %597
      %v600 = vmul.f32 %v588, %v598
      %602 = vrot.lane.b32.xlu0 %v600, 16
      %v603 = vpop.permute.xlu0 %602
      %v605 = vadd.f32 %v595, %v603
      %v606 = vtanh.pop %v605
      %608 = vrot.lane.b32.xlu0 %v606, 32
      %v609 = vpop.permute.xlu0 %608
      %v611 = vmul.f32 %v588, %v609
      %613 = vrot.lane.b32.xlu0 %v605, 112
      %v614 = vpop.permute.xlu0 %613
      %616 = vst.msk [vmem:[#allocation3] sm:$0x3] %vm373, %v614
      %618 = vrot.lane.b32.xlu0 %v611, 80
      %v619 = vpop.permute.xlu0 %618
      %621 = vst.msk [vmem:[#allocation2] sm:$0x3] %vm373, %v619
      %s622 = scalar_lea.vmem %s245, %s505
      %623 = vst.msk [vmem:[%s622] sm:$0x3] %vm373, %v619
      %s624 = sadd.s32 %s17, 3
      %s625 = smul.u32 %s624, 2
      %s626 = scalar_lea.vmem %s222, %s625
      %v627 = vld [vmem:[%s626] sm:$0x3]
      %v628 = vld [vmem:[#allocation2] sm:$0x3]
      %v630 = vsel %vm265, %v628, 0
      %632 = vmatprep.subr.mxu0 0.0
      %633 = vmatpush1.msra.mxu0 %v258
      %634 = vmatprep.subr.mxu0 0.0
      %635 = vmatpush1.msra.mxu0 %v259
      %636 = vmatprep.subr.mxu0 0.0
      %637 = vmatpush1.msra.mxu0 0.0
      %638 = vmatprep.subr.mxu0 0.0
      %639 = vmatpush1.msra.mxu0 0.0
      %640 = vmatprep.subr.mxu0 0.0
      %641 = vmatpush1.msra.mxu0 0.0
      %642 = vmatprep.subr.mxu0 0.0
      %643 = vmatpush1.msra.mxu0 0.0
      %644 = vmatprep.subr.mxu0 0.0
      %645 = vmatpush1.msra.mxu0 0.0
      %646 = vmatprep.subr.mxu0 0.0
      %647 = vmatpush1.msra.mxu0 0.0
      %648 = vmatprep.subr.mxu0 0.0
      %649 = vmatpush1.msra.mxu0 0.0
      %650 = vmatprep.subr.mxu0 0.0
      %651 = vmatpush1.msra.mxu0 0.0
      %652 = vmatprep.subr.mxu0 0.0
      %653 = vmatpush1.msra.mxu0 0.0
      %654 = vmatprep.subr.mxu0 0.0
      %655 = vmatpush1.msra.mxu0 0.0
      %656 = vmatprep.subr.mxu0 0.0
      %657 = vmatpush1.msra.mxu0 0.0
      %658 = vmatprep.subr.mxu0 0.0
      %659 = vmatpush1.msra.mxu0 0.0
      %660 = vmatprep.subr.mxu0 0.0
      %661 = vmatpush1.msra.mxu0 0.0
      %662 = vmatprep.subr.mxu0 0.0
      %663 = vmatpush1.msra.mxu0 0.0
      %664 = vmatprep.subr.mxu0 0.0
      %665 = vmatpush1.msra.mxu0 0.0
      %666 = vmatprep.subr.mxu0 0.0
      %667 = vmatpush1.msra.mxu0 0.0
      %668 = vmatprep.subr.mxu0 0.0
      %669 = vmatpush1.msra.mxu0 0.0
      %670 = vmatprep.subr.mxu0 0.0
      %671 = vmatpush1.msra.mxu0 0.0
      %672 = vmatprep.subr.mxu0 0.0
      %673 = vmatpush1.msra.mxu0 0.0
      %674 = vmatprep.subr.mxu0 0.0
      %675 = vmatpush1.msra.mxu0 0.0
      %676 = vmatprep.subr.mxu0 0.0
      %677 = vmatpush1.msra.mxu0 0.0
      %678 = vmatprep.subr.mxu0 0.0
      %679 = vmatpush1.msra.mxu0 0.0
      %680 = vmatprep.subr.mxu0 0.0
      %681 = vmatpush1.msra.mxu0 0.0
      %682 = vmatprep.subr.mxu0 0.0
      %683 = vmatpush1.msra.mxu0 0.0
      %684 = vmatprep.subr.mxu0 0.0
      %685 = vmatpush1.msra.mxu0 0.0
      %686 = vmatprep.subr.mxu0 0.0
      %687 = vmatpush1.msra.mxu0 0.0
      %688 = vmatprep.subr.mxu0 0.0
      %689 = vmatpush1.msra.mxu0 0.0
      %690 = vmatprep.subr.mxu0 0.0
      %691 = vmatpush1.msra.mxu0 0.0
      %692 = vmatprep.subr.mxu0 0.0
      %693 = vmatpush1.msra.mxu0 0.0
      %694 = vmatprep.subr.mxu0 0.0
      %695 = vmatpush1.msra.mxu0 0.0
      %696 = vmatprep.mubr.f32.mxu0 0.0
      %697 = vmatmul.mubr.f32.gmra.mrb[0].mxu0 %v630
      %v698 = vpop.f32.mrb[0].mxu0
      %v699 = vadd.f32 0.0, %v698
      %v700 = vpop.f32.mrb[0].mxu0
      %701 = vdwg.mxu0
      %v702 = vadd.f32 %v627, %v699
      %v703 = vxor.u32 %v702, 2147483648
      %v704 = vmul.f32 %v703, 1.442695
      %v705 = vpow.pop %v704
      %v706 = vadd.f32 %v705, 1.0
      %v707 = vrcp.pop %v706
      %v708 = vmul.f32 1.0, %v707
      %v709 = vtanh.pop %v702
      %v710 = vld [vmem:[#allocation3] sm:$0x3]
      %712 = vrot.lane.b32.xlu0 %v710, 16
      %v713 = vpop.permute.xlu0 %712
      %v715 = vmul.f32 %v708, %v713
      %717 = vrot.lane.b32.xlu0 %v709, 96
      %v718 = vpop.permute.xlu0 %717
      %v720 = vmul.f32 %v708, %v718
      %722 = vrot.lane.b32.xlu0 %v720, 16
      %v723 = vpop.permute.xlu0 %722
      %v725 = vadd.f32 %v715, %v723
      %v726 = vtanh.pop %v725
      %728 = vrot.lane.b32.xlu0 %v726, 32
      %v729 = vpop.permute.xlu0 %728
      %v731 = vmul.f32 %v708, %v729
      %733 = vrot.lane.b32.xlu0 %v725, 112
      %v734 = vpop.permute.xlu0 %733
      %736 = vst.msk [vmem:[#allocation3] sm:$0x3] %vm373, %v734
      %738 = vrot.lane.b32.xlu0 %v731, 80
      %v739 = vpop.permute.xlu0 %738
      %741 = vst.msk [vmem:[#allocation2] sm:$0x3] %vm373, %v739
      %s742 = scalar_lea.vmem %s245, %s625
      %743 = vst.msk [vmem:[%s742] sm:$0x3] %vm373, %v739
      %s744 = ssub.s32 4, %s17
      %s745 = smul.u32 %s744, 2
      %s746 = scalar_lea.vmem %s222, %s745
      %v747 = vld [vmem:[%s746] sm:$0x3]
      %v748 = vld [vmem:[#allocation2] sm:$0x3]
      %v750 = vsel %vm265, %v748, 0
      %752 = vmatprep.subr.mxu0 0.0
      %753 = vmatpush1.msra.mxu0 %v258
      %754 = vmatprep.subr.mxu0 0.0
      %755 = vmatpush1.msra.mxu0 %v259
      %756 = vmatprep.subr.mxu0 0.0
      %757 = vmatpush1.msra.mxu0 0.0
      %758 = vmatprep.subr.mxu0 0.0
      %759 = vmatpush1.msra.mxu0 0.0
      %760 = vmatprep.subr.mxu0 0.0
      %761 = vmatpush1.msra.mxu0 0.0
      %762 = vmatprep.subr.mxu0 0.0
      %763 = vmatpush1.msra.mxu0 0.0
      %764 = vmatprep.subr.mxu0 0.0
      %765 = vmatpush1.msra.mxu0 0.0
      %766 = vmatprep.subr.mxu0 0.0
      %767 = vmatpush1.msra.mxu0 0.0
      %768 = vmatprep.subr.mxu0 0.0
      %769 = vmatpush1.msra.mxu0 0.0
      %770 = vmatprep.subr.mxu0 0.0
      %771 = vmatpush1.msra.mxu0 0.0
      %772 = vmatprep.subr.mxu0 0.0
      %773 = vmatpush1.msra.mxu0 0.0
      %774 = vmatprep.subr.mxu0 0.0
      %775 = vmatpush1.msra.mxu0 0.0
      %776 = vmatprep.subr.mxu0 0.0
      %777 = vmatpush1.msra.mxu0 0.0
      %778 = vmatprep.subr.mxu0 0.0
      %779 = vmatpush1.msra.mxu0 0.0
      %780 = vmatprep.subr.mxu0 0.0
      %781 = vmatpush1.msra.mxu0 0.0
      %782 = vmatprep.subr.mxu0 0.0
      %783 = vmatpush1.msra.mxu0 0.0
      %784 = vmatprep.subr.mxu0 0.0
      %785 = vmatpush1.msra.mxu0 0.0
      %786 = vmatprep.subr.mxu0 0.0
      %787 = vmatpush1.msra.mxu0 0.0
      %788 = vmatprep.subr.mxu0 0.0
      %789 = vmatpush1.msra.mxu0 0.0
      %790 = vmatprep.subr.mxu0 0.0
      %791 = vmatpush1.msra.mxu0 0.0
      %792 = vmatprep.subr.mxu0 0.0
      %793 = vmatpush1.msra.mxu0 0.0
      %794 = vmatprep.subr.mxu0 0.0
      %795 = vmatpush1.msra.mxu0 0.0
      %796 = vmatprep.subr.mxu0 0.0
      %797 = vmatpush1.msra.mxu0 0.0
      %798 = vmatprep.subr.mxu0 0.0
      %799 = vmatpush1.msra.mxu0 0.0
      %800 = vmatprep.subr.mxu0 0.0
      %801 = vmatpush1.msra.mxu0 0.0
      %802 = vmatprep.subr.mxu0 0.0
      %803 = vmatpush1.msra.mxu0 0.0
      %804 = vmatprep.subr.mxu0 0.0
      %805 = vmatpush1.msra.mxu0 0.0
      %806 = vmatprep.subr.mxu0 0.0
      %807 = vmatpush1.msra.mxu0 0.0
      %808 = vmatprep.subr.mxu0 0.0
      %809 = vmatpush1.msra.mxu0 0.0
      %810 = vmatprep.subr.mxu0 0.0
      %811 = vmatpush1.msra.mxu0 0.0
      %812 = vmatprep.subr.mxu0 0.0
      %813 = vmatpush1.msra.mxu0 0.0
      %814 = vmatprep.subr.mxu0 0.0
      %815 = vmatpush1.msra.mxu0 0.0
      %816 = vmatprep.mubr.f32.mxu0 0.0
      %817 = vmatmul.mubr.f32.gmra.mrb[0].mxu0 %v750
      %v818 = vpop.f32.mrb[0].mxu0
      %v819 = vadd.f32 0.0, %v818
      %v820 = vpop.f32.mrb[0].mxu0
      %821 = vdwg.mxu0
      %v822 = vadd.f32 %v747, %v819
      %v823 = vxor.u32 %v822, 2147483648
      %v824 = vmul.f32 %v823, 1.442695
      %v825 = vpow.pop %v824
      %v826 = vadd.f32 %v825, 1.0
      %v827 = vrcp.pop %v826
      %v828 = vmul.f32 1.0, %v827
      %v829 = vtanh.pop %v822
      %v830 = vld [vmem:[#allocation3] sm:$0x3]
      %832 = vrot.lane.b32.xlu0 %v830, 16
      %v833 = vpop.permute.xlu0 %832
      %v835 = vmul.f32 %v828, %v833
      %837 = vrot.lane.b32.xlu0 %v829, 96
      %v838 = vpop.permute.xlu0 %837
      %v840 = vmul.f32 %v828, %v838
      %842 = vrot.lane.b32.xlu0 %v840, 16
      %v843 = vpop.permute.xlu0 %842
      %v845 = vadd.f32 %v835, %v843
      %v846 = vtanh.pop %v845
      %848 = vrot.lane.b32.xlu0 %v846, 32
      %v849 = vpop.permute.xlu0 %848
      %v851 = vmul.f32 %v828, %v849
      %853 = vrot.lane.b32.xlu0 %v845, 112
      %v854 = vpop.permute.xlu0 %853
      %856 = vst.msk [vmem:[#allocation3] sm:$0x3] %vm373, %v854
      %858 = vrot.lane.b32.xlu0 %v851, 80
      %v859 = vpop.permute.xlu0 %858
      %861 = vst.msk [vmem:[#allocation2] sm:$0x3] %vm373, %v859
      %s862 = scalar_lea.vmem %s245, %s745
      %863 = vst.msk [vmem:[%s862] sm:$0x3] %vm373, %v859
      %s864 = smul.u32 %s17, 4294967293
      %s865 = sadd.s32 %s864, 5
      %s866 = smul.u32 %s865, 2
      %s867 = scalar_lea.vmem %s222, %s866
      %v868 = vld [vmem:[%s867] sm:$0x3]
      %v869 = vld [vmem:[#allocation2] sm:$0x3]
      %v871 = vsel %vm265, %v869, 0
      %873 = vmatprep.subr.mxu0 0.0
      %874 = vmatpush1.msra.mxu0 %v258
      %875 = vmatprep.subr.mxu0 0.0
      %876 = vmatpush1.msra.mxu0 %v259
      %877 = vmatprep.subr.mxu0 0.0
      %878 = vmatpush1.msra.mxu0 0.0
      %879 = vmatprep.subr.mxu0 0.0
      %880 = vmatpush1.msra.mxu0 0.0
      %881 = vmatprep.subr.mxu0 0.0
      %882 = vmatpush1.msra.mxu0 0.0
      %883 = vmatprep.subr.mxu0 0.0
      %884 = vmatpush1.msra.mxu0 0.0
      %885 = vmatprep.subr.mxu0 0.0
      %886 = vmatpush1.msra.mxu0 0.0
      %887 = vmatprep.subr.mxu0 0.0
      %888 = vmatpush1.msra.mxu0 0.0
      %889 = vmatprep.subr.mxu0 0.0
      %890 = vmatpush1.msra.mxu0 0.0
      %891 = vmatprep.subr.mxu0 0.0
      %892 = vmatpush1.msra.mxu0 0.0
      %893 = vmatprep.subr.mxu0 0.0
      %894 = vmatpush1.msra.mxu0 0.0
      %895 = vmatprep.subr.mxu0 0.0
      %896 = vmatpush1.msra.mxu0 0.0
      %897 = vmatprep.subr.mxu0 0.0
      %898 = vmatpush1.msra.mxu0 0.0
      %899 = vmatprep.subr.mxu0 0.0
      %900 = vmatpush1.msra.mxu0 0.0
      %901 = vmatprep.subr.mxu0 0.0
      %902 = vmatpush1.msra.mxu0 0.0
      %903 = vmatprep.subr.mxu0 0.0
      %904 = vmatpush1.msra.mxu0 0.0
      %905 = vmatprep.subr.mxu0 0.0
      %906 = vmatpush1.msra.mxu0 0.0
      %907 = vmatprep.subr.mxu0 0.0
      %908 = vmatpush1.msra.mxu0 0.0
      %909 = vmatprep.subr.mxu0 0.0
      %910 = vmatpush1.msra.mxu0 0.0
      %911 = vmatprep.subr.mxu0 0.0
      %912 = vmatpush1.msra.mxu0 0.0
      %913 = vmatprep.subr.mxu0 0.0
      %914 = vmatpush1.msra.mxu0 0.0
      %915 = vmatprep.subr.mxu0 0.0
      %916 = vmatpush1.msra.mxu0 0.0
      %917 = vmatprep.subr.mxu0 0.0
      %918 = vmatpush1.msra.mxu0 0.0
      %919 = vmatprep.subr.mxu0 0.0
      %920 = vmatpush1.msra.mxu0 0.0
      %921 = vmatprep.subr.mxu0 0.0
      %922 = vmatpush1.msra.mxu0 0.0
      %923 = vmatprep.subr.mxu0 0.0
      %924 = vmatpush1.msra.mxu0 0.0
      %925 = vmatprep.subr.mxu0 0.0
      %926 = vmatpush1.msra.mxu0 0.0
      %927 = vmatprep.subr.mxu0 0.0
      %928 = vmatpush1.msra.mxu0 0.0
      %929 = vmatprep.subr.mxu0 0.0
      %930 = vmatpush1.msra.mxu0 0.0
      %931 = vmatprep.subr.mxu0 0.0
      %932 = vmatpush1.msra.mxu0 0.0
      %933 = vmatprep.subr.mxu0 0.0
      %934 = vmatpush1.msra.mxu0 0.0
      %935 = vmatprep.subr.mxu0 0.0
      %936 = vmatpush1.msra.mxu0 0.0
      %937 = vmatprep.mubr.f32.mxu0 0.0
      %938 = vmatmul.mubr.f32.gmra.mrb[0].mxu0 %v871
      %v939 = vpop.f32.mrb[0].mxu0
      %v940 = vadd.f32 0.0, %v939
      %v941 = vpop.f32.mrb[0].mxu0
      %942 = vdwg.mxu0
      %v943 = vadd.f32 %v868, %v940
      %v944 = vxor.u32 %v943, 2147483648
      %v945 = vmul.f32 %v944, 1.442695
      %v946 = vpow.pop %v945
      %v947 = vadd.f32 %v946, 1.0
      %v948 = vrcp.pop %v947
      %v949 = vmul.f32 1.0, %v948
      %v950 = vtanh.pop %v943
      %v951 = vld [vmem:[#allocation3] sm:$0x3]
      %953 = vrot.lane.b32.xlu0 %v951, 16
      %v954 = vpop.permute.xlu0 %953
      %v956 = vmul.f32 %v949, %v954
      %958 = vrot.lane.b32.xlu0 %v950, 96
      %v959 = vpop.permute.xlu0 %958
      %v961 = vmul.f32 %v949, %v959
      %963 = vrot.lane.b32.xlu0 %v961, 16
      %v964 = vpop.permute.xlu0 %963
      %v966 = vadd.f32 %v956, %v964
      %v967 = vtanh.pop %v966
      %969 = vrot.lane.b32.xlu0 %v967, 32
      %v970 = vpop.permute.xlu0 %969
      %v972 = vmul.f32 %v949, %v970
      %974 = vrot.lane.b32.xlu0 %v966, 112
      %v975 = vpop.permute.xlu0 %974
      %977 = vst.msk [vmem:[#allocation3] sm:$0x3] %vm373, %v975
      %979 = vrot.lane.b32.xlu0 %v972, 80
      %v980 = vpop.permute.xlu0 %979
      %982 = vst.msk [vmem:[#allocation2] sm:$0x3] %vm373, %v980
      %s983 = scalar_lea.vmem %s245, %s866
      %984 = vst.msk [vmem:[%s983] sm:$0x3] %vm373, %v980
      %s985 = smul.u32 %s17, 4294967291
      %s986 = sadd.s32 %s985, 6
      %s987 = smul.u32 %s986, 2
      %s988 = scalar_lea.vmem %s222, %s987
      %v989 = vld [vmem:[%s988] sm:$0x3]
      %v990 = vld [vmem:[#allocation2] sm:$0x3]
      %v992 = vsel %vm265, %v990, 0
      %994 = vmatprep.subr.mxu0 0.0
      %995 = vmatpush1.msra.mxu0 %v258
      %996 = vmatprep.subr.mxu0 0.0
      %997 = vmatpush1.msra.mxu0 %v259
      %998 = vmatprep.subr.mxu0 0.0
      %999 = vmatpush1.msra.mxu0 0.0
      %1000 = vmatprep.subr.mxu0 0.0
      %1001 = vmatpush1.msra.mxu0 0.0
      %1002 = vmatprep.subr.mxu0 0.0
      %1003 = vmatpush1.msra.mxu0 0.0
      %1004 = vmatprep.subr.mxu0 0.0
      %1005 = vmatpush1.msra.mxu0 0.0
      %1006 = vmatprep.subr.mxu0 0.0
      %1007 = vmatpush1.msra.mxu0 0.0
      %1008 = vmatprep.subr.mxu0 0.0
      %1009 = vmatpush1.msra.mxu0 0.0
      %1010 = vmatprep.subr.mxu0 0.0
      %1011 = vmatpush1.msra.mxu0 0.0
      %1012 = vmatprep.subr.mxu0 0.0
      %1013 = vmatpush1.msra.mxu0 0.0
      %1014 = vmatprep.subr.mxu0 0.0
      %1015 = vmatpush1.msra.mxu0 0.0
      %1016 = vmatprep.subr.mxu0 0.0
      %1017 = vmatpush1.msra.mxu0 0.0
      %1018 = vmatprep.subr.mxu0 0.0
      %1019 = vmatpush1.msra.mxu0 0.0
      %1020 = vmatprep.subr.mxu0 0.0
      %1021 = vmatpush1.msra.mxu0 0.0
      %1022 = vmatprep.subr.mxu0 0.0
      %1023 = vmatpush1.msra.mxu0 0.0
      %1024 = vmatprep.subr.mxu0 0.0
      %1025 = vmatpush1.msra.mxu0 0.0
      %1026 = vmatprep.subr.mxu0 0.0
      %1027 = vmatpush1.msra.mxu0 0.0
      %1028 = vmatprep.subr.mxu0 0.0
      %1029 = vmatpush1.msra.mxu0 0.0
      %1030 = vmatprep.subr.mxu0 0.0
      %1031 = vmatpush1.msra.mxu0 0.0
      %1032 = vmatprep.subr.mxu0 0.0
      %1033 = vmatpush1.msra.mxu0 0.0
      %1034 = vmatprep.subr.mxu0 0.0
      %1035 = vmatpush1.msra.mxu0 0.0
      %1036 = vmatprep.subr.mxu0 0.0
      %1037 = vmatpush1.msra.mxu0 0.0
      %1038 = vmatprep.subr.mxu0 0.0
      %1039 = vmatpush1.msra.mxu0 0.0
      %1040 = vmatprep.subr.mxu0 0.0
      %1041 = vmatpush1.msra.mxu0 0.0
      %1042 = vmatprep.subr.mxu0 0.0
      %1043 = vmatpush1.msra.mxu0 0.0
      %1044 = vmatprep.subr.mxu0 0.0
      %1045 = vmatpush1.msra.mxu0 0.0
      %1046 = vmatprep.subr.mxu0 0.0
      %1047 = vmatpush1.msra.mxu0 0.0
      %1048 = vmatprep.subr.mxu0 0.0
      %1049 = vmatpush1.msra.mxu0 0.0
      %1050 = vmatprep.subr.mxu0 0.0
      %1051 = vmatpush1.msra.mxu0 0.0
      %1052 = vmatprep.subr.mxu0 0.0
      %1053 = vmatpush1.msra.mxu0 0.0
      %1054 = vmatprep.subr.mxu0 0.0
      %1055 = vmatpush1.msra.mxu0 0.0
      %1056 = vmatprep.subr.mxu0 0.0
      %1057 = vmatpush1.msra.mxu0 0.0
      %1058 = vmatprep.mubr.f32.mxu0 0.0
      %1059 = vmatmul.mubr.f32.gmra.mrb[0].mxu0 %v992
      %v1060 = vpop.f32.mrb[0].mxu0
      %v1061 = vadd.f32 0.0, %v1060
      %v1062 = vpop.f32.mrb[0].mxu0
      %1063 = vdwg.mxu0
      %v1064 = vadd.f32 %v989, %v1061
      %v1065 = vxor.u32 %v1064, 2147483648
      %v1066 = vmul.f32 %v1065, 1.442695
      %v1067 = vpow.pop %v1066
      %v1068 = vadd.f32 %v1067, 1.0
      %v1069 = vrcp.pop %v1068
      %v1070 = vmul.f32 1.0, %v1069
      %v1071 = vtanh.pop %v1064
      %v1072 = vld [vmem:[#allocation3] sm:$0x3]
      %1074 = vrot.lane.b32.xlu0 %v1072, 16
      %v1075 = vpop.permute.xlu0 %1074
      %v1077 = vmul.f32 %v1070, %v1075
      %1079 = vrot.lane.b32.xlu0 %v1071, 96
      %v1080 = vpop.permute.xlu0 %1079
      %v1082 = vmul.f32 %v1070, %v1080
      %1084 = vrot.lane.b32.xlu0 %v1082, 16
      %v1085 = vpop.permute.xlu0 %1084
      %v1087 = vadd.f32 %v1077, %v1085
      %v1088 = vtanh.pop %v1087
      %1090 = vrot.lane.b32.xlu0 %v1088, 32
      %v1091 = vpop.permute.xlu0 %1090
      %v1093 = vmul.f32 %v1070, %v1091
      %1095 = vrot.lane.b32.xlu0 %v1087, 112
      %v1096 = vpop.permute.xlu0 %1095
      %1098 = vst.msk [vmem:[#allocation3] sm:$0x3] %vm373, %v1096
      %1100 = vrot.lane.b32.xlu0 %v1093, 80
      %v1101 = vpop.permute.xlu0 %1100
      %1103 = vst.msk [vmem:[#allocation2] sm:$0x3] %vm373, %v1101
      %s1104 = scalar_lea.vmem %s245, %s987
      %1105 = vst.msk [vmem:[%s1104] sm:$0x3] %vm373, %v1101
      %s1106 = smul.u32 %s17, 4294967289
      %s1107 = sadd.s32 %s1106, 7
      %s1108 = smul.u32 %s1107, 2
      %s1109 = scalar_lea.vmem %s222, %s1108
      %v1110 = vld [vmem:[%s1109] sm:$0x3]
      %v1111 = vld [vmem:[#allocation2] sm:$0x3]
      %v1113 = vsel %vm265, %v1111, 0
      %1115 = vmatprep.subr.mxu0 0.0
      %1116 = vmatpush1.msra.mxu0 %v258
      %1117 = vmatprep.subr.mxu0 0.0
      %1118 = vmatpush1.msra.mxu0 %v259
      %1119 = vmatprep.subr.mxu0 0.0
      %1120 = vmatpush1.msra.mxu0 0.0
      %1121 = vmatprep.subr.mxu0 0.0
      %1122 = vmatpush1.msra.mxu0 0.0
      %1123 = vmatprep.subr.mxu0 0.0
      %1124 = vmatpush1.msra.mxu0 0.0
      %1125 = vmatprep.subr.mxu0 0.0
      %1126 = vmatpush1.msra.mxu0 0.0
      %1127 = vmatprep.subr.mxu0 0.0
      %1128 = vmatpush1.msra.mxu0 0.0
      %1129 = vmatprep.subr.mxu0 0.0
      %1130 = vmatpush1.msra.mxu0 0.0
      %1131 = vmatprep.subr.mxu0 0.0
      %1132 = vmatpush1.msra.mxu0 0.0
      %1133 = vmatprep.subr.mxu0 0.0
      %1134 = vmatpush1.msra.mxu0 0.0
      %1135 = vmatprep.subr.mxu0 0.0
      %1136 = vmatpush1.msra.mxu0 0.0
      %1137 = vmatprep.subr.mxu0 0.0
      %1138 = vmatpush1.msra.mxu0 0.0
      %1139 = vmatprep.subr.mxu0 0.0
      %1140 = vmatpush1.msra.mxu0 0.0
      %1141 = vmatprep.subr.mxu0 0.0
      %1142 = vmatpush1.msra.mxu0 0.0
      %1143 = vmatprep.subr.mxu0 0.0
      %1144 = vmatpush1.msra.mxu0 0.0
      %1145 = vmatprep.subr.mxu0 0.0
      %1146 = vmatpush1.msra.mxu0 0.0
      %1147 = vmatprep.subr.mxu0 0.0
      %1148 = vmatpush1.msra.mxu0 0.0
      %1149 = vmatprep.subr.mxu0 0.0
      %1150 = vmatpush1.msra.mxu0 0.0
      %1151 = vmatprep.subr.mxu0 0.0
      %1152 = vmatpush1.msra.mxu0 0.0
      %1153 = vmatprep.subr.mxu0 0.0
      %1154 = vmatpush1.msra.mxu0 0.0
      %1155 = vmatprep.subr.mxu0 0.0
      %1156 = vmatpush1.msra.mxu0 0.0
      %1157 = vmatprep.subr.mxu0 0.0
      %1158 = vmatpush1.msra.mxu0 0.0
      %1159 = vmatprep.subr.mxu0 0.0
      %1160 = vmatpush1.msra.mxu0 0.0
      %1161 = vmatprep.subr.mxu0 0.0
      %1162 = vmatpush1.msra.mxu0 0.0
      %1163 = vmatprep.subr.mxu0 0.0
      %1164 = vmatpush1.msra.mxu0 0.0
      %1165 = vmatprep.subr.mxu0 0.0
      %1166 = vmatpush1.msra.mxu0 0.0
      %1167 = vmatprep.subr.mxu0 0.0
      %1168 = vmatpush1.msra.mxu0 0.0
      %1169 = vmatprep.subr.mxu0 0.0
      %1170 = vmatpush1.msra.mxu0 0.0
      %1171 = vmatprep.subr.mxu0 0.0
      %1172 = vmatpush1.msra.mxu0 0.0
      %1173 = vmatprep.subr.mxu0 0.0
      %1174 = vmatpush1.msra.mxu0 0.0
      %1175 = vmatprep.subr.mxu0 0.0
      %1176 = vmatpush1.msra.mxu0 0.0
      %1177 = vmatprep.subr.mxu0 0.0
      %1178 = vmatpush1.msra.mxu0 0.0
      %1179 = vmatprep.mubr.f32.mxu0 0.0
      %1180 = vmatmul.mubr.f32.gmra.mrb[0].mxu0 %v1113
      %v1181 = vpop.f32.mrb[0].mxu0
      %v1182 = vadd.f32 0.0, %v1181
      %v1183 = vpop.f32.mrb[0].mxu0
      %1184 = vdwg.mxu0
      %v1185 = vadd.f32 %v1110, %v1182
      %v1186 = vxor.u32 %v1185, 2147483648
      %v1187 = vmul.f32 %v1186, 1.442695
      %v1188 = vpow.pop %v1187
      %v1189 = vadd.f32 %v1188, 1.0
      %v1190 = vrcp.pop %v1189
      %v1191 = vmul.f32 1.0, %v1190
      %v1192 = vtanh.pop %v1185
      %v1193 = vld [vmem:[#allocation3] sm:$0x3]
      %1195 = vrot.lane.b32.xlu0 %v1193, 16
      %v1196 = vpop.permute.xlu0 %1195
      %v1198 = vmul.f32 %v1191, %v1196
      %1200 = vrot.lane.b32.xlu0 %v1192, 96
      %v1201 = vpop.permute.xlu0 %1200
      %v1203 = vmul.f32 %v1191, %v1201
      %1205 = vrot.lane.b32.xlu0 %v1203, 16
      %v1206 = vpop.permute.xlu0 %1205
      %v1208 = vadd.f32 %v1198, %v1206
      %v1209 = vtanh.pop %v1208
      %1211 = vrot.lane.b32.xlu0 %v1209, 32
      %v1212 = vpop.permute.xlu0 %1211
      %v1214 = vmul.f32 %v1191, %v1212
      %1216 = vrot.lane.b32.xlu0 %v1208, 112
      %v1217 = vpop.permute.xlu0 %1216
      %1219 = vst.msk [vmem:[#allocation3] sm:$0x3] %vm373, %v1217
      %1221 = vrot.lane.b32.xlu0 %v1214, 80
      %v1222 = vpop.permute.xlu0 %1221
      %1224 = vst.msk [vmem:[#allocation2] sm:$0x3] %vm373, %v1222
      %s1225 = scalar_lea.vmem %s245, %s1108
      %1226 = vst.msk [vmem:[%s1225] sm:$0x3] %vm373, %v1222
      %s1227 = smul.u32 %s18, 2
      %s1228 = ssub.s32 0, %s1227
      %s1229 = smul.u32 %s17, %s1228
      %s1230 = sadd.s32 %s18, %s1229
      %s1231 = smul.u32 8, %s1230
      %p1232 = scmp.lt.s32.totalorder %s17, 1
      %s1233 = scalar_select %p1232, %s17, 1
      %p1234 = scmp.lt.s32.totalorder %s1231, 7
      %s1235 = scalar_select %p1234, %s1231, 7
      %s1236 = smul.addr %s1233, 8
      %s1237 = sadd.s32 %s1235, %s1236
      %s1238 = smul.addr %s1237, 2
      %s1239 = scalar_lea.vmem %s2, %s1238
      // Predicated region
      $region33: #{esim_forward.7} parent=27 // pred_check
        %p1240 = pneg %p115
      $region34: #{esim_forward.7} parent=27 // pred_check_branch
        %1242 = sbr.rel (%p1240) target = $region36
      $region35: #{esim_forward.7} parent=27 // pred_region
        %s1243 = smul.u32 %s18, 2
        %s1244 = ssub.s32 0, %s1243
        %s1245 = smul.u32 %s17, %s1244
        %s1246 = sadd.s32 %s18, %s1245
        %s1247 = smul.u32 8, %s1246
      $region36: #{esim_forward.7} parent=27 // pred_fallthru
        _
    $region28: #{esim_forward.7} parent=5 // pred_fallthru
      _
    %p1248 = scmp.le.s32.totalorder 2, %s8
    // Predicated region
    $region37: #{esim_forward.7} parent=5 // pred_check
      %p1249 = pneg %p1248
    $region38: #{esim_forward.7} parent=5 // pred_check_branch
      %1251 = sbr.rel (%p1249) target = $region40
    $region39: #{esim_forward.7} parent=5 // pred_region
      %s1252 = ssub.s32 %s8, 2
      // Predicated region
      $region41: #{esim_forward.7} parent=39 // pred_check
        %p1253 = pneg %p121
      $region42: #{esim_forward.7} parent=39 // pred_check_branch
        %1255 = sbr.rel (%p1253) target = $region44
      $region43: #{esim_forward.7} parent=39 // pred_region
        %s1256 = smul.u32 %s20, 2
        %s1257 = ssub.s32 0, %s1256
        %s1258 = smul.u32 %s19, %s1257
        %s1259 = sadd.s32 %s20, %s1258
        %s1260 = smul.u32 8, %s1259
        %p1261 = scmp.lt.s32.totalorder %s19, 1
        %s1262 = scalar_select %p1261, %s19, 1
        %p1263 = scmp.lt.s32.totalorder %s1260, 7
        %s1264 = scalar_select %p1263, %s1260, 7
        %s1265 = smul.addr %s1262, 8
        %s1266 = sadd.s32 %s1264, %s1265
        %s1267 = smul.addr %s1266, 2
        %s1268 = scalar_lea.vmem %s2, %s1267
      $region44: #{esim_forward.7} parent=39 // pred_fallthru
        _
    $region40: #{esim_forward.7} parent=5 // pred_fallthru
      _
  $region6: #{esim_forward.7} parent=0 // loop_footer
    %s12 = sadd.s32 1, %s8
  $region7: #{esim_forward.7} parent=0 // loop_footer_branch
    %7 = sbr.rel target = $region3
  $region8: #{esim_forward.7} parent=0 // loop_exit
    _

// kernel: esim_forward.8
$region0: #{esim_forward.8}
  #allocation0 [shape = 'u32[]', space=smem, size = 0x4, offset = 0x4, fixed_abs, tag = 'smem constant byte address 0x4 - core index']
  #allocation1 [shape = 'u32[144,128]{1,0:T(1,128)}', space=vmem, size = 0x12000, scoped, tag = 'internal scratch']
  #allocation2 [shape = 'f32[2,16]{1,0:T(2,128)}', space=vmem, size = 0x400, scoped, tag = 'scratch operand']
  #allocation3 [shape = 'f32[2,16]{1,0:T(2,128)}', space=vmem, size = 0x400, scoped, tag = 'scratch operand']
  %s0 = inlined_call_operand.vmem [shape: f32[2,10,2,64], index: 0, kind: input, shape index: {}]
  %s1 = inlined_call_operand.vmem [shape: f32[2,16,64], index: 1, kind: input, shape index: {}]
  %s2 = inlined_call_operand.vmem [shape: f32[2,10,2,16], index: 2, kind: output, shape index: {}]
  %s3 = sld [smem:[#allocation0]]
  $region45: #{esim_forward.8} parent=0
    _
  %s5 = ssub.s32 1, %s3
  %s6 = scalar_select 0, %s5, %s3
  loop: start=0, step=1, limit=4
  $region2: #{esim_forward.8} parent=0 // loop_pre_header
    _
  $region3: #{esim_forward.8} parent=0 // loop_header
    %s8 = sphi 0, %s12
    %p9 = scmp.ge.s32.totalorder %s8, 4
    %s15 = sphi 0, %s27
    %s16 = sphi 0, %s23
    %s17 = sphi 0, %s15
    %s18 = sphi 0, %s16
    %s19 = sphi 0, %s17
    %s20 = sphi 0, %s18
    %s40 = sphi 0, %s42
    %s43 = sphi 0, %s40
    %s44 = sphi 0, %s43
    %s60 = sphi 0, %s44
    %s66 = sphi 0, %s68
    %s69 = sphi 0, %s66
    %s70 = sphi 0, %s69
    %s86 = sphi 0, %s70
    %s102 = sphi 0, %s104
    %s105 = sphi 0, %s102
    %s106 = sphi 0, %s105
    %s122 = sphi 0, %s106
  $region4: #{esim_forward.8} parent=0 // loop_header_branch
    %11 = sbr.rel (%p9) target = $region8
  $region5: #{esim_forward.8} parent=0 // loop_body
    %s13 = ssub.s32 %s8, 1
    %s14 = ssub.s32 %s8, 2
    %s21 = sadd.s32 1, %s16
    %p22 = scmp.ge.s32.totalorder %s21, 1
    %s23 = scalar_select %p22, 0, %s21
    %s24 = sadd.s32 1, %s15
    %s25 = scalar_select %p22, %s24, %s15
    %p26 = scmp.ge.s32.totalorder %s25, 2
    %s27 = scalar_select %p26, 0, %s25
    %s28 = smul.u32 %s16, 2
    %s29 = ssub.s32 0, %s28
    %s30 = smul.u32 %s15, %s29
    %s31 = sadd.s32 %s16, %s30
    %s32 = smul.u32 %s23, 2
    %s33 = ssub.s32 0, %s32
    %s34 = smul.u32 %s27, %s33
    %s35 = sadd.s32 %s23, %s34
    %s36 = ssub.s32 %s15, %s27
    %s37 = ssub.s32 %s31, %s35
    %s38 = sor.u32 %s36, %s37
    %p39 = scmp.eq.s32.totalorder %s38, 0
    %s41 = sadd.s32 %s40, 1
    %s42 = scalar_select %p39, %s40, %s41
    %p45 = pneg %p39
    %p46 = scmp.eq.s32.totalorder %s8, 1
    %p47 = por %p45, %p46
    %p48 = scmp.ne.s32.totalorder %s40, %s43
    %p49 = scmp.eq.s32.totalorder %s8, 0
    %p50 = por %p48, %p49
    %p51 = scmp.ne.s32.totalorder %s40, %s43
    %p52 = scmp.eq.s32.totalorder %s13, 1
    %p53 = por %p51, %p52
    %p54 = scmp.ne.s32.totalorder %s43, %s44
    %p55 = scmp.eq.s32.totalorder %s13, 0
    %p56 = por %p54, %p55
    %p57 = scmp.ne.s32.totalorder %s43, %s44
    %p58 = scmp.eq.s32.totalorder %s14, 1
    %p59 = por %p57, %p58
    %p61 = scmp.ne.s32.totalorder %s44, %s60
    %p62 = scmp.eq.s32.totalorder %s14, 0
    %p63 = por %p61, %p62
    %s64 = ssub.s32 %s15, %s27
    %p65 = scmp.eq.s32.totalorder %s64, 0
    %s67 = sadd.s32 %s66, 1
    %s68 = scalar_select %p65, %s66, %s67
    %p71 = pneg %p65
    %p72 = scmp.eq.s32.totalorder %s8, 1
    %p73 = por %p71, %p72
    %p74 = scmp.ne.s32.totalorder %s66, %s69
    %p75 = scmp.eq.s32.totalorder %s8, 0
    %p76 = por %p74, %p75
    %p77 = scmp.ne.s32.totalorder %s66, %s69
    %p78 = scmp.eq.s32.totalorder %s13, 1
    %p79 = por %p77, %p78
    %p80 = scmp.ne.s32.totalorder %s69, %s70
    %p81 = scmp.eq.s32.totalorder %s13, 0
    %p82 = por %p80, %p81
    %p83 = scmp.ne.s32.totalorder %s69, %s70
    %p84 = scmp.eq.s32.totalorder %s14, 1
    %p85 = por %p83, %p84
    %p87 = scmp.ne.s32.totalorder %s70, %s86
    %p88 = scmp.eq.s32.totalorder %s14, 0
    %p89 = por %p87, %p88
    %s90 = smul.u32 %s16, 2
    %s91 = ssub.s32 0, %s90
    %s92 = smul.u32 %s15, %s91
    %s93 = sadd.s32 %s16, %s92
    %s94 = smul.u32 %s23, 2
    %s95 = ssub.s32 0, %s94
    %s96 = smul.u32 %s27, %s95
    %s97 = sadd.s32 %s23, %s96
    %s98 = ssub.s32 %s15, %s27
    %s99 = ssub.s32 %s93, %s97
    %s100 = sor.u32 %s98, %s99
    %p101 = scmp.eq.s32.totalorder %s100, 0
    %s103 = sadd.s32 %s102, 1
    %s104 = scalar_select %p101, %s102, %s103
    %p107 = pneg %p101
    %p108 = scmp.eq.s32.totalorder %s8, 1
    %p109 = por %p107, %p108
    %p110 = scmp.ne.s32.totalorder %s102, %s105
    %p111 = scmp.eq.s32.totalorder %s8, 0
    %p112 = por %p110, %p111
    %p113 = scmp.ne.s32.totalorder %s102, %s105
    %p114 = scmp.eq.s32.totalorder %s13, 1
    %p115 = por %p113, %p114
    %p116 = scmp.ne.s32.totalorder %s105, %s106
    %p117 = scmp.eq.s32.totalorder %s13, 0
    %p118 = por %p116, %p117
    %p119 = scmp.ne.s32.totalorder %s105, %s106
    %p120 = scmp.eq.s32.totalorder %s14, 1
    %p121 = por %p119, %p120
    %p123 = scmp.ne.s32.totalorder %s106, %s122
    %p124 = scmp.eq.s32.totalorder %s14, 0
    %p125 = por %p123, %p124
    %p126 = scmp.le.s32.totalorder 1, %s8
    %p127 = scmp.lt.s32.totalorder %s8, 3
    %p128 = pnand %p126, %p127
    %p129 = pneg %p128
    // Predicated region
    $region9: #{esim_forward.8} parent=5 // pred_check
      _
    $region10: #{esim_forward.8} parent=5 // pred_check_branch
      %131 = sbr.rel (%p128) target = $region12
    $region11: #{esim_forward.8} parent=5 // pred_region
      %s132 = ssub.s32 %s8, 1
    $region12: #{esim_forward.8} parent=5 // pred_fallthru
      _
    %p133 = scmp.lt.s32.totalorder %s8, 2
    // Predicated region
    $region13: #{esim_forward.8} parent=5 // pred_check
      %p134 = pneg %p133
    $region14: #{esim_forward.8} parent=5 // pred_check_branch
      %136 = sbr.rel (%p134) target = $region16
    $region15: #{esim_forward.8} parent=5 // pred_region
      // Predicated region
      $region17: #{esim_forward.8} parent=15 // pred_check
        %p137 = pneg %p50
      $region18: #{esim_forward.8} parent=15 // pred_check_branch
        %139 = sbr.rel (%p137) target = $region20
      $region19: #{esim_forward.8} parent=15 // pred_region
        %s140 = smul.u32 %s16, 2
        %s141 = ssub.s32 0, %s140
        %s142 = smul.u32 %s15, %s141
        %s143 = sadd.s32 %s16, %s142
        %s144 = smul.u32 10, %s143
        %p145 = scmp.lt.s32.totalorder %s15, 1
        %s146 = scalar_select %p145, %s15, 1
        %p147 = scmp.lt.s32.totalorder %s144, 9
        %s148 = scalar_select %p147, %s144, 9
        %s149 = smul.addr %s146, 10
        %s150 = sadd.s32 %s148, %s149
        %s151 = smul.addr %s150, 2
        %s152 = scalar_lea.vmem %s0, %s151
        %s153 = smul.u32 %s16, 2
        %s154 = ssub.s32 0, %s153
        %s155 = smul.u32 %s15, %s154
        %s156 = sadd.s32 %s16, %s155
        %s157 = smul.u32 10, %s156
      $region20: #{esim_forward.8} parent=15 // pred_fallthru
        _
      // Predicated region
      $region21: #{esim_forward.8} parent=15 // pred_check
        %p158 = pneg %p76
      $region22: #{esim_forward.8} parent=15 // pred_check_branch
        %160 = sbr.rel (%p158) target = $region24
      $region23: #{esim_forward.8} parent=15 // pred_region
        %p161 = scmp.lt.s32.totalorder %s15, 1
        %s162 = scalar_select %p161, %s15, 1
        %s163 = smul.addr %s162, 2
        %s164 = smul.addr %s163, 8
        %s165 = scalar_lea.vmem %s1, %s164
      $region24: #{esim_forward.8} parent=15 // pred_fallthru
        _
    $region16: #{esim_forward.8} parent=5 // pred_fallthru
      _
    %p166 = scmp.le.s32.totalorder 1, %s8
    %p167 = scmp.lt.s32.totalorder %s8, 3
    %p168 = pnand %p166, %p167
    %p169 = pneg %p168
    // Predicated region
    $region25: #{esim_forward.8} parent=5 // pred_check
      _
    $region26: #{esim_forward.8} parent=5 // pred_check_branch
      %171 = sbr.rel (%p168) target = $region28
    $region27: #{esim_forward.8} parent=5 // pred_region
      %s172 = ssub.s32 %s8, 1
      %s173 = smul.u32 %s18, 2
      %s174 = ssub.s32 0, %s173
      %s175 = smul.u32 %s17, %s174
      %s176 = sadd.s32 %s18, %s175
      %s177 = smul.u32 10, %s176
      %p178 = scmp.lt.s32.totalorder %s17, 1
      %s179 = scalar_select %p178, %s17, 1
      %p180 = scmp.lt.s32.totalorder %s177, 9
      %s181 = scalar_select %p180, %s177, 9
      %s182 = smul.addr %s179, 10
      %s183 = sadd.s32 %s181, %s182
      %s184 = smul.addr %s183, 2
      %s185 = scalar_lea.vmem %s0, %s184
      %p186 = pneg %p56
      %p187 = pneg %p53
      %p188 = scmp.lt.s32.totalorder %s17, 1
      %s189 = scalar_select %p188, %s17, 1
      %s190 = smul.addr %s189, 2
      %s191 = smul.addr %s190, 8
      %s192 = scalar_lea.vmem %s1, %s191
      %p193 = pneg %p82
      %p194 = pneg %p79
      %p195 = pneg %p118
      %p196 = pneg %p115
      %s197 = smul.u32 %s18, 2
      %s198 = ssub.s32 0, %s197
      %s199 = smul.u32 %s17, %s198
      %s200 = sadd.s32 %s18, %s199
      %s201 = smul.u32 10, %s200
      %p202 = scmp.lt.s32.totalorder %s17, 1
      %s203 = scalar_select %p202, %s17, 1
      %p204 = scmp.lt.s32.totalorder %s201, 9
      %s205 = scalar_select %p204, %s201, 9
      %s206 = smul.addr %s203, 10
      %s207 = sadd.s32 %s205, %s206
      %s208 = smul.addr %s207, 2
      %s209 = scalar_lea.vmem %s2, %s208
      %s210 = smul.u32 %s18, 2
      %s211 = ssub.s32 0, %s210
      %s212 = smul.u32 %s17, %s211
      %s213 = sadd.s32 %s18, %s212
      %s214 = smul.u32 10, %s213
      %p215 = scmp.lt.s32.totalorder %s17, 1
      %s216 = scalar_select %p215, %s17, 1
      %p217 = scmp.lt.s32.totalorder %s214, 9
      %s218 = scalar_select %p217, %s214, 9
      %s219 = smul.addr %s216, 10
      %s220 = sadd.s32 %s218, %s219
      %s221 = smul.addr %s220, 2
      %s222 = scalar_lea.vmem %s0, %s221
      %s223 = smul.u32 %s18, 2
      %s224 = ssub.s32 0, %s223
      %s225 = smul.u32 %s17, %s224
      %s226 = sadd.s32 %s18, %s225
      %s227 = smul.u32 10, %s226
      %p228 = scmp.lt.s32.totalorder %s17, 1
      %s229 = scalar_select %p228, %s17, 1
      %s230 = smul.addr %s229, 2
      %s231 = smul.addr %s230, 8
      %s232 = scalar_lea.vmem %s1, %s231
      %s233 = smul.u32 %s18, 2
      %s234 = ssub.s32 0, %s233
      %s235 = smul.u32 %s17, %s234
      %s236 = sadd.s32 %s18, %s235
      %s237 = smul.u32 10, %s236
      %p238 = scmp.lt.s32.totalorder %s17, 1
      %s239 = scalar_select %p238, %s17, 1
      %p240 = scmp.lt.s32.totalorder %s237, 9
      %s241 = scalar_select %p240, %s237, 9
      %s242 = smul.addr %s239, 10
      %s243 = sadd.s32 %s241, %s242
      %s244 = smul.addr %s243, 2
      %s245 = scalar_lea.vmem %s2, %s244
      %s246 = smul.u32 %s18, 2
      %s247 = ssub.s32 0, %s246
      %s248 = smul.u32 %s17, %s247
      %s249 = sadd.s32 %s18, %s248
      %s250 = smul.u32 10, %s249
      %p251 = scmp.eq.s32.totalorder %s18, 0
      // Predicated region
      $region29: #{esim_forward.8} parent=27 // pred_check
        %p252 = pneg %p251
      $region30: #{esim_forward.8} parent=27 // pred_check_branch
        %254 = sbr.rel (%p252) target = $region32
      $region31: #{esim_forward.8} parent=27 // pred_region
        %vm255 = vcmask 123904
        %256 = vst.msk [vmem:[#allocation2] sm:$0x3] %vm255, 0.0
        %257 = vst.msk [vmem:[#allocation3] sm:$0x3] %vm255, 0.0
      $region32: #{esim_forward.8} parent=27 // pred_fallthru
        _
      %v258 = vld [vmem:[%s232] sm:$0xff]
      %v259 = vld [vmem:[%s232 + $0x8] sm:$0xff]
      %s260 = smul.u32 %s17, 9
      %s261 = smul.u32 %s260, 2
      %s262 = scalar_lea.vmem %s222, %s261
      %v263 = vld [vmem:[%s262] sm:$0x3]
      %v264 = vld [vmem:[#allocation2] sm:$0x3]
      %vm265 = vcmask 130048
      %v267 = vsel %vm265, %v264, 0
      %269 = vmatprep.subr.mxu0 0.0
      %270 = vmatpush1.msra.mxu0 %v258
      %271 = vmatprep.subr.mxu0 0.0
      %272 = vmatpush1.msra.mxu0 %v259
      %273 = vmatprep.subr.mxu0 0.0
      %274 = vmatpush1.msra.mxu0 0.0
      %275 = vmatprep.subr.mxu0 0.0
      %276 = vmatpush1.msra.mxu0 0.0
      %277 = vmatprep.subr.mxu0 0.0
      %278 = vmatpush1.msra.mxu0 0.0
      %279 = vmatprep.subr.mxu0 0.0
      %280 = vmatpush1.msra.mxu0 0.0
      %281 = vmatprep.subr.mxu0 0.0
      %282 = vmatpush1.msra.mxu0 0.0
      %283 = vmatprep.subr.mxu0 0.0
      %284 = vmatpush1.msra.mxu0 0.0
      %285 = vmatprep.subr.mxu0 0.0
      %286 = vmatpush1.msra.mxu0 0.0
      %287 = vmatprep.subr.mxu0 0.0
      %288 = vmatpush1.msra.mxu0 0.0
      %289 = vmatprep.subr.mxu0 0.0
      %290 = vmatpush1.msra.mxu0 0.0
      %291 = vmatprep.subr.mxu0 0.0
      %292 = vmatpush1.msra.mxu0 0.0
      %293 = vmatprep.subr.mxu0 0.0
      %294 = vmatpush1.msra.mxu0 0.0
      %295 = vmatprep.subr.mxu0 0.0
      %296 = vmatpush1.msra.mxu0 0.0
      %297 = vmatprep.subr.mxu0 0.0
      %298 = vmatpush1.msra.mxu0 0.0
      %299 = vmatprep.subr.mxu0 0.0
      %300 = vmatpush1.msra.mxu0 0.0
      %301 = vmatprep.subr.mxu0 0.0
      %302 = vmatpush1.msra.mxu0 0.0
      %303 = vmatprep.subr.mxu0 0.0
      %304 = vmatpush1.msra.mxu0 0.0
      %305 = vmatprep.subr.mxu0 0.0
      %306 = vmatpush1.msra.mxu0 0.0
      %307 = vmatprep.subr.mxu0 0.0
      %308 = vmatpush1.msra.mxu0 0.0
      %309 = vmatprep.subr.mxu0 0.0
      %310 = vmatpush1.msra.mxu0 0.0
      %311 = vmatprep.subr.mxu0 0.0
      %312 = vmatpush1.msra.mxu0 0.0
      %313 = vmatprep.subr.mxu0 0.0
      %314 = vmatpush1.msra.mxu0 0.0
      %315 = vmatprep.subr.mxu0 0.0
      %316 = vmatpush1.msra.mxu0 0.0
      %317 = vmatprep.subr.mxu0 0.0
      %318 = vmatpush1.msra.mxu0 0.0
      %319 = vmatprep.subr.mxu0 0.0
      %320 = vmatpush1.msra.mxu0 0.0
      %321 = vmatprep.subr.mxu0 0.0
      %322 = vmatpush1.msra.mxu0 0.0
      %323 = vmatprep.subr.mxu0 0.0
      %324 = vmatpush1.msra.mxu0 0.0
      %325 = vmatprep.subr.mxu0 0.0
      %326 = vmatpush1.msra.mxu0 0.0
      %327 = vmatprep.subr.mxu0 0.0
      %328 = vmatpush1.msra.mxu0 0.0
      %329 = vmatprep.subr.mxu0 0.0
      %330 = vmatpush1.msra.mxu0 0.0
      %331 = vmatprep.subr.mxu0 0.0
      %332 = vmatpush1.msra.mxu0 0.0
      %333 = vmatprep.mubr.f32.mxu0 0.0
      %334 = vmatmul.mubr.f32.gmra.mrb[0].mxu0 %v267
      %v335 = vpop.f32.mrb[0].mxu0
      %v336 = vadd.f32 0.0, %v335
      %v337 = vpop.f32.mrb[0].mxu0
      %338 = vdwg.mxu0
      %v339 = vadd.f32 %v263, %v336
      %v340 = vxor.u32 %v339, 2147483648
      %v341 = vmul.f32 %v340, 1.442695
      %v342 = vpow.pop %v341
      %v343 = vadd.f32 %v342, 1.0
      %v344 = vrcp.pop %v343
      %v345 = vmul.f32 1.0, %v344
      %v346 = vtanh.pop %v339
      %v347 = vld [vmem:[#allocation3] sm:$0x3]
      %349 = vrot.lane.b32.xlu0 %v347, 16
      %v350 = vpop.permute.xlu0 %349
      %v352 = vmul.f32 %v345, %v350
      %354 = vrot.lane.b32.xlu0 %v346, 96
      %v355 = vpop.permute.xlu0 %354
      %v357 = vmul.f32 %v345, %v355
      %359 = vrot.lane.b32.xlu0 %v357, 16
      %v360 = vpop.permute.xlu0 %359
      %v362 = vadd.f32 %v352, %v360
      %v363 = vtanh.pop %v362
      %365 = vrot.lane.b32.xlu0 %v363, 32
      %v366 = vpop.permute.xlu0 %365
      %v368 = vmul.f32 %v345, %v366
      %370 = vrot.lane.b32.xlu0 %v362, 112
      %v371 = vpop.permute.xlu0 %370
      %vm373 = vcmask 123904
      %374 = vst.msk [vmem:[#allocation3] sm:$0x3] %vm373, %v371
      %376 = vrot.lane.b32.xlu0 %v368, 80
      %v377 = vpop.permute.xlu0 %376
      %379 = vst.msk [vmem:[#allocation2] sm:$0x3] %vm373, %v377
      %s380 = scalar_lea.vmem %s245, %s261
      %381 = vst.msk [vmem:[%s380] sm:$0x3] %vm373, %v377
      %s382 = smul.u32 %s17, 7
      %s383 = sadd.s32 %s382, 1
      %s384 = smul.u32 %s383, 2
      %s385 = scalar_lea.vmem %s222, %s384
      %v386 = vld [vmem:[%s385] sm:$0x3]
      %v387 = vld [vmem:[#allocation2] sm:$0x3]
      %v389 = vsel %vm265, %v387, 0
      %391 = vmatprep.subr.mxu0 0.0
      %392 = vmatpush1.msra.mxu0 %v258
      %393 = vmatprep.subr.mxu0 0.0
      %394 = vmatpush1.msra.mxu0 %v259
      %395 = vmatprep.subr.mxu0 0.0
      %396 = vmatpush1.msra.mxu0 0.0
      %397 = vmatprep.subr.mxu0 0.0
      %398 = vmatpush1.msra.mxu0 0.0
      %399 = vmatprep.subr.mxu0 0.0
      %400 = vmatpush1.msra.mxu0 0.0
      %401 = vmatprep.subr.mxu0 0.0
      %402 = vmatpush1.msra.mxu0 0.0
      %403 = vmatprep.subr.mxu0 0.0
      %404 = vmatpush1.msra.mxu0 0.0
      %405 = vmatprep.subr.mxu0 0.0
      %406 = vmatpush1.msra.mxu0 0.0
      %407 = vmatprep.subr.mxu0 0.0
      %408 = vmatpush1.msra.mxu0 0.0
      %409 = vmatprep.subr.mxu0 0.0
      %410 = vmatpush1.msra.mxu0 0.0
      %411 = vmatprep.subr.mxu0 0.0
      %412 = vmatpush1.msra.mxu0 0.0
      %413 = vmatprep.subr.mxu0 0.0
      %414 = vmatpush1.msra.mxu0 0.0
      %415 = vmatprep.subr.mxu0 0.0
      %416 = vmatpush1.msra.mxu0 0.0
      %417 = vmatprep.subr.mxu0 0.0
      %418 = vmatpush1.msra.mxu0 0.0
      %419 = vmatprep.subr.mxu0 0.0
      %420 = vmatpush1.msra.mxu0 0.0
      %421 = vmatprep.subr.mxu0 0.0
      %422 = vmatpush1.msra.mxu0 0.0
      %423 = vmatprep.subr.mxu0 0.0
      %424 = vmatpush1.msra.mxu0 0.0
      %425 = vmatprep.subr.mxu0 0.0
      %426 = vmatpush1.msra.mxu0 0.0
      %427 = vmatprep.subr.mxu0 0.0
      %428 = vmatpush1.msra.mxu0 0.0
      %429 = vmatprep.subr.mxu0 0.0
      %430 = vmatpush1.msra.mxu0 0.0
      %431 = vmatprep.subr.mxu0 0.0
      %432 = vmatpush1.msra.mxu0 0.0
      %433 = vmatprep.subr.mxu0 0.0
      %434 = vmatpush1.msra.mxu0 0.0
      %435 = vmatprep.subr.mxu0 0.0
      %436 = vmatpush1.msra.mxu0 0.0
      %437 = vmatprep.subr.mxu0 0.0
      %438 = vmatpush1.msra.mxu0 0.0
      %439 = vmatprep.subr.mxu0 0.0
      %440 = vmatpush1.msra.mxu0 0.0
      %441 = vmatprep.subr.mxu0 0.0
      %442 = vmatpush1.msra.mxu0 0.0
      %443 = vmatprep.subr.mxu0 0.0
      %444 = vmatpush1.msra.mxu0 0.0
      %445 = vmatprep.subr.mxu0 0.0
      %446 = vmatpush1.msra.mxu0 0.0
      %447 = vmatprep.subr.mxu0 0.0
      %448 = vmatpush1.msra.mxu0 0.0
      %449 = vmatprep.subr.mxu0 0.0
      %450 = vmatpush1.msra.mxu0 0.0
      %451 = vmatprep.subr.mxu0 0.0
      %452 = vmatpush1.msra.mxu0 0.0
      %453 = vmatprep.subr.mxu0 0.0
      %454 = vmatpush1.msra.mxu0 0.0
      %455 = vmatprep.mubr.f32.mxu0 0.0
      %456 = vmatmul.mubr.f32.gmra.mrb[0].mxu0 %v389
      %v457 = vpop.f32.mrb[0].mxu0
      %v458 = vadd.f32 0.0, %v457
      %v459 = vpop.f32.mrb[0].mxu0
      %460 = vdwg.mxu0
      %v461 = vadd.f32 %v386, %v458
      %v462 = vxor.u32 %v461, 2147483648
      %v463 = vmul.f32 %v462, 1.442695
      %v464 = vpow.pop %v463
      %v465 = vadd.f32 %v464, 1.0
      %v466 = vrcp.pop %v465
      %v467 = vmul.f32 1.0, %v466
      %v468 = vtanh.pop %v461
      %v469 = vld [vmem:[#allocation3] sm:$0x3]
      %471 = vrot.lane.b32.xlu0 %v469, 16
      %v472 = vpop.permute.xlu0 %471
      %v474 = vmul.f32 %v467, %v472
      %476 = vrot.lane.b32.xlu0 %v468, 96
      %v477 = vpop.permute.xlu0 %476
      %v479 = vmul.f32 %v467, %v477
      %481 = vrot.lane.b32.xlu0 %v479, 16
      %v482 = vpop.permute.xlu0 %481
      %v484 = vadd.f32 %v474, %v482
      %v485 = vtanh.pop %v484
      %487 = vrot.lane.b32.xlu0 %v485, 32
      %v488 = vpop.permute.xlu0 %487
      %v490 = vmul.f32 %v467, %v488
      %492 = vrot.lane.b32.xlu0 %v484, 112
      %v493 = vpop.permute.xlu0 %492
      %495 = vst.msk [vmem:[#allocation3] sm:$0x3] %vm373, %v493
      %497 = vrot.lane.b32.xlu0 %v490, 80
      %v498 = vpop.permute.xlu0 %497
      %500 = vst.msk [vmem:[#allocation2] sm:$0x3] %vm373, %v498
      %s501 = scalar_lea.vmem %s245, %s384
      %502 = vst.msk [vmem:[%s501] sm:$0x3] %vm373, %v498
      %s503 = smul.u32 %s17, 5
      %s504 = sadd.s32 %s503, 2
      %s505 = smul.u32 %s504, 2
      %s506 = scalar_lea.vmem %s222, %s505
      %v507 = vld [vmem:[%s506] sm:$0x3]
      %v508 = vld [vmem:[#allocation2] sm:$0x3]
      %v510 = vsel %vm265, %v508, 0
      %512 = vmatprep.subr.mxu0 0.0
      %513 = vmatpush1.msra.mxu0 %v258
      %514 = vmatprep.subr.mxu0 0.0
      %515 = vmatpush1.msra.mxu0 %v259
      %516 = vmatprep.subr.mxu0 0.0
      %517 = vmatpush1.msra.mxu0 0.0
      %518 = vmatprep.subr.mxu0 0.0
      %519 = vmatpush1.msra.mxu0 0.0
      %520 = vmatprep.subr.mxu0 0.0
      %521 = vmatpush1.msra.mxu0 0.0
      %522 = vmatprep.subr.mxu0 0.0
      %523 = vmatpush1.msra.mxu0 0.0
      %524 = vmatprep.subr.mxu0 0.0
      %525 = vmatpush1.msra.mxu0 0.0
      %526 = vmatprep.subr.mxu0 0.0
      %527 = vmatpush1.msra.mxu0 0.0
      %528 = vmatprep.subr.mxu0 0.0
      %529 = vmatpush1.msra.mxu0 0.0
      %530 = vmatprep.subr.mxu0 0.0
      %531 = vmatpush1.msra.mxu0 0.0
      %532 = vmatprep.subr.mxu0 0.0
      %533 = vmatpush1.msra.mxu0 0.0
      %534 = vmatprep.subr.mxu0 0.0
      %535 = vmatpush1.msra.mxu0 0.0
      %536 = vmatprep.subr.mxu0 0.0
      %537 = vmatpush1.msra.mxu0 0.0
      %538 = vmatprep.subr.mxu0 0.0
      %539 = vmatpush1.msra.mxu0 0.0
      %540 = vmatprep.subr.mxu0 0.0
      %541 = vmatpush1.msra.mxu0 0.0
      %542 = vmatprep.subr.mxu0 0.0
      %543 = vmatpush1.msra.mxu0 0.0
      %544 = vmatprep.subr.mxu0 0.0
      %545 = vmatpush1.msra.mxu0 0.0
      %546 = vmatprep.subr.mxu0 0.0
      %547 = vmatpush1.msra.mxu0 0.0
      %548 = vmatprep.subr.mxu0 0.0
      %549 = vmatpush1.msra.mxu0 0.0
      %550 = vmatprep.subr.mxu0 0.0
      %551 = vmatpush1.msra.mxu0 0.0
      %552 = vmatprep.subr.mxu0 0.0
      %553 = vmatpush1.msra.mxu0 0.0
      %554 = vmatprep.subr.mxu0 0.0
      %555 = vmatpush1.msra.mxu0 0.0
      %556 = vmatprep.subr.mxu0 0.0
      %557 = vmatpush1.msra.mxu0 0.0
      %558 = vmatprep.subr.mxu0 0.0
      %559 = vmatpush1.msra.mxu0 0.0
      %560 = vmatprep.subr.mxu0 0.0
      %561 = vmatpush1.msra.mxu0 0.0
      %562 = vmatprep.subr.mxu0 0.0
      %563 = vmatpush1.msra.mxu0 0.0
      %564 = vmatprep.subr.mxu0 0.0
      %565 = vmatpush1.msra.mxu0 0.0
      %566 = vmatprep.subr.mxu0 0.0
      %567 = vmatpush1.msra.mxu0 0.0
      %568 = vmatprep.subr.mxu0 0.0
      %569 = vmatpush1.msra.mxu0 0.0
      %570 = vmatprep.subr.mxu0 0.0
      %571 = vmatpush1.msra.mxu0 0.0
      %572 = vmatprep.subr.mxu0 0.0
      %573 = vmatpush1.msra.mxu0 0.0
      %574 = vmatprep.subr.mxu0 0.0
      %575 = vmatpush1.msra.mxu0 0.0
      %576 = vmatprep.mubr.f32.mxu0 0.0
      %577 = vmatmul.mubr.f32.gmra.mrb[0].mxu0 %v510
      %v578 = vpop.f32.mrb[0].mxu0
      %v579 = vadd.f32 0.0, %v578
      %v580 = vpop.f32.mrb[0].mxu0
      %581 = vdwg.mxu0
      %v582 = vadd.f32 %v507, %v579
      %v583 = vxor.u32 %v582, 2147483648
      %v584 = vmul.f32 %v583, 1.442695
      %v585 = vpow.pop %v584
      %v586 = vadd.f32 %v585, 1.0
      %v587 = vrcp.pop %v586
      %v588 = vmul.f32 1.0, %v587
      %v589 = vtanh.pop %v582
      %v590 = vld [vmem:[#allocation3] sm:$0x3]
      %592 = vrot.lane.b32.xlu0 %v590, 16
      %v593 = vpop.permute.xlu0 %592
      %v595 = vmul.f32 %v588, %v593
      %597 = vrot.lane.b32.xlu0 %v589, 96
      %v598 = vpop.permute.xlu0 %597
      %v600 = vmul.f32 %v588, %v598
      %602 = vrot.lane.b32.xlu0 %v600, 16
      %v603 = vpop.permute.xlu0 %602
      %v605 = vadd.f32 %v595, %v603
      %v606 = vtanh.pop %v605
      %608 = vrot.lane.b32.xlu0 %v606, 32
      %v609 = vpop.permute.xlu0 %608
      %v611 = vmul.f32 %v588, %v609
      %613 = vrot.lane.b32.xlu0 %v605, 112
      %v614 = vpop.permute.xlu0 %613
      %616 = vst.msk [vmem:[#allocation3] sm:$0x3] %vm373, %v614
      %618 = vrot.lane.b32.xlu0 %v611, 80
      %v619 = vpop.permute.xlu0 %618
      %621 = vst.msk [vmem:[#allocation2] sm:$0x3] %vm373, %v619
      %s622 = scalar_lea.vmem %s245, %s505
      %623 = vst.msk [vmem:[%s622] sm:$0x3] %vm373, %v619
      %s624 = smul.u32 %s17, 3
      %s625 = sadd.s32 %s624, 3
      %s626 = smul.u32 %s625, 2
      %s627 = scalar_lea.vmem %s222, %s626
      %v628 = vld [vmem:[%s627] sm:$0x3]
      %v629 = vld [vmem:[#allocation2] sm:$0x3]
      %v631 = vsel %vm265, %v629, 0
      %633 = vmatprep.subr.mxu0 0.0
      %634 = vmatpush1.msra.mxu0 %v258
      %635 = vmatprep.subr.mxu0 0.0
      %636 = vmatpush1.msra.mxu0 %v259
      %637 = vmatprep.subr.mxu0 0.0
      %638 = vmatpush1.msra.mxu0 0.0
      %639 = vmatprep.subr.mxu0 0.0
      %640 = vmatpush1.msra.mxu0 0.0
      %641 = vmatprep.subr.mxu0 0.0
      %642 = vmatpush1.msra.mxu0 0.0
      %643 = vmatprep.subr.mxu0 0.0
      %644 = vmatpush1.msra.mxu0 0.0
      %645 = vmatprep.subr.mxu0 0.0
      %646 = vmatpush1.msra.mxu0 0.0
      %647 = vmatprep.subr.mxu0 0.0
      %648 = vmatpush1.msra.mxu0 0.0
      %649 = vmatprep.subr.mxu0 0.0
      %650 = vmatpush1.msra.mxu0 0.0
      %651 = vmatprep.subr.mxu0 0.0
      %652 = vmatpush1.msra.mxu0 0.0
      %653 = vmatprep.subr.mxu0 0.0
      %654 = vmatpush1.msra.mxu0 0.0
      %655 = vmatprep.subr.mxu0 0.0
      %656 = vmatpush1.msra.mxu0 0.0
      %657 = vmatprep.subr.mxu0 0.0
      %658 = vmatpush1.msra.mxu0 0.0
      %659 = vmatprep.subr.mxu0 0.0
      %660 = vmatpush1.msra.mxu0 0.0
      %661 = vmatprep.subr.mxu0 0.0
      %662 = vmatpush1.msra.mxu0 0.0
      %663 = vmatprep.subr.mxu0 0.0
      %664 = vmatpush1.msra.mxu0 0.0
      %665 = vmatprep.subr.mxu0 0.0
      %666 = vmatpush1.msra.mxu0 0.0
      %667 = vmatprep.subr.mxu0 0.0
      %668 = vmatpush1.msra.mxu0 0.0
      %669 = vmatprep.subr.mxu0 0.0
      %670 = vmatpush1.msra.mxu0 0.0
      %671 = vmatprep.subr.mxu0 0.0
      %672 = vmatpush1.msra.mxu0 0.0
      %673 = vmatprep.subr.mxu0 0.0
      %674 = vmatpush1.msra.mxu0 0.0
      %675 = vmatprep.subr.mxu0 0.0
      %676 = vmatpush1.msra.mxu0 0.0
      %677 = vmatprep.subr.mxu0 0.0
      %678 = vmatpush1.msra.mxu0 0.0
      %679 = vmatprep.subr.mxu0 0.0
      %680 = vmatpush1.msra.mxu0 0.0
      %681 = vmatprep.subr.mxu0 0.0
      %682 = vmatpush1.msra.mxu0 0.0
      %683 = vmatprep.subr.mxu0 0.0
      %684 = vmatpush1.msra.mxu0 0.0
      %685 = vmatprep.subr.mxu0 0.0
      %686 = vmatpush1.msra.mxu0 0.0
      %687 = vmatprep.subr.mxu0 0.0
      %688 = vmatpush1.msra.mxu0 0.0
      %689 = vmatprep.subr.mxu0 0.0
      %690 = vmatpush1.msra.mxu0 0.0
      %691 = vmatprep.subr.mxu0 0.0
      %692 = vmatpush1.msra.mxu0 0.0
      %693 = vmatprep.subr.mxu0 0.0
      %694 = vmatpush1.msra.mxu0 0.0
      %695 = vmatprep.subr.mxu0 0.0
      %696 = vmatpush1.msra.mxu0 0.0
      %697 = vmatprep.mubr.f32.mxu0 0.0
      %698 = vmatmul.mubr.f32.gmra.mrb[0].mxu0 %v631
      %v699 = vpop.f32.mrb[0].mxu0
      %v700 = vadd.f32 0.0, %v699
      %v701 = vpop.f32.mrb[0].mxu0
      %702 = vdwg.mxu0
      %v703 = vadd.f32 %v628, %v700
      %v704 = vxor.u32 %v703, 2147483648
      %v705 = vmul.f32 %v704, 1.442695
      %v706 = vpow.pop %v705
      %v707 = vadd.f32 %v706, 1.0
      %v708 = vrcp.pop %v707
      %v709 = vmul.f32 1.0, %v708
      %v710 = vtanh.pop %v703
      %v711 = vld [vmem:[#allocation3] sm:$0x3]
      %713 = vrot.lane.b32.xlu0 %v711, 16
      %v714 = vpop.permute.xlu0 %713
      %v716 = vmul.f32 %v709, %v714
      %718 = vrot.lane.b32.xlu0 %v710, 96
      %v719 = vpop.permute.xlu0 %718
      %v721 = vmul.f32 %v709, %v719
      %723 = vrot.lane.b32.xlu0 %v721, 16
      %v724 = vpop.permute.xlu0 %723
      %v726 = vadd.f32 %v716, %v724
      %v727 = vtanh.pop %v726
      %729 = vrot.lane.b32.xlu0 %v727, 32
      %v730 = vpop.permute.xlu0 %729
      %v732 = vmul.f32 %v709, %v730
      %734 = vrot.lane.b32.xlu0 %v726, 112
      %v735 = vpop.permute.xlu0 %734
      %737 = vst.msk [vmem:[#allocation3] sm:$0x3] %vm373, %v735
      %739 = vrot.lane.b32.xlu0 %v732, 80
      %v740 = vpop.permute.xlu0 %739
      %742 = vst.msk [vmem:[#allocation2] sm:$0x3] %vm373, %v740
      %s743 = scalar_lea.vmem %s245, %s626
      %744 = vst.msk [vmem:[%s743] sm:$0x3] %vm373, %v740
      %s745 = sadd.s32 %s17, 4
      %s746 = smul.u32 %s745, 2
      %s747 = scalar_lea.vmem %s222, %s746
      %v748 = vld [vmem:[%s747] sm:$0x3]
      %v749 = vld [vmem:[#allocation2] sm:$0x3]
      %v751 = vsel %vm265, %v749, 0
      %753 = vmatprep.subr.mxu0 0.0
      %754 = vmatpush1.msra.mxu0 %v258
      %755 = vmatprep.subr.mxu0 0.0
      %756 = vmatpush1.msra.mxu0 %v259
      %757 = vmatprep.subr.mxu0 0.0
      %758 = vmatpush1.msra.mxu0 0.0
      %759 = vmatprep.subr.mxu0 0.0
      %760 = vmatpush1.msra.mxu0 0.0
      %761 = vmatprep.subr.mxu0 0.0
      %762 = vmatpush1.msra.mxu0 0.0
      %763 = vmatprep.subr.mxu0 0.0
      %764 = vmatpush1.msra.mxu0 0.0
      %765 = vmatprep.subr.mxu0 0.0
      %766 = vmatpush1.msra.mxu0 0.0
      %767 = vmatprep.subr.mxu0 0.0
      %768 = vmatpush1.msra.mxu0 0.0
      %769 = vmatprep.subr.mxu0 0.0
      %770 = vmatpush1.msra.mxu0 0.0
      %771 = vmatprep.subr.mxu0 0.0
      %772 = vmatpush1.msra.mxu0 0.0
      %773 = vmatprep.subr.mxu0 0.0
      %774 = vmatpush1.msra.mxu0 0.0
      %775 = vmatprep.subr.mxu0 0.0
      %776 = vmatpush1.msra.mxu0 0.0
      %777 = vmatprep.subr.mxu0 0.0
      %778 = vmatpush1.msra.mxu0 0.0
      %779 = vmatprep.subr.mxu0 0.0
      %780 = vmatpush1.msra.mxu0 0.0
      %781 = vmatprep.subr.mxu0 0.0
      %782 = vmatpush1.msra.mxu0 0.0
      %783 = vmatprep.subr.mxu0 0.0
      %784 = vmatpush1.msra.mxu0 0.0
      %785 = vmatprep.subr.mxu0 0.0
      %786 = vmatpush1.msra.mxu0 0.0
      %787 = vmatprep.subr.mxu0 0.0
      %788 = vmatpush1.msra.mxu0 0.0
      %789 = vmatprep.subr.mxu0 0.0
      %790 = vmatpush1.msra.mxu0 0.0
      %791 = vmatprep.subr.mxu0 0.0
      %792 = vmatpush1.msra.mxu0 0.0
      %793 = vmatprep.subr.mxu0 0.0
      %794 = vmatpush1.msra.mxu0 0.0
      %795 = vmatprep.subr.mxu0 0.0
      %796 = vmatpush1.msra.mxu0 0.0
      %797 = vmatprep.subr.mxu0 0.0
      %798 = vmatpush1.msra.mxu0 0.0
      %799 = vmatprep.subr.mxu0 0.0
      %800 = vmatpush1.msra.mxu0 0.0
      %801 = vmatprep.subr.mxu0 0.0
      %802 = vmatpush1.msra.mxu0 0.0
      %803 = vmatprep.subr.mxu0 0.0
      %804 = vmatpush1.msra.mxu0 0.0
      %805 = vmatprep.subr.mxu0 0.0
      %806 = vmatpush1.msra.mxu0 0.0
      %807 = vmatprep.subr.mxu0 0.0
      %808 = vmatpush1.msra.mxu0 0.0
      %809 = vmatprep.subr.mxu0 0.0
      %810 = vmatpush1.msra.mxu0 0.0
      %811 = vmatprep.subr.mxu0 0.0
      %812 = vmatpush1.msra.mxu0 0.0
      %813 = vmatprep.subr.mxu0 0.0
      %814 = vmatpush1.msra.mxu0 0.0
      %815 = vmatprep.subr.mxu0 0.0
      %816 = vmatpush1.msra.mxu0 0.0
      %817 = vmatprep.mubr.f32.mxu0 0.0
      %818 = vmatmul.mubr.f32.gmra.mrb[0].mxu0 %v751
      %v819 = vpop.f32.mrb[0].mxu0
      %v820 = vadd.f32 0.0, %v819
      %v821 = vpop.f32.mrb[0].mxu0
      %822 = vdwg.mxu0
      %v823 = vadd.f32 %v748, %v820
      %v824 = vxor.u32 %v823, 2147483648
      %v825 = vmul.f32 %v824, 1.442695
      %v826 = vpow.pop %v825
      %v827 = vadd.f32 %v826, 1.0
      %v828 = vrcp.pop %v827
      %v829 = vmul.f32 1.0, %v828
      %v830 = vtanh.pop %v823
      %v831 = vld [vmem:[#allocation3] sm:$0x3]
      %833 = vrot.lane.b32.xlu0 %v831, 16
      %v834 = vpop.permute.xlu0 %833
      %v836 = vmul.f32 %v829, %v834
      %838 = vrot.lane.b32.xlu0 %v830, 96
      %v839 = vpop.permute.xlu0 %838
      %v841 = vmul.f32 %v829, %v839
      %843 = vrot.lane.b32.xlu0 %v841, 16
      %v844 = vpop.permute.xlu0 %843
      %v846 = vadd.f32 %v836, %v844
      %v847 = vtanh.pop %v846
      %849 = vrot.lane.b32.xlu0 %v847, 32
      %v850 = vpop.permute.xlu0 %849
      %v852 = vmul.f32 %v829, %v850
      %854 = vrot.lane.b32.xlu0 %v846, 112
      %v855 = vpop.permute.xlu0 %854
      %857 = vst.msk [vmem:[#allocation3] sm:$0x3] %vm373, %v855
      %859 = vrot.lane.b32.xlu0 %v852, 80
      %v860 = vpop.permute.xlu0 %859
      %862 = vst.msk [vmem:[#allocation2] sm:$0x3] %vm373, %v860
      %s863 = scalar_lea.vmem %s245, %s746
      %864 = vst.msk [vmem:[%s863] sm:$0x3] %vm373, %v860
      %s865 = ssub.s32 5, %s17
      %s866 = smul.u32 %s865, 2
      %s867 = scalar_lea.vmem %s222, %s866
      %v868 = vld [vmem:[%s867] sm:$0x3]
      %v869 = vld [vmem:[#allocation2] sm:$0x3]
      %v871 = vsel %vm265, %v869, 0
      %873 = vmatprep.subr.mxu0 0.0
      %874 = vmatpush1.msra.mxu0 %v258
      %875 = vmatprep.subr.mxu0 0.0
      %876 = vmatpush1.msra.mxu0 %v259
      %877 = vmatprep.subr.mxu0 0.0
      %878 = vmatpush1.msra.mxu0 0.0
      %879 = vmatprep.subr.mxu0 0.0
      %880 = vmatpush1.msra.mxu0 0.0
      %881 = vmatprep.subr.mxu0 0.0
      %882 = vmatpush1.msra.mxu0 0.0
      %883 = vmatprep.subr.mxu0 0.0
      %884 = vmatpush1.msra.mxu0 0.0
      %885 = vmatprep.subr.mxu0 0.0
      %886 = vmatpush1.msra.mxu0 0.0
      %887 = vmatprep.subr.mxu0 0.0
      %888 = vmatpush1.msra.mxu0 0.0
      %889 = vmatprep.subr.mxu0 0.0
      %890 = vmatpush1.msra.mxu0 0.0
      %891 = vmatprep.subr.mxu0 0.0
      %892 = vmatpush1.msra.mxu0 0.0
      %893 = vmatprep.subr.mxu0 0.0
      %894 = vmatpush1.msra.mxu0 0.0
      %895 = vmatprep.subr.mxu0 0.0
      %896 = vmatpush1.msra.mxu0 0.0
      %897 = vmatprep.subr.mxu0 0.0
      %898 = vmatpush1.msra.mxu0 0.0
      %899 = vmatprep.subr.mxu0 0.0
      %900 = vmatpush1.msra.mxu0 0.0
      %901 = vmatprep.subr.mxu0 0.0
      %902 = vmatpush1.msra.mxu0 0.0
      %903 = vmatprep.subr.mxu0 0.0
      %904 = vmatpush1.msra.mxu0 0.0
      %905 = vmatprep.subr.mxu0 0.0
      %906 = vmatpush1.msra.mxu0 0.0
      %907 = vmatprep.subr.mxu0 0.0
      %908 = vmatpush1.msra.mxu0 0.0
      %909 = vmatprep.subr.mxu0 0.0
      %910 = vmatpush1.msra.mxu0 0.0
      %911 = vmatprep.subr.mxu0 0.0
      %912 = vmatpush1.msra.mxu0 0.0
      %913 = vmatprep.subr.mxu0 0.0
      %914 = vmatpush1.msra.mxu0 0.0
      %915 = vmatprep.subr.mxu0 0.0
      %916 = vmatpush1.msra.mxu0 0.0
      %917 = vmatprep.subr.mxu0 0.0
      %918 = vmatpush1.msra.mxu0 0.0
      %919 = vmatprep.subr.mxu0 0.0
      %920 = vmatpush1.msra.mxu0 0.0
      %921 = vmatprep.subr.mxu0 0.0
      %922 = vmatpush1.msra.mxu0 0.0
      %923 = vmatprep.subr.mxu0 0.0
      %924 = vmatpush1.msra.mxu0 0.0
      %925 = vmatprep.subr.mxu0 0.0
      %926 = vmatpush1.msra.mxu0 0.0
      %927 = vmatprep.subr.mxu0 0.0
      %928 = vmatpush1.msra.mxu0 0.0
      %929 = vmatprep.subr.mxu0 0.0
      %930 = vmatpush1.msra.mxu0 0.0
      %931 = vmatprep.subr.mxu0 0.0
      %932 = vmatpush1.msra.mxu0 0.0
      %933 = vmatprep.subr.mxu0 0.0
      %934 = vmatpush1.msra.mxu0 0.0
      %935 = vmatprep.subr.mxu0 0.0
      %936 = vmatpush1.msra.mxu0 0.0
      %937 = vmatprep.mubr.f32.mxu0 0.0
      %938 = vmatmul.mubr.f32.gmra.mrb[0].mxu0 %v871
      %v939 = vpop.f32.mrb[0].mxu0
      %v940 = vadd.f32 0.0, %v939
      %v941 = vpop.f32.mrb[0].mxu0
      %942 = vdwg.mxu0
      %v943 = vadd.f32 %v868, %v940
      %v944 = vxor.u32 %v943, 2147483648
      %v945 = vmul.f32 %v944, 1.442695
      %v946 = vpow.pop %v945
      %v947 = vadd.f32 %v946, 1.0
      %v948 = vrcp.pop %v947
      %v949 = vmul.f32 1.0, %v948
      %v950 = vtanh.pop %v943
      %v951 = vld [vmem:[#allocation3] sm:$0x3]
      %953 = vrot.lane.b32.xlu0 %v951, 16
      %v954 = vpop.permute.xlu0 %953
      %v956 = vmul.f32 %v949, %v954
      %958 = vrot.lane.b32.xlu0 %v950, 96
      %v959 = vpop.permute.xlu0 %958
      %v961 = vmul.f32 %v949, %v959
      %963 = vrot.lane.b32.xlu0 %v961, 16
      %v964 = vpop.permute.xlu0 %963
      %v966 = vadd.f32 %v956, %v964
      %v967 = vtanh.pop %v966
      %969 = vrot.lane.b32.xlu0 %v967, 32
      %v970 = vpop.permute.xlu0 %969
      %v972 = vmul.f32 %v949, %v970
      %974 = vrot.lane.b32.xlu0 %v966, 112
      %v975 = vpop.permute.xlu0 %974
      %977 = vst.msk [vmem:[#allocation3] sm:$0x3] %vm373, %v975
      %979 = vrot.lane.b32.xlu0 %v972, 80
      %v980 = vpop.permute.xlu0 %979
      %982 = vst.msk [vmem:[#allocation2] sm:$0x3] %vm373, %v980
      %s983 = scalar_lea.vmem %s245, %s866
      %984 = vst.msk [vmem:[%s983] sm:$0x3] %vm373, %v980
      %s985 = smul.u32 %s17, 4294967293
      %s986 = sadd.s32 %s985, 6
      %s987 = smul.u32 %s986, 2
      %s988 = scalar_lea.vmem %s222, %s987
      %v989 = vld [vmem:[%s988] sm:$0x3]
      %v990 = vld [vmem:[#allocation2] sm:$0x3]
      %v992 = vsel %vm265, %v990, 0
      %994 = vmatprep.subr.mxu0 0.0
      %995 = vmatpush1.msra.mxu0 %v258
      %996 = vmatprep.subr.mxu0 0.0
      %997 = vmatpush1.msra.mxu0 %v259
      %998 = vmatprep.subr.mxu0 0.0
      %999 = vmatpush1.msra.mxu0 0.0
      %1000 = vmatprep.subr.mxu0 0.0
      %1001 = vmatpush1.msra.mxu0 0.0
      %1002 = vmatprep.subr.mxu0 0.0
      %1003 = vmatpush1.msra.mxu0 0.0
      %1004 = vmatprep.subr.mxu0 0.0
      %1005 = vmatpush1.msra.mxu0 0.0
      %1006 = vmatprep.subr.mxu0 0.0
      %1007 = vmatpush1.msra.mxu0 0.0
      %1008 = vmatprep.subr.mxu0 0.0
      %1009 = vmatpush1.msra.mxu0 0.0
      %1010 = vmatprep.subr.mxu0 0.0
      %1011 = vmatpush1.msra.mxu0 0.0
      %1012 = vmatprep.subr.mxu0 0.0
      %1013 = vmatpush1.msra.mxu0 0.0
      %1014 = vmatprep.subr.mxu0 0.0
      %1015 = vmatpush1.msra.mxu0 0.0
      %1016 = vmatprep.subr.mxu0 0.0
      %1017 = vmatpush1.msra.mxu0 0.0
      %1018 = vmatprep.subr.mxu0 0.0
      %1019 = vmatpush1.msra.mxu0 0.0
      %1020 = vmatprep.subr.mxu0 0.0
      %1021 = vmatpush1.msra.mxu0 0.0
      %1022 = vmatprep.subr.mxu0 0.0
      %1023 = vmatpush1.msra.mxu0 0.0
      %1024 = vmatprep.subr.mxu0 0.0
      %1025 = vmatpush1.msra.mxu0 0.0
      %1026 = vmatprep.subr.mxu0 0.0
      %1027 = vmatpush1.msra.mxu0 0.0
      %1028 = vmatprep.subr.mxu0 0.0
      %1029 = vmatpush1.msra.mxu0 0.0
      %1030 = vmatprep.subr.mxu0 0.0
      %1031 = vmatpush1.msra.mxu0 0.0
      %1032 = vmatprep.subr.mxu0 0.0
      %1033 = vmatpush1.msra.mxu0 0.0
      %1034 = vmatprep.subr.mxu0 0.0
      %1035 = vmatpush1.msra.mxu0 0.0
      %1036 = vmatprep.subr.mxu0 0.0
      %1037 = vmatpush1.msra.mxu0 0.0
      %1038 = vmatprep.subr.mxu0 0.0
      %1039 = vmatpush1.msra.mxu0 0.0
      %1040 = vmatprep.subr.mxu0 0.0
      %1041 = vmatpush1.msra.mxu0 0.0
      %1042 = vmatprep.subr.mxu0 0.0
      %1043 = vmatpush1.msra.mxu0 0.0
      %1044 = vmatprep.subr.mxu0 0.0
      %1045 = vmatpush1.msra.mxu0 0.0
      %1046 = vmatprep.subr.mxu0 0.0
      %1047 = vmatpush1.msra.mxu0 0.0
      %1048 = vmatprep.subr.mxu0 0.0
      %1049 = vmatpush1.msra.mxu0 0.0
      %1050 = vmatprep.subr.mxu0 0.0
      %1051 = vmatpush1.msra.mxu0 0.0
      %1052 = vmatprep.subr.mxu0 0.0
      %1053 = vmatpush1.msra.mxu0 0.0
      %1054 = vmatprep.subr.mxu0 0.0
      %1055 = vmatpush1.msra.mxu0 0.0
      %1056 = vmatprep.subr.mxu0 0.0
      %1057 = vmatpush1.msra.mxu0 0.0
      %1058 = vmatprep.mubr.f32.mxu0 0.0
      %1059 = vmatmul.mubr.f32.gmra.mrb[0].mxu0 %v992
      %v1060 = vpop.f32.mrb[0].mxu0
      %v1061 = vadd.f32 0.0, %v1060
      %v1062 = vpop.f32.mrb[0].mxu0
      %1063 = vdwg.mxu0
      %v1064 = vadd.f32 %v989, %v1061
      %v1065 = vxor.u32 %v1064, 2147483648
      %v1066 = vmul.f32 %v1065, 1.442695
      %v1067 = vpow.pop %v1066
      %v1068 = vadd.f32 %v1067, 1.0
      %v1069 = vrcp.pop %v1068
      %v1070 = vmul.f32 1.0, %v1069
      %v1071 = vtanh.pop %v1064
      %v1072 = vld [vmem:[#allocation3] sm:$0x3]
      %1074 = vrot.lane.b32.xlu0 %v1072, 16
      %v1075 = vpop.permute.xlu0 %1074
      %v1077 = vmul.f32 %v1070, %v1075
      %1079 = vrot.lane.b32.xlu0 %v1071, 96
      %v1080 = vpop.permute.xlu0 %1079
      %v1082 = vmul.f32 %v1070, %v1080
      %1084 = vrot.lane.b32.xlu0 %v1082, 16
      %v1085 = vpop.permute.xlu0 %1084
      %v1087 = vadd.f32 %v1077, %v1085
      %v1088 = vtanh.pop %v1087
      %1090 = vrot.lane.b32.xlu0 %v1088, 32
      %v1091 = vpop.permute.xlu0 %1090
      %v1093 = vmul.f32 %v1070, %v1091
      %1095 = vrot.lane.b32.xlu0 %v1087, 112
      %v1096 = vpop.permute.xlu0 %1095
      %1098 = vst.msk [vmem:[#allocation3] sm:$0x3] %vm373, %v1096
      %1100 = vrot.lane.b32.xlu0 %v1093, 80
      %v1101 = vpop.permute.xlu0 %1100
      %1103 = vst.msk [vmem:[#allocation2] sm:$0x3] %vm373, %v1101
      %s1104 = scalar_lea.vmem %s245, %s987
      %1105 = vst.msk [vmem:[%s1104] sm:$0x3] %vm373, %v1101
      %s1106 = smul.u32 %s17, 4294967291
      %s1107 = sadd.s32 %s1106, 7
      %s1108 = smul.u32 %s1107, 2
      %s1109 = scalar_lea.vmem %s222, %s1108
      %v1110 = vld [vmem:[%s1109] sm:$0x3]
      %v1111 = vld [vmem:[#allocation2] sm:$0x3]
      %v1113 = vsel %vm265, %v1111, 0
      %1115 = vmatprep.subr.mxu0 0.0
      %1116 = vmatpush1.msra.mxu0 %v258
      %1117 = vmatprep.subr.mxu0 0.0
      %1118 = vmatpush1.msra.mxu0 %v259
      %1119 = vmatprep.subr.mxu0 0.0
      %1120 = vmatpush1.msra.mxu0 0.0
      %1121 = vmatprep.subr.mxu0 0.0
      %1122 = vmatpush1.msra.mxu0 0.0
      %1123 = vmatprep.subr.mxu0 0.0
      %1124 = vmatpush1.msra.mxu0 0.0
      %1125 = vmatprep.subr.mxu0 0.0
      %1126 = vmatpush1.msra.mxu0 0.0
      %1127 = vmatprep.subr.mxu0 0.0
      %1128 = vmatpush1.msra.mxu0 0.0
      %1129 = vmatprep.subr.mxu0 0.0
      %1130 = vmatpush1.msra.mxu0 0.0
      %1131 = vmatprep.subr.mxu0 0.0
      %1132 = vmatpush1.msra.mxu0 0.0
      %1133 = vmatprep.subr.mxu0 0.0
      %1134 = vmatpush1.msra.mxu0 0.0
      %1135 = vmatprep.subr.mxu0 0.0
      %1136 = vmatpush1.msra.mxu0 0.0
      %1137 = vmatprep.subr.mxu0 0.0
      %1138 = vmatpush1.msra.mxu0 0.0
      %1139 = vmatprep.subr.mxu0 0.0
      %1140 = vmatpush1.msra.mxu0 0.0
      %1141 = vmatprep.subr.mxu0 0.0
      %1142 = vmatpush1.msra.mxu0 0.0
      %1143 = vmatprep.subr.mxu0 0.0
      %1144 = vmatpush1.msra.mxu0 0.0
      %1145 = vmatprep.subr.mxu0 0.0
      %1146 = vmatpush1.msra.mxu0 0.0
      %1147 = vmatprep.subr.mxu0 0.0
      %1148 = vmatpush1.msra.mxu0 0.0
      %1149 = vmatprep.subr.mxu0 0.0
      %1150 = vmatpush1.msra.mxu0 0.0
      %1151 = vmatprep.subr.mxu0 0.0
      %1152 = vmatpush1.msra.mxu0 0.0
      %1153 = vmatprep.subr.mxu0 0.0
      %1154 = vmatpush1.msra.mxu0 0.0
      %1155 = vmatprep.subr.mxu0 0.0
      %1156 = vmatpush1.msra.mxu0 0.0
      %1157 = vmatprep.subr.mxu0 0.0
      %1158 = vmatpush1.msra.mxu0 0.0
      %1159 = vmatprep.subr.mxu0 0.0
      %1160 = vmatpush1.msra.mxu0 0.0
      %1161 = vmatprep.subr.mxu0 0.0
      %1162 = vmatpush1.msra.mxu0 0.0
      %1163 = vmatprep.subr.mxu0 0.0
      %1164 = vmatpush1.msra.mxu0 0.0
      %1165 = vmatprep.subr.mxu0 0.0
      %1166 = vmatpush1.msra.mxu0 0.0
      %1167 = vmatprep.subr.mxu0 0.0
      %1168 = vmatpush1.msra.mxu0 0.0
      %1169 = vmatprep.subr.mxu0 0.0
      %1170 = vmatpush1.msra.mxu0 0.0
      %1171 = vmatprep.subr.mxu0 0.0
      %1172 = vmatpush1.msra.mxu0 0.0
      %1173 = vmatprep.subr.mxu0 0.0
      %1174 = vmatpush1.msra.mxu0 0.0
      %1175 = vmatprep.subr.mxu0 0.0
      %1176 = vmatpush1.msra.mxu0 0.0
      %1177 = vmatprep.subr.mxu0 0.0
      %1178 = vmatpush1.msra.mxu0 0.0
      %1179 = vmatprep.mubr.f32.mxu0 0.0
      %1180 = vmatmul.mubr.f32.gmra.mrb[0].mxu0 %v1113
      %v1181 = vpop.f32.mrb[0].mxu0
      %v1182 = vadd.f32 0.0, %v1181
      %v1183 = vpop.f32.mrb[0].mxu0
      %1184 = vdwg.mxu0
      %v1185 = vadd.f32 %v1110, %v1182
      %v1186 = vxor.u32 %v1185, 2147483648
      %v1187 = vmul.f32 %v1186, 1.442695
      %v1188 = vpow.pop %v1187
      %v1189 = vadd.f32 %v1188, 1.0
      %v1190 = vrcp.pop %v1189
      %v1191 = vmul.f32 1.0, %v1190
      %v1192 = vtanh.pop %v1185
      %v1193 = vld [vmem:[#allocation3] sm:$0x3]
      %1195 = vrot.lane.b32.xlu0 %v1193, 16
      %v1196 = vpop.permute.xlu0 %1195
      %v1198 = vmul.f32 %v1191, %v1196
      %1200 = vrot.lane.b32.xlu0 %v1192, 96
      %v1201 = vpop.permute.xlu0 %1200
      %v1203 = vmul.f32 %v1191, %v1201
      %1205 = vrot.lane.b32.xlu0 %v1203, 16
      %v1206 = vpop.permute.xlu0 %1205
      %v1208 = vadd.f32 %v1198, %v1206
      %v1209 = vtanh.pop %v1208
      %1211 = vrot.lane.b32.xlu0 %v1209, 32
      %v1212 = vpop.permute.xlu0 %1211
      %v1214 = vmul.f32 %v1191, %v1212
      %1216 = vrot.lane.b32.xlu0 %v1208, 112
      %v1217 = vpop.permute.xlu0 %1216
      %1219 = vst.msk [vmem:[#allocation3] sm:$0x3] %vm373, %v1217
      %1221 = vrot.lane.b32.xlu0 %v1214, 80
      %v1222 = vpop.permute.xlu0 %1221
      %1224 = vst.msk [vmem:[#allocation2] sm:$0x3] %vm373, %v1222
      %s1225 = scalar_lea.vmem %s245, %s1108
      %1226 = vst.msk [vmem:[%s1225] sm:$0x3] %vm373, %v1222
      %s1227 = smul.u32 %s17, 4294967289
      %s1228 = sadd.s32 %s1227, 8
      %s1229 = smul.u32 %s1228, 2
      %s1230 = scalar_lea.vmem %s222, %s1229
      %v1231 = vld [vmem:[%s1230] sm:$0x3]
      %v1232 = vld [vmem:[#allocation2] sm:$0x3]
      %v1234 = vsel %vm265, %v1232, 0
      %1236 = vmatprep.subr.mxu0 0.0
      %1237 = vmatpush1.msra.mxu0 %v258
      %1238 = vmatprep.subr.mxu0 0.0
      %1239 = vmatpush1.msra.mxu0 %v259
      %1240 = vmatprep.subr.mxu0 0.0
      %1241 = vmatpush1.msra.mxu0 0.0
      %1242 = vmatprep.subr.mxu0 0.0
      %1243 = vmatpush1.msra.mxu0 0.0
      %1244 = vmatprep.subr.mxu0 0.0
      %1245 = vmatpush1.msra.mxu0 0.0
      %1246 = vmatprep.subr.mxu0 0.0
      %1247 = vmatpush1.msra.mxu0 0.0
      %1248 = vmatprep.subr.mxu0 0.0
      %1249 = vmatpush1.msra.mxu0 0.0
      %1250 = vmatprep.subr.mxu0 0.0
      %1251 = vmatpush1.msra.mxu0 0.0
      %1252 = vmatprep.subr.mxu0 0.0
      %1253 = vmatpush1.msra.mxu0 0.0
      %1254 = vmatprep.subr.mxu0 0.0
      %1255 = vmatpush1.msra.mxu0 0.0
      %1256 = vmatprep.subr.mxu0 0.0
      %1257 = vmatpush1.msra.mxu0 0.0
      %1258 = vmatprep.subr.mxu0 0.0
      %1259 = vmatpush1.msra.mxu0 0.0
      %1260 = vmatprep.subr.mxu0 0.0
      %1261 = vmatpush1.msra.mxu0 0.0
      %1262 = vmatprep.subr.mxu0 0.0
      %1263 = vmatpush1.msra.mxu0 0.0
      %1264 = vmatprep.subr.mxu0 0.0
      %1265 = vmatpush1.msra.mxu0 0.0
      %1266 = vmatprep.subr.mxu0 0.0
      %1267 = vmatpush1.msra.mxu0 0.0
      %1268 = vmatprep.subr.mxu0 0.0
      %1269 = vmatpush1.msra.mxu0 0.0
      %1270 = vmatprep.subr.mxu0 0.0
      %1271 = vmatpush1.msra.mxu0 0.0
      %1272 = vmatprep.subr.mxu0 0.0
      %1273 = vmatpush1.msra.mxu0 0.0
      %1274 = vmatprep.subr.mxu0 0.0
      %1275 = vmatpush1.msra.mxu0 0.0
      %1276 = vmatprep.subr.mxu0 0.0
      %1277 = vmatpush1.msra.mxu0 0.0
      %1278 = vmatprep.subr.mxu0 0.0
      %1279 = vmatpush1.msra.mxu0 0.0
      %1280 = vmatprep.subr.mxu0 0.0
      %1281 = vmatpush1.msra.mxu0 0.0
      %1282 = vmatprep.subr.mxu0 0.0
      %1283 = vmatpush1.msra.mxu0 0.0
      %1284 = vmatprep.subr.mxu0 0.0
      %1285 = vmatpush1.msra.mxu0 0.0
      %1286 = vmatprep.subr.mxu0 0.0
      %1287 = vmatpush1.msra.mxu0 0.0
      %1288 = vmatprep.subr.mxu0 0.0
      %1289 = vmatpush1.msra.mxu0 0.0
      %1290 = vmatprep.subr.mxu0 0.0
      %1291 = vmatpush1.msra.mxu0 0.0
      %1292 = vmatprep.subr.mxu0 0.0
      %1293 = vmatpush1.msra.mxu0 0.0
      %1294 = vmatprep.subr.mxu0 0.0
      %1295 = vmatpush1.msra.mxu0 0.0
      %1296 = vmatprep.subr.mxu0 0.0
      %1297 = vmatpush1.msra.mxu0 0.0
      %1298 = vmatprep.subr.mxu0 0.0
      %1299 = vmatpush1.msra.mxu0 0.0
      %1300 = vmatprep.mubr.f32.mxu0 0.0
      %1301 = vmatmul.mubr.f32.gmra.mrb[0].mxu0 %v1234
      %v1302 = vpop.f32.mrb[0].mxu0
      %v1303 = vadd.f32 0.0, %v1302
      %v1304 = vpop.f32.mrb[0].mxu0
      %1305 = vdwg.mxu0
      %v1306 = vadd.f32 %v1231, %v1303
      %v1307 = vxor.u32 %v1306, 2147483648
      %v1308 = vmul.f32 %v1307, 1.442695
      %v1309 = vpow.pop %v1308
      %v1310 = vadd.f32 %v1309, 1.0
      %v1311 = vrcp.pop %v1310
      %v1312 = vmul.f32 1.0, %v1311
      %v1313 = vtanh.pop %v1306
      %v1314 = vld [vmem:[#allocation3] sm:$0x3]
      %1316 = vrot.lane.b32.xlu0 %v1314, 16
      %v1317 = vpop.permute.xlu0 %1316
      %v1319 = vmul.f32 %v1312, %v1317
      %1321 = vrot.lane.b32.xlu0 %v1313, 96
      %v1322 = vpop.permute.xlu0 %1321
      %v1324 = vmul.f32 %v1312, %v1322
      %1326 = vrot.lane.b32.xlu0 %v1324, 16
      %v1327 = vpop.permute.xlu0 %1326
      %v1329 = vadd.f32 %v1319, %v1327
      %v1330 = vtanh.pop %v1329
      %1332 = vrot.lane.b32.xlu0 %v1330, 32
      %v1333 = vpop.permute.xlu0 %1332
      %v1335 = vmul.f32 %v1312, %v1333
      %1337 = vrot.lane.b32.xlu0 %v1329, 112
      %v1338 = vpop.permute.xlu0 %1337
      %1340 = vst.msk [vmem:[#allocation3] sm:$0x3] %vm373, %v1338
      %1342 = vrot.lane.b32.xlu0 %v1335, 80
      %v1343 = vpop.permute.xlu0 %1342
      %1345 = vst.msk [vmem:[#allocation2] sm:$0x3] %vm373, %v1343
      %s1346 = scalar_lea.vmem %s245, %s1229
      %1347 = vst.msk [vmem:[%s1346] sm:$0x3] %vm373, %v1343
      %s1348 = smul.u32 %s17, 4294967287
      %s1349 = sadd.s32 %s1348, 9
      %s1350 = smul.u32 %s1349, 2
      %s1351 = scalar_lea.vmem %s222, %s1350
      %v1352 = vld [vmem:[%s1351] sm:$0x3]
      %v1353 = vld [vmem:[#allocation2] sm:$0x3]
      %v1355 = vsel %vm265, %v1353, 0
      %1357 = vmatprep.subr.mxu0 0.0
      %1358 = vmatpush1.msra.mxu0 %v258
      %1359 = vmatprep.subr.mxu0 0.0
      %1360 = vmatpush1.msra.mxu0 %v259
      %1361 = vmatprep.subr.mxu0 0.0
      %1362 = vmatpush1.msra.mxu0 0.0
      %1363 = vmatprep.subr.mxu0 0.0
      %1364 = vmatpush1.msra.mxu0 0.0
      %1365 = vmatprep.subr.mxu0 0.0
      %1366 = vmatpush1.msra.mxu0 0.0
      %1367 = vmatprep.subr.mxu0 0.0
      %1368 = vmatpush1.msra.mxu0 0.0
      %1369 = vmatprep.subr.mxu0 0.0
      %1370 = vmatpush1.msra.mxu0 0.0
      %1371 = vmatprep.subr.mxu0 0.0
      %1372 = vmatpush1.msra.mxu0 0.0
      %1373 = vmatprep.subr.mxu0 0.0
      %1374 = vmatpush1.msra.mxu0 0.0
      %1375 = vmatprep.subr.mxu0 0.0
      %1376 = vmatpush1.msra.mxu0 0.0
      %1377 = vmatprep.subr.mxu0 0.0
      %1378 = vmatpush1.msra.mxu0 0.0
      %1379 = vmatprep.subr.mxu0 0.0
      %1380 = vmatpush1.msra.mxu0 0.0
      %1381 = vmatprep.subr.mxu0 0.0
      %1382 = vmatpush1.msra.mxu0 0.0
      %1383 = vmatprep.subr.mxu0 0.0
      %1384 = vmatpush1.msra.mxu0 0.0
      %1385 = vmatprep.subr.mxu0 0.0
      %1386 = vmatpush1.msra.mxu0 0.0
      %1387 = vmatprep.subr.mxu0 0.0
      %1388 = vmatpush1.msra.mxu0 0.0
      %1389 = vmatprep.subr.mxu0 0.0
      %1390 = vmatpush1.msra.mxu0 0.0
      %1391 = vmatprep.subr.mxu0 0.0
      %1392 = vmatpush1.msra.mxu0 0.0
      %1393 = vmatprep.subr.mxu0 0.0
      %1394 = vmatpush1.msra.mxu0 0.0
      %1395 = vmatprep.subr.mxu0 0.0
      %1396 = vmatpush1.msra.mxu0 0.0
      %1397 = vmatprep.subr.mxu0 0.0
      %1398 = vmatpush1.msra.mxu0 0.0
      %1399 = vmatprep.subr.mxu0 0.0
      %1400 = vmatpush1.msra.mxu0 0.0
      %1401 = vmatprep.subr.mxu0 0.0
      %1402 = vmatpush1.msra.mxu0 0.0
      %1403 = vmatprep.subr.mxu0 0.0
      %1404 = vmatpush1.msra.mxu0 0.0
      %1405 = vmatprep.subr.mxu0 0.0
      %1406 = vmatpush1.msra.mxu0 0.0
      %1407 = vmatprep.subr.mxu0 0.0
      %1408 = vmatpush1.msra.mxu0 0.0
      %1409 = vmatprep.subr.mxu0 0.0
      %1410 = vmatpush1.msra.mxu0 0.0
      %1411 = vmatprep.subr.mxu0 0.0
      %1412 = vmatpush1.msra.mxu0 0.0
      %1413 = vmatprep.subr.mxu0 0.0
      %1414 = vmatpush1.msra.mxu0 0.0
      %1415 = vmatprep.subr.mxu0 0.0
      %1416 = vmatpush1.msra.mxu0 0.0
      %1417 = vmatprep.subr.mxu0 0.0
      %1418 = vmatpush1.msra.mxu0 0.0
      %1419 = vmatprep.subr.mxu0 0.0
      %1420 = vmatpush1.msra.mxu0 0.0
      %1421 = vmatprep.mubr.f32.mxu0 0.0
      %1422 = vmatmul.mubr.f32.gmra.mrb[0].mxu0 %v1355
      %v1423 = vpop.f32.mrb[0].mxu0
      %v1424 = vadd.f32 0.0, %v1423
      %v1425 = vpop.f32.mrb[0].mxu0
      %1426 = vdwg.mxu0
      %v1427 = vadd.f32 %v1352, %v1424
      %v1428 = vxor.u32 %v1427, 2147483648
      %v1429 = vmul.f32 %v1428, 1.442695
      %v1430 = vpow.pop %v1429
      %v1431 = vadd.f32 %v1430, 1.0
      %v1432 = vrcp.pop %v1431
      %v1433 = vmul.f32 1.0, %v1432
      %v1434 = vtanh.pop %v1427
      %v1435 = vld [vmem:[#allocation3] sm:$0x3]
      %1437 = vrot.lane.b32.xlu0 %v1435, 16
      %v1438 = vpop.permute.xlu0 %1437
      %v1440 = vmul.f32 %v1433, %v1438
      %1442 = vrot.lane.b32.xlu0 %v1434, 96
      %v1443 = vpop.permute.xlu0 %1442
      %v1445 = vmul.f32 %v1433, %v1443
      %1447 = vrot.lane.b32.xlu0 %v1445, 16
      %v1448 = vpop.permute.xlu0 %1447
      %v1450 = vadd.f32 %v1440, %v1448
      %v1451 = vtanh.pop %v1450
      %1453 = vrot.lane.b32.xlu0 %v1451, 32
      %v1454 = vpop.permute.xlu0 %1453
      %v1456 = vmul.f32 %v1433, %v1454
      %1458 = vrot.lane.b32.xlu0 %v1450, 112
      %v1459 = vpop.permute.xlu0 %1458
      %1461 = vst.msk [vmem:[#allocation3] sm:$0x3] %vm373, %v1459
      %1463 = vrot.lane.b32.xlu0 %v1456, 80
      %v1464 = vpop.permute.xlu0 %1463
      %1466 = vst.msk [vmem:[#allocation2] sm:$0x3] %vm373, %v1464
      %s1467 = scalar_lea.vmem %s245, %s1350
      %1468 = vst.msk [vmem:[%s1467] sm:$0x3] %vm373, %v1464
      %s1469 = smul.u32 %s18, 2
      %s1470 = ssub.s32 0, %s1469
      %s1471 = smul.u32 %s17, %s1470
      %s1472 = sadd.s32 %s18, %s1471
      %s1473 = smul.u32 10, %s1472
      %p1474 = scmp.lt.s32.totalorder %s17, 1
      %s1475 = scalar_select %p1474, %s17, 1
      %p1476 = scmp.lt.s32.totalorder %s1473, 9
      %s1477 = scalar_select %p1476, %s1473, 9
      %s1478 = smul.addr %s1475, 10
      %s1479 = sadd.s32 %s1477, %s1478
      %s1480 = smul.addr %s1479, 2
      %s1481 = scalar_lea.vmem %s2, %s1480
      // Predicated region
      $region33: #{esim_forward.8} parent=27 // pred_check
        %p1482 = pneg %p115
      $region34: #{esim_forward.8} parent=27 // pred_check_branch
        %1484 = sbr.rel (%p1482) target = $region36
      $region35: #{esim_forward.8} parent=27 // pred_region
        %s1485 = smul.u32 %s18, 2
        %s1486 = ssub.s32 0, %s1485
        %s1487 = smul.u32 %s17, %s1486
        %s1488 = sadd.s32 %s18, %s1487
        %s1489 = smul.u32 10, %s1488
      $region36: #{esim_forward.8} parent=27 // pred_fallthru
        _
    $region28: #{esim_forward.8} parent=5 // pred_fallthru
      _
    %p1490 = scmp.le.s32.totalorder 2, %s8
    // Predicated region
    $region37: #{esim_forward.8} parent=5 // pred_check
      %p1491 = pneg %p1490
    $region38: #{esim_forward.8} parent=5 // pred_check_branch
      %1493 = sbr.rel (%p1491) target = $region40
    $region39: #{esim_forward.8} parent=5 // pred_region
      %s1494 = ssub.s32 %s8, 2
      // Predicated region
      $region41: #{esim_forward.8} parent=39 // pred_check
        %p1495 = pneg %p121
      $region42: #{esim_forward.8} parent=39 // pred_check_branch
        %1497 = sbr.rel (%p1495) target = $region44
      $region43: #{esim_forward.8} parent=39 // pred_region
        %s1498 = smul.u32 %s20, 2
        %s1499 = ssub.s32 0, %s1498
        %s1500 = smul.u32 %s19, %s1499
        %s1501 = sadd.s32 %s20, %s1500
        %s1502 = smul.u32 10, %s1501
        %p1503 = scmp.lt.s32.totalorder %s19, 1
        %s1504 = scalar_select %p1503, %s19, 1
        %p1505 = scmp.lt.s32.totalorder %s1502, 9
        %s1506 = scalar_select %p1505, %s1502, 9
        %s1507 = smul.addr %s1504, 10
        %s1508 = sadd.s32 %s1506, %s1507
        %s1509 = smul.addr %s1508, 2
        %s1510 = scalar_lea.vmem %s2, %s1509
      $region44: #{esim_forward.8} parent=39 // pred_fallthru
        _
    $region40: #{esim_forward.8} parent=5 // pred_fallthru
      _
  $region6: #{esim_forward.8} parent=0 // loop_footer
    %s12 = sadd.s32 1, %s8
  $region7: #{esim_forward.8} parent=0 // loop_footer_branch
    %7 = sbr.rel target = $region3
  $region8: #{esim_forward.8} parent=0 // loop_exit
    _

// kernel: esim_forward.10
$region0: #{esim_forward.10}
  #allocation0 [shape = 'u32[]', space=smem, size = 0x4, offset = 0x4, fixed_abs, tag = 'smem constant byte address 0x4 - core index']
  #allocation1 [shape = 'u32[144,128]{1,0:T(1,128)}', space=vmem, size = 0x12000, scoped, tag = 'internal scratch']
  %s0 = inlined_call_operand.vmem [shape: f32[2,10,32], index: 0, kind: input, shape index: {}]
  %s1 = inlined_call_operand.vmem [shape: f32[2,8,32], index: 1, kind: input, shape index: {}]
  %s2 = inlined_call_operand.vmem [shape: f32[2,1,8], index: 2, kind: input, shape index: {}]
  %s3 = inlined_call_operand.vmem [shape: f32[2,10,32], index: 3, kind: output, shape index: {}]
  %s4 = sld [smem:[#allocation0]]
  $region22: #{esim_forward.10} parent=0
    _
  %s6 = ssub.s32 1, %s4
  %s7 = scalar_select 0, %s6, %s4
  // Predicated region
  $region2: #{esim_forward.10} parent=0 // pred_check
    _
  $region3: #{esim_forward.10} parent=0 // pred_check_branch
    %9 = sbr.rel (0) target = $region5
  $region4: #{esim_forward.10} parent=0 // pred_region
    _
  $region5: #{esim_forward.10} parent=0 // pred_fallthru
    _
  // Predicated region
  $region6: #{esim_forward.10} parent=0 // pred_check
    _
  $region7: #{esim_forward.10} parent=0 // pred_check_branch
    %11 = sbr.rel (0) target = $region9
  $region8: #{esim_forward.10} parent=0 // pred_region
    _
  $region9: #{esim_forward.10} parent=0 // pred_fallthru
    _
  // Predicated region
  $region10: #{esim_forward.10} parent=0 // pred_check
    _
  $region11: #{esim_forward.10} parent=0 // pred_check_branch
    %13 = sbr.rel (0) target = $region13
  $region12: #{esim_forward.10} parent=0 // pred_region
    _
  $region13: #{esim_forward.10} parent=0 // pred_fallthru
    _
  %v14 = vld [vmem:[%s0] sm:$0xff]
  %v15 = vld [vmem:[%s0 + $0x8] sm:$0x3]
  %v16 = vld [vmem:[%s0 + $0x10] sm:$0xff]
  %v17 = vld [vmem:[%s0 + $0x18] sm:$0x3]
  %v18 = vld [vmem:[%s1] sm:$0xff]
  %v19 = vld [vmem:[%s1 + $0x8] sm:$0xff]
  %v20 = vld [vmem:[%s2] sm:$0x1]
  %v21 = vld [vmem:[%s2 + $0x1] sm:$0x1]
  %vm22 = vcmask 261120
  %v24 = vsel %vm22, %v14, 0
  %v27 = vsel %vm22, %v15, 0
  %v30 = vsel %vm22, %v18, 0
  %32 = vmatprep.subr.mxu0 0.0
  %33 = vmatpush1.xpose.msra.mxu0 %v30
  %34 = vmatprep.subr.mxu0 0.0
  %35 = vmatpush1.xpose.msra.mxu0 0.0
  %36 = vmatprep.subr.mxu0 0.0
  %37 = vmatpush1.xpose.msra.mxu0 0.0
  %38 = vmatprep.subr.mxu0 0.0
  %39 = vmatpush1.xpose.msra.mxu0 0.0
  %40 = vmatprep.subr.mxu0 0.0
  %41 = vmatpush1.xpose.msra.mxu0 0.0
  %42 = vmatprep.subr.mxu0 0.0
  %43 = vmatpush1.xpose.msra.mxu0 0.0
  %44 = vmatprep.subr.mxu0 0.0
  %45 = vmatpush1.xpose.msra.mxu0 0.0
  %46 = vmatprep.subr.mxu0 0.0
  %47 = vmatpush1.xpose.msra.mxu0 0.0
  %48 = vmatprep.subr.mxu0 0.0
  %49 = vmatpush1.xpose.msra.mxu0 0.0
  %50 = vmatprep.subr.mxu0 0.0
  %51 = vmatpush1.xpose.msra.mxu0 0.0
  %52 = vmatprep.subr.mxu0 0.0
  %53 = vmatpush1.xpose.msra.mxu0 0.0
  %54 = vmatprep.subr.mxu0 0.0
  %55 = vmatpush1.xpose.msra.mxu0 0.0
  %56 = vmatprep.subr.mxu0 0.0
  %57 = vmatpush1.xpose.msra.mxu0 0.0
  %58 = vmatprep.subr.mxu0 0.0
  %59 = vmatpush1.xpose.msra.mxu0 0.0
  %60 = vmatprep.subr.mxu0 0.0
  %61 = vmatpush1.xpose.msra.mxu0 0.0
  %62 = vmatprep.subr.mxu0 0.0
  %63 = vmatpush1.xpose.msra.mxu0 0.0
  %64 = vmatprep.subr.mxu0 0.0
  %65 = vmatpush1.xpose.msra.mxu0 0.0
  %66 = vmatprep.subr.mxu0 0.0
  %67 = vmatpush1.xpose.msra.mxu0 0.0
  %68 = vmatprep.subr.mxu0 0.0
  %69 = vmatpush1.xpose.msra.mxu0 0.0
  %70 = vmatprep.subr.mxu0 0.0
  %71 = vmatpush1.xpose.msra.mxu0 0.0
  %72 = vmatprep.subr.mxu0 0.0
  %73 = vmatpush1.xpose.msra.mxu0 0.0
  %74 = vmatprep.subr.mxu0 0.0
  %75 = vmatpush1.xpose.msra.mxu0 0.0
  %76 = vmatprep.subr.mxu0 0.0
  %77 = vmatpush1.xpose.msra.mxu0 0.0
  %78 = vmatprep.subr.mxu0 0.0
  %79 = vmatpush1.xpose.msra.mxu0 0.0
  %80 = vmatprep.subr.mxu0 0.0
  %81 = vmatpush1.xpose.msra.mxu0 0.0
  %82 = vmatprep.subr.mxu0 0.0
  %83 = vmatpush1.xpose.msra.mxu0 0.0
  %84 = vmatprep.subr.mxu0 0.0
  %85 = vmatpush1.xpose.msra.mxu0 0.0
  %86 = vmatprep.subr.mxu0 0.0
  %87 = vmatpush1.xpose.msra.mxu0 0.0
  %88 = vmatprep.subr.mxu0 0.0
  %89 = vmatpush1.xpose.msra.mxu0 0.0
  %90 = vmatprep.subr.mxu0 0.0
  %91 = vmatpush1.xpose.msra.mxu0 0.0
  %92 = vmatprep.subr.mxu0 0.0
  %93 = vmatpush1.xpose.msra.mxu0 0.0
  %94 = vmatprep.subr.mxu0 0.0
  %95 = vmatpush1.xpose.msra.mxu0 0.0
  %96 = vmatprep.mubr.f32.mxu0 0.0
  %97 = vmatmul.mubr.f32.gmra.mrb[0].mxu0 %v24
  %v98 = vpop.f32.mrb[0].mxu0
  %v99 = vadd.f32 0.0, %v98
  %v100 = vpop.f32.mrb[0].mxu0
  %101 = vmatprep.mubr.f32.mxu0 0.0
  %102 = vmatmul.mubr.f32.gmra.mrb[0].mxu0 %v27
  %v103 = vpop.f32.mrb[0].mxu0
  %v104 = vadd.f32 0.0, %v103
  %v105 = vpop.f32.mrb[0].mxu0
  %106 = vdwg.mxu0
  %v108 = vsel %vm22, %v16, 0
  %v111 = vsel %vm22, %v17, 0
  %v114 = vsel %vm22, %v19, 0
  %116 = vmatprep.subr.mxu0 0.0
  %117 = vmatpush1.xpose.msra.mxu0 %v114
  %118 = vmatprep.subr.mxu0 0.0
  %119 = vmatpush1.xpose.msra.mxu0 0.0
  %120 = vmatprep.subr.mxu0 0.0
  %121 = vmatpush1.xpose.msra.mxu0 0.0
  %122 = vmatprep.subr.mxu0 0.0
  %123 = vmatpush1.xpose.msra.mxu0 0.0
  %124 = vmatprep.subr.mxu0 0.0
  %125 = vmatpush1.xpose.msra.mxu0 0.0
  %126 = vmatprep.subr.mxu0 0.0
  %127 = vmatpush1.xpose.msra.mxu0 0.0
  %128 = vmatprep.subr.mxu0 0.0
  %129 = vmatpush1.xpose.msra.mxu0 0.0
  %130 = vmatprep.subr.mxu0 0.0
  %131 = vmatpush1.xpose.msra.mxu0 0.0
  %132 = vmatprep.subr.mxu0 0.0
  %133 = vmatpush1.xpose.msra.mxu0 0.0
  %134 = vmatprep.subr.mxu0 0.0
  %135 = vmatpush1.xpose.msra.mxu0 0.0
  %136 = vmatprep.subr.mxu0 0.0
  %137 = vmatpush1.xpose.msra.mxu0 0.0
  %138 = vmatprep.subr.mxu0 0.0
  %139 = vmatpush1.xpose.msra.mxu0 0.0
  %140 = vmatprep.subr.mxu0 0.0
  %141 = vmatpush1.xpose.msra.mxu0 0.0
  %142 = vmatprep.subr.mxu0 0.0
  %143 = vmatpush1.xpose.msra.mxu0 0.0
  %144 = vmatprep.subr.mxu0 0.0
  %145 = vmatpush1.xpose.msra.mxu0 0.0
  %146 = vmatprep.subr.mxu0 0.0
  %147 = vmatpush1.xpose.msra.mxu0 0.0
  %148 = vmatprep.subr.mxu0 0.0
  %149 = vmatpush1.xpose.msra.mxu0 0.0
  %150 = vmatprep.subr.mxu0 0.0
  %151 = vmatpush1.xpose.msra.mxu0 0.0
  %152 = vmatprep.subr.mxu0 0.0
  %153 = vmatpush1.xpose.msra.mxu0 0.0
  %154 = vmatprep.subr.mxu0 0.0
  %155 = vmatpush1.xpose.msra.mxu0 0.0
  %156 = vmatprep.subr.mxu0 0.0
  %157 = vmatpush1.xpose.msra.mxu0 0.0
  %158 = vmatprep.subr.mxu0 0.0
  %159 = vmatpush1.xpose.msra.mxu0 0.0
  %160 = vmatprep.subr.mxu0 0.0
  %161 = vmatpush1.xpose.msra.mxu0 0.0
  %162 = vmatprep.subr.mxu0 0.0
  %163 = vmatpush1.xpose.msra.mxu0 0.0
  %164 = vmatprep.subr.mxu0 0.0
  %165 = vmatpush1.xpose.msra.mxu0 0.0
  %166 = vmatprep.subr.mxu0 0.0
  %167 = vmatpush1.xpose.msra.mxu0 0.0
  %168 = vmatprep.subr.mxu0 0.0
  %169 = vmatpush1.xpose.msra.mxu0 0.0
  %170 = vmatprep.subr.mxu0 0.0
  %171 = vmatpush1.xpose.msra.mxu0 0.0
  %172 = vmatprep.subr.mxu0 0.0
  %173 = vmatpush1.xpose.msra.mxu0 0.0
  %174 = vmatprep.subr.mxu0 0.0
  %175 = vmatpush1.xpose.msra.mxu0 0.0
  %176 = vmatprep.subr.mxu0 0.0
  %177 = vmatpush1.xpose.msra.mxu0 0.0
  %178 = vmatprep.subr.mxu0 0.0
  %179 = vmatpush1.xpose.msra.mxu0 0.0
  %180 = vmatprep.mubr.f32.mxu0 0.0
  %181 = vmatmul.mubr.f32.gmra.mrb[0].mxu0 %v108
  %v182 = vpop.f32.mrb[0].mxu0
  %v183 = vadd.f32 0.0, %v182
  %v184 = vpop.f32.mrb[0].mxu0
  %185 = vmatprep.mubr.f32.mxu0 0.0
  %186 = vmatmul.mubr.f32.gmra.mrb[0].mxu0 %v111
  %v187 = vpop.f32.mrb[0].mxu0
  %v188 = vadd.f32 0.0, %v187
  %v189 = vpop.f32.mrb[0].mxu0
  %190 = vdwg.mxu0
  %vm191 = vcmp.eq.f32.partialorder %v20, 0.0
  %vm192 = vcmp.eq.f32.partialorder %v21, 0.0
  %v193 = vsel %vm191, 1, 0
  %v194 = vsel %vm192, 1, 0
  %v195 = vlaneseq
  %v196 = vshrl.u32 %v195, 7
  %v197 = vsub.s32 0, %v196
  %v198 = vrot.slane %v193, %v197
  %v199 = vlaneseq
  %v200 = vshrl.u32 %v199, 7
  %v201 = vsub.s32 0, %v200
  %v202 = vrot.slane %v194, %v201
  %vm203 = vcmp.eq.s32.totalorder %v198, 1
  %vm204 = vcmp.eq.s32.totalorder %v202, 1
  %v205 = vsel %vm203, -1e+09, %v99
  %v206 = vsel %vm203, -1e+09, %v104
  %v207 = vsel %vm204, -1e+09, %v183
  %v208 = vsel %vm204, -1e+09, %v188
  %vm209 = vcmask 64512
  %v210 = vsel %vm209, %v205, -inf
  %vm211 = vcmask 58368
  %v212 = vsel %vm211, %v206, -inf
  %v213 = vmax.f32 %v210, %v212
  %v214 = vrot.slane %v213, 4
  %v215 = vmax.f32 %v213, %v214
  %v216 = vrot.slane %v215, 2
  %v217 = vmax.f32 %v215, %v216
  %v218 = vrot.slane %v217, 1
  %v219 = vmax.f32 %v217, %v218
  %v220 = vsel %vm209, %v207, -inf
  %v221 = vsel %vm211, %v208, -inf
  %v222 = vmax.f32 %v220, %v221
  %v223 = vrot.slane %v222, 4
  %v224 = vmax.f32 %v222, %v223
  %v225 = vrot.slane %v224, 2
  %v226 = vmax.f32 %v224, %v225
  %v227 = vrot.slane %v226, 1
  %v228 = vmax.f32 %v226, %v227
  %v229 = vsub.f32 %v205, %v219
  %v230 = vsub.f32 %v206, %v219
  %v231 = vsub.f32 %v207, %v228
  %v232 = vsub.f32 %v208, %v228
  %v233 = vmul.f32 %v229, 1.442695
  %v234 = vpow.pop %v233
  %v235 = vmul.f32 %v230, 1.442695
  %v236 = vpow.pop %v235
  %v237 = vmul.f32 %v231, 1.442695
  %v238 = vpow.pop %v237
  %v239 = vmul.f32 %v232, 1.442695
  %v240 = vpow.pop %v239
  %v241 = vsel %vm209, %v234, 0.0
  %v242 = vsel %vm211, %v236, 0.0
  %v243 = vadd.f32 %v241, %v242
  %v244 = vrot.slane %v243, 4
  %v245 = vadd.f32 %v243, %v244
  %v246 = vrot.slane %v245, 2
  %v247 = vadd.f32 %v245, %v246
  %v248 = vrot.slane %v247, 1
  %v249 = vadd.f32 %v247, %v248
  %v250 = vsel %vm209, %v238, 0.0
  %v251 = vsel %vm211, %v240, 0.0
  %v252 = vadd.f32 %v250, %v251
  %v253 = vrot.slane %v252, 4
  %v254 = vadd.f32 %v252, %v253
  %v255 = vrot.slane %v254, 2
  %v256 = vadd.f32 %v254, %v255
  %v257 = vrot.slane %v256, 1
  %v258 = vadd.f32 %v256, %v257
  %v259 = vrcp.pop %v249
  %v260 = vrcp.pop %v258
  %v261 = vmul.f32 %v234, %v259
  %v262 = vmul.f32 %v236, %v259
  %v263 = vmul.f32 %v238, %v260
  %v264 = vmul.f32 %v240, %v260
  %v266 = vsel %vm209, %v261, 0
  %v269 = vsel %vm209, %v262, 0
  %271 = vmatprep.subr.mxu0 0.0
  %272 = vmatpush1.msra.mxu0 %v18
  %273 = vmatprep.subr.mxu0 0.0
  %274 = vmatpush1.msra.mxu0 0.0
  %275 = vmatprep.subr.mxu0 0.0
  %276 = vmatpush1.msra.mxu0 0.0
  %277 = vmatprep.subr.mxu0 0.0
  %278 = vmatpush1.msra.mxu0 0.0
  %279 = vmatprep.subr.mxu0 0.0
  %280 = vmatpush1.msra.mxu0 0.0
  %281 = vmatprep.subr.mxu0 0.0
  %282 = vmatpush1.msra.mxu0 0.0
  %283 = vmatprep.subr.mxu0 0.0
  %284 = vmatpush1.msra.mxu0 0.0
  %285 = vmatprep.subr.mxu0 0.0
  %286 = vmatpush1.msra.mxu0 0.0
  %287 = vmatprep.subr.mxu0 0.0
  %288 = vmatpush1.msra.mxu0 0.0
  %289 = vmatprep.subr.mxu0 0.0
  %290 = vmatpush1.msra.mxu0 0.0
  %291 = vmatprep.subr.mxu0 0.0
  %292 = vmatpush1.msra.mxu0 0.0
  %293 = vmatprep.subr.mxu0 0.0
  %294 = vmatpush1.msra.mxu0 0.0
  %295 = vmatprep.subr.mxu0 0.0
  %296 = vmatpush1.msra.mxu0 0.0
  %297 = vmatprep.subr.mxu0 0.0
  %298 = vmatpush1.msra.mxu0 0.0
  %299 = vmatprep.subr.mxu0 0.0
  %300 = vmatpush1.msra.mxu0 0.0
  %301 = vmatprep.subr.mxu0 0.0
  %302 = vmatpush1.msra.mxu0 0.0
  %303 = vmatprep.subr.mxu0 0.0
  %304 = vmatpush1.msra.mxu0 0.0
  %305 = vmatprep.subr.mxu0 0.0
  %306 = vmatpush1.msra.mxu0 0.0
  %307 = vmatprep.subr.mxu0 0.0
  %308 = vmatpush1.msra.mxu0 0.0
  %309 = vmatprep.subr.mxu0 0.0
  %310 = vmatpush1.msra.mxu0 0.0
  %311 = vmatprep.subr.mxu0 0.0
  %312 = vmatpush1.msra.mxu0 0.0
  %313 = vmatprep.subr.mxu0 0.0
  %314 = vmatpush1.msra.mxu0 0.0
  %315 = vmatprep.subr.mxu0 0.0
  %316 = vmatpush1.msra.mxu0 0.0
  %317 = vmatprep.subr.mxu0 0.0
  %318 = vmatpush1.msra.mxu0 0.0
  %319 = vmatprep.subr.mxu0 0.0
  %320 = vmatpush1.msra.mxu0 0.0
  %321 = vmatprep.subr.mxu0 0.0
  %322 = vmatpush1.msra.mxu0 0.0
  %323 = vmatprep.subr.mxu0 0.0
  %324 = vmatpush1.msra.mxu0 0.0
  %325 = vmatprep.subr.mxu0 0.0
  %326 = vmatpush1.msra.mxu0 0.0
  %327 = vmatprep.subr.mxu0 0.0
  %328 = vmatpush1.msra.mxu0 0.0
  %329 = vmatprep.subr.mxu0 0.0
  %330 = vmatpush1.msra.mxu0 0.0
  %331 = vmatprep.subr.mxu0 0.0
  %332 = vmatpush1.msra.mxu0 0.0
  %333 = vmatprep.subr.mxu0 0.0
  %334 = vmatpush1.msra.mxu0 0.0
  %335 = vmatprep.mubr.f32.mxu0 0.0
  %336 = vmatmul.mubr.f32.gmra.mrb[0].mxu0 %v266
  %v337 = vpop.f32.mrb[0].mxu0
  %v338 = vadd.f32 0.0, %v337
  %v339 = vpop.f32.mrb[0].mxu0
  %340 = vmatprep.mubr.f32.mxu0 0.0
  %341 = vmatmul.mubr.f32.gmra.mrb[0].mxu0 %v269
  %v342 = vpop.f32.mrb[0].mxu0
  %v343 = vadd.f32 0.0, %v342
  %v344 = vpop.f32.mrb[0].mxu0
  %345 = vdwg.mxu0
  %v347 = vsel %vm209, %v263, 0
  %v350 = vsel %vm209, %v264, 0
  %352 = vmatprep.subr.mxu0 0.0
  %353 = vmatpush1.msra.mxu0 %v19
  %354 = vmatprep.subr.mxu0 0.0
  %355 = vmatpush1.msra.mxu0 0.0
  %356 = vmatprep.subr.mxu0 0.0
  %357 = vmatpush1.msra.mxu0 0.0
  %358 = vmatprep.subr.mxu0 0.0
  %359 = vmatpush1.msra.mxu0 0.0
  %360 = vmatprep.subr.mxu0 0.0
  %361 = vmatpush1.msra.mxu0 0.0
  %362 = vmatprep.subr.mxu0 0.0
  %363 = vmatpush1.msra.mxu0 0.0
  %364 = vmatprep.subr.mxu0 0.0
  %365 = vmatpush1.msra.mxu0 0.0
  %366 = vmatprep.subr.mxu0 0.0
  %367 = vmatpush1.msra.mxu0 0.0
  %368 = vmatprep.subr.mxu0 0.0
  %369 = vmatpush1.msra.mxu0 0.0
  %370 = vmatprep.subr.mxu0 0.0
  %371 = vmatpush1.msra.mxu0 0.0
  %372 = vmatprep.subr.mxu0 0.0
  %373 = vmatpush1.msra.mxu0 0.0
  %374 = vmatprep.subr.mxu0 0.0
  %375 = vmatpush1.msra.mxu0 0.0
  %376 = vmatprep.subr.mxu0 0.0
  %377 = vmatpush1.msra.mxu0 0.0
  %378 = vmatprep.subr.mxu0 0.0
  %379 = vmatpush1.msra.mxu0 0.0
  %380 = vmatprep.subr.mxu0 0.0
  %381 = vmatpush1.msra.mxu0 0.0
  %382 = vmatprep.subr.mxu0 0.0
  %383 = vmatpush1.msra.mxu0 0.0
  %384 = vmatprep.subr.mxu0 0.0
  %385 = vmatpush1.msra.mxu0 0.0
  %386 = vmatprep.subr.mxu0 0.0
  %387 = vmatpush1.msra.mxu0 0.0
  %388 = vmatprep.subr.mxu0 0.0
  %389 = vmatpush1.msra.mxu0 0.0
  %390 = vmatprep.subr.mxu0 0.0
  %391 = vmatpush1.msra.mxu0 0.0
  %392 = vmatprep.subr.mxu0 0.0
  %393 = vmatpush1.msra.mxu0 0.0
  %394 = vmatprep.subr.mxu0 0.0
  %395 = vmatpush1.msra.mxu0 0.0
  %396 = vmatprep.subr.mxu0 0.0
  %397 = vmatpush1.msra.mxu0 0.0
  %398 = vmatprep.subr.mxu0 0.0
  %399 = vmatpush1.msra.mxu0 0.0
  %400 = vmatprep.subr.mxu0 0.0
  %401 = vmatpush1.msra.mxu0 0.0
  %402 = vmatprep.subr.mxu0 0.0
  %403 = vmatpush1.msra.mxu0 0.0
  %404 = vmatprep.subr.mxu0 0.0
  %405 = vmatpush1.msra.mxu0 0.0
  %406 = vmatprep.subr.mxu0 0.0
  %407 = vmatpush1.msra.mxu0 0.0
  %408 = vmatprep.subr.mxu0 0.0
  %409 = vmatpush1.msra.mxu0 0.0
  %410 = vmatprep.subr.mxu0 0.0
  %411 = vmatpush1.msra.mxu0 0.0
  %412 = vmatprep.subr.mxu0 0.0
  %413 = vmatpush1.msra.mxu0 0.0
  %414 = vmatprep.subr.mxu0 0.0
  %415 = vmatpush1.msra.mxu0 0.0
  %416 = vmatprep.mubr.f32.mxu0 0.0
  %417 = vmatmul.mubr.f32.gmra.mrb[0].mxu0 %v347
  %v418 = vpop.f32.mrb[0].mxu0
  %v419 = vadd.f32 0.0, %v418
  %v420 = vpop.f32.mrb[0].mxu0
  %421 = vmatprep.mubr.f32.mxu0 0.0
  %422 = vmatmul.mubr.f32.gmra.mrb[0].mxu0 %v350
  %v423 = vpop.f32.mrb[0].mxu0
  %v424 = vadd.f32 0.0, %v423
  %v425 = vpop.f32.mrb[0].mxu0
  %426 = vdwg.mxu0
  %427 = vst.msk [vmem:[%s3] sm:$0xff] %vm22, %v338
  %vm428 = vcmask 254976
  %429 = vst.msk [vmem:[%s3 + $0x8] sm:$0x3] %vm428, %v343
  %430 = vst.msk [vmem:[%s3 + $0x10] sm:$0xff] %vm22, %v419
  %431 = vst.msk [vmem:[%s3 + $0x18] sm:$0x3] %vm428, %v424
  // Predicated region
  $region14: #{esim_forward.10} parent=0 // pred_check
    _
  $region15: #{esim_forward.10} parent=0 // pred_check_branch
    %433 = sbr.rel (0) target = $region17
  $region16: #{esim_forward.10} parent=0 // pred_region
    _
  $region17: #{esim_forward.10} parent=0 // pred_fallthru
    _
  // Predicated region
  $region18: #{esim_forward.10} parent=0 // pred_check
    _
  $region19: #{esim_forward.10} parent=0 // pred_check_branch
    %435 = sbr.rel (0) target = $region21
  $region20: #{esim_forward.10} parent=0 // pred_region
    _
  $region21: #{esim_forward.10} parent=0 // pred_fallthru
    _

// kernel: esim_forward.13
$region0: #{esim_forward.13}
  #allocation0 [shape = 'u32[]', space=smem, size = 0x4, offset = 0x4, fixed_abs, tag = 'smem constant byte address 0x4 - core index']
  #allocation1 [shape = 'u32[144,128]{1,0:T(1,128)}', space=vmem, size = 0x12000, scoped, tag = 'internal scratch']
  %s0 = inlined_call_operand.vmem [shape: f32[8,2,32], index: 0, kind: input, shape index: {}]
  %s1 = inlined_call_operand.vmem [shape: f32[8,2,1], index: 1, kind: input, shape index: {}]
  %s2 = inlined_call_operand.vmem [shape: f32[10,2,32], index: 2, kind: input, shape index: {}]
  %s3 = inlined_call_operand.vmem [shape: f32[10,2,1], index: 3, kind: input, shape index: {}]
  %s4 = inlined_call_operand.vmem [shape: f32[128,32], index: 4, kind: input, shape index: {}]
  %s5 = inlined_call_operand.vmem [shape: f32[1,32], index: 5, kind: input, shape index: {}]
  %s6 = inlined_call_operand.vmem [shape: f32[32,2], index: 6, kind: input, shape index: {}]
  %s7 = inlined_call_operand.vmem [shape: f32[1,2], index: 7, kind: input, shape index: {}]
  %s8 = inlined_call_operand.hbm [shape: f32[2,2], index: 8, kind: output, shape index: {}]
  %s9 = sld [smem:[#allocation0]]
  $region42: #{esim_forward.13} parent=0
    _
  %s11 = ssub.s32 1, %s9
  %s12 = scalar_select 0, %s11, %s9
  $region1: #{esim_forward.13} parent=0
    #allocation2 [shape = 'u8[1024]{0}', space=vmem, size = 0x400, scoped, tag = 'output window, operand 0, single buffered']
    #allocation3 [shape = 's32[1]{0}', space=sflag, size = 0x4, scoped, tag = 'scoped memory for esim_forward.13']
    %13 = vsyncpa [#allocation3], 0
    // Predicated region
    $region2: #{esim_forward.13} parent=1 // pred_check
      _
    $region3: #{esim_forward.13} parent=1 // pred_check_branch
      %15 = sbr.rel (0) target = $region5
    $region4: #{esim_forward.13} parent=1 // pred_region
      _
    $region5: #{esim_forward.13} parent=1 // pred_fallthru
      _
    // Predicated region
    $region6: #{esim_forward.13} parent=1 // pred_check
      _
    $region7: #{esim_forward.13} parent=1 // pred_check_branch
      %17 = sbr.rel (0) target = $region9
    $region8: #{esim_forward.13} parent=1 // pred_region
      _
    $region9: #{esim_forward.13} parent=1 // pred_fallthru
      _
    // Predicated region
    $region10: #{esim_forward.13} parent=1 // pred_check
      _
    $region11: #{esim_forward.13} parent=1 // pred_check_branch
      %19 = sbr.rel (0) target = $region13
    $region12: #{esim_forward.13} parent=1 // pred_region
      _
    $region13: #{esim_forward.13} parent=1 // pred_fallthru
      _
    // Predicated region
    $region14: #{esim_forward.13} parent=1 // pred_check
      _
    $region15: #{esim_forward.13} parent=1 // pred_check_branch
      %21 = sbr.rel (0) target = $region17
    $region16: #{esim_forward.13} parent=1 // pred_region
      _
    $region17: #{esim_forward.13} parent=1 // pred_fallthru
      _
    // Predicated region
    $region18: #{esim_forward.13} parent=1 // pred_check
      _
    $region19: #{esim_forward.13} parent=1 // pred_check_branch
      %23 = sbr.rel (0) target = $region21
    $region20: #{esim_forward.13} parent=1 // pred_region
      _
    $region21: #{esim_forward.13} parent=1 // pred_fallthru
      _
    // Predicated region
    $region22: #{esim_forward.13} parent=1 // pred_check
      _
    $region23: #{esim_forward.13} parent=1 // pred_check_branch
      %25 = sbr.rel (0) target = $region25
    $region24: #{esim_forward.13} parent=1 // pred_region
      _
    $region25: #{esim_forward.13} parent=1 // pred_fallthru
      _
    // Predicated region
    $region26: #{esim_forward.13} parent=1 // pred_check
      _
    $region27: #{esim_forward.13} parent=1 // pred_check_branch
      %27 = sbr.rel (0) target = $region29
    $region28: #{esim_forward.13} parent=1 // pred_region
      _
    $region29: #{esim_forward.13} parent=1 // pred_fallthru
      _
    // Predicated region
    $region30: #{esim_forward.13} parent=1 // pred_check
      _
    $region31: #{esim_forward.13} parent=1 // pred_check_branch
      %29 = sbr.rel (0) target = $region33
    $region32: #{esim_forward.13} parent=1 // pred_region
      _
    $region33: #{esim_forward.13} parent=1 // pred_fallthru
      _
    %v30 = vld [vmem:[%s0] sm:$0x3]
    %v31 = vld [vmem:[%s0 + $0x2] sm:$0x3]
    %v32 = vld [vmem:[%s0 + $0x4] sm:$0x3]
    %v33 = vld [vmem:[%s0 + $0x6] sm:$0x3]
    %v34 = vld [vmem:[%s0 + $0x8] sm:$0x3]
    %v35 = vld [vmem:[%s0 + $0xa] sm:$0x3]
    %v36 = vld [vmem:[%s0 + $0xc] sm:$0x3]
    %v37 = vld [vmem:[%s0 + $0xe] sm:$0x3]
    %v38 = vld [vmem:[%s1] sm:$0x3]
    %v39 = vld [vmem:[%s1 + $0x2] sm:$0x3]
    %v40 = vld [vmem:[%s1 + $0x4] sm:$0x3]
    %v41 = vld [vmem:[%s1 + $0x6] sm:$0x3]
    %v42 = vld [vmem:[%s1 + $0x8] sm:$0x3]
    %v43 = vld [vmem:[%s1 + $0xa] sm:$0x3]
    %v44 = vld [vmem:[%s1 + $0xc] sm:$0x3]
    %v45 = vld [vmem:[%s1 + $0xe] sm:$0x3]
    %vm46 = vcmp.eq.f32.partialorder %v38, 0.0
    %vm47 = vcmp.eq.f32.partialorder %v39, 0.0
    %vm48 = vcmp.eq.f32.partialorder %v40, 0.0
    %vm49 = vcmp.eq.f32.partialorder %v41, 0.0
    %vm50 = vcmp.eq.f32.partialorder %v42, 0.0
    %vm51 = vcmp.eq.f32.partialorder %v43, 0.0
    %vm52 = vcmp.eq.f32.partialorder %v44, 0.0
    %vm53 = vcmp.eq.f32.partialorder %v45, 0.0
    %v54 = vsel %vm46, 1, 0
    %v55 = vsel %vm47, 1, 0
    %v56 = vsel %vm48, 1, 0
    %v57 = vsel %vm49, 1, 0
    %v58 = vsel %vm50, 1, 0
    %v59 = vsel %vm51, 1, 0
    %v60 = vsel %vm52, 1, 0
    %v61 = vsel %vm53, 1, 0
    %62 = vset.pattern.permute.xlu0 0
    %63 = vperm.xlu0 %62, %v54
    %v64 = vpop.permute.xlu0 %63
    %65 = vset.pattern.permute.xlu0 0
    %66 = vperm.xlu0 %65, %v55
    %v67 = vpop.permute.xlu0 %66
    %68 = vset.pattern.permute.xlu0 0
    %69 = vperm.xlu0 %68, %v56
    %v70 = vpop.permute.xlu0 %69
    %71 = vset.pattern.permute.xlu0 0
    %72 = vperm.xlu0 %71, %v57
    %v73 = vpop.permute.xlu0 %72
    %74 = vset.pattern.permute.xlu0 0
    %75 = vperm.xlu0 %74, %v58
    %v76 = vpop.permute.xlu0 %75
    %77 = vset.pattern.permute.xlu0 0
    %78 = vperm.xlu0 %77, %v59
    %v79 = vpop.permute.xlu0 %78
    %80 = vset.pattern.permute.xlu0 0
    %81 = vperm.xlu0 %80, %v60
    %v82 = vpop.permute.xlu0 %81
    %83 = vset.pattern.permute.xlu0 0
    %84 = vperm.xlu0 %83, %v61
    %v85 = vpop.permute.xlu0 %84
    %vm86 = vcmp.eq.s32.totalorder %v64, 1
    %vm87 = vcmp.eq.s32.totalorder %v67, 1
    %vm88 = vcmp.eq.s32.totalorder %v70, 1
    %vm89 = vcmp.eq.s32.totalorder %v73, 1
    %vm90 = vcmp.eq.s32.totalorder %v76, 1
    %vm91 = vcmp.eq.s32.totalorder %v79, 1
    %vm92 = vcmp.eq.s32.totalorder %v82, 1
    %vm93 = vcmp.eq.s32.totalorder %v85, 1
    %v94 = vsel %vm86, -inf, %v30
    %v95 = vsel %vm87, -inf, %v31
    %v96 = vsel %vm88, -inf, %v32
    %v97 = vsel %vm89, -inf, %v33
    %v98 = vsel %vm90, -inf, %v34
    %v99 = vsel %vm91, -inf, %v35
    %v100 = vsel %vm92, -inf, %v36
    %v101 = vsel %vm93, -inf, %v37
    %vm102 = vcmask 254976
    %v103 = vsel %vm102, %v94, -inf
    %v104 = vsel %vm102, %v95, -inf
    %v105 = vsel %vm102, %v96, -inf
    %v106 = vsel %vm102, %v97, -inf
    %v107 = vsel %vm102, %v98, -inf
    %v108 = vmax.f32 %v103, %v107
    %v109 = vsel %vm102, %v99, -inf
    %v110 = vmax.f32 %v104, %v109
    %v111 = vsel %vm102, %v100, -inf
    %v112 = vmax.f32 %v105, %v111
    %v113 = vsel %vm102, %v101, -inf
    %v114 = vmax.f32 %v106, %v113
    %v115 = vmax.f32 %v108, %v110
    %v116 = vmax.f32 %v112, %v114
    %v117 = vmax.f32 %v115, %v116
    %v118 = vsel %vm86, 0.0, %v30
    %v119 = vsel %vm87, 0.0, %v31
    %v120 = vsel %vm88, 0.0, %v32
    %v121 = vsel %vm89, 0.0, %v33
    %v122 = vsel %vm90, 0.0, %v34
    %v123 = vsel %vm91, 0.0, %v35
    %v124 = vsel %vm92, 0.0, %v36
    %v125 = vsel %vm93, 0.0, %v37
    %v126 = vsel %vm102, %v118, 0.0
    %v127 = vsel %vm102, %v119, 0.0
    %v128 = vadd.f32 %v126, %v127
    %v129 = vsel %vm102, %v120, 0.0
    %v130 = vadd.f32 %v128, %v129
    %v131 = vsel %vm102, %v121, 0.0
    %v132 = vadd.f32 %v130, %v131
    %v133 = vsel %vm102, %v122, 0.0
    %v134 = vadd.f32 %v132, %v133
    %v135 = vsel %vm102, %v123, 0.0
    %v136 = vadd.f32 %v134, %v135
    %v137 = vsel %vm102, %v124, 0.0
    %v138 = vadd.f32 %v136, %v137
    %v139 = vsel %vm102, %v125, 0.0
    %v140 = vadd.f32 %v138, %v139
    %vm141 = vcmask 1024
    %v142 = vsel %vm141, %v38, 0.0
    %v143 = vsel %vm141, %v39, 0.0
    %v144 = vadd.f32 %v142, %v143
    %v145 = vsel %vm141, %v40, 0.0
    %v146 = vadd.f32 %v144, %v145
    %v147 = vsel %vm141, %v41, 0.0
    %v148 = vadd.f32 %v146, %v147
    %v149 = vsel %vm141, %v42, 0.0
    %v150 = vadd.f32 %v148, %v149
    %v151 = vsel %vm141, %v43, 0.0
    %v152 = vadd.f32 %v150, %v151
    %v153 = vsel %vm141, %v44, 0.0
    %v154 = vadd.f32 %v152, %v153
    %v155 = vsel %vm141, %v45, 0.0
    %v156 = vadd.f32 %v154, %v155
    %158 = vset.pattern.permute.xlu0 0
    %159 = vperm.xlu0 %158, %v156
    %v160 = vpop.permute.xlu0 %159
    %v162 = vrcp.pop %v160
    %v163 = vmul.f32 %v140, %v162
    %v164 = vld [vmem:[%s2] sm:$0x3]
    %v165 = vld [vmem:[%s2 + $0x2] sm:$0x3]
    %v166 = vld [vmem:[%s2 + $0x4] sm:$0x3]
    %v167 = vld [vmem:[%s2 + $0x6] sm:$0x3]
    %v168 = vld [vmem:[%s2 + $0x8] sm:$0x3]
    %v169 = vld [vmem:[%s2 + $0xa] sm:$0x3]
    %v170 = vld [vmem:[%s2 + $0xc] sm:$0x3]
    %v171 = vld [vmem:[%s2 + $0xe] sm:$0x3]
    %v172 = vld [vmem:[%s2 + $0x10] sm:$0x3]
    %v173 = vld [vmem:[%s2 + $0x12] sm:$0x3]
    %v174 = vld [vmem:[%s3] sm:$0x3]
    %v175 = vld [vmem:[%s3 + $0x2] sm:$0x3]
    %v176 = vld [vmem:[%s3 + $0x4] sm:$0x3]
    %v177 = vld [vmem:[%s3 + $0x6] sm:$0x3]
    %v178 = vld [vmem:[%s3 + $0x8] sm:$0x3]
    %v179 = vld [vmem:[%s3 + $0xa] sm:$0x3]
    %v180 = vld [vmem:[%s3 + $0xc] sm:$0x3]
    %v181 = vld [vmem:[%s3 + $0xe] sm:$0x3]
    %v182 = vld [vmem:[%s3 + $0x10] sm:$0x3]
    %v183 = vld [vmem:[%s3 + $0x12] sm:$0x3]
    %vm184 = vcmp.eq.f32.partialorder %v174, 0.0
    %vm185 = vcmp.eq.f32.partialorder %v175, 0.0
    %vm186 = vcmp.eq.f32.partialorder %v176, 0.0
    %vm187 = vcmp.eq.f32.partialorder %v177, 0.0
    %vm188 = vcmp.eq.f32.partialorder %v178, 0.0
    %vm189 = vcmp.eq.f32.partialorder %v179, 0.0
    %vm190 = vcmp.eq.f32.partialorder %v180, 0.0
    %vm191 = vcmp.eq.f32.partialorder %v181, 0.0
    %vm192 = vcmp.eq.f32.partialorder %v182, 0.0
    %vm193 = vcmp.eq.f32.partialorder %v183, 0.0
    %v194 = vsel %vm184, 1, 0
    %v195 = vsel %vm185, 1, 0
    %v196 = vsel %vm186, 1, 0
    %v197 = vsel %vm187, 1, 0
    %v198 = vsel %vm188, 1, 0
    %v199 = vsel %vm189, 1, 0
    %v200 = vsel %vm190, 1, 0
    %v201 = vsel %vm191, 1, 0
    %v202 = vsel %vm192, 1, 0
    %v203 = vsel %vm193, 1, 0
    %204 = vset.pattern.permute.xlu0 0
    %205 = vperm.xlu0 %204, %v194
    %v206 = vpop.permute.xlu0 %205
    %207 = vset.pattern.permute.xlu0 0
    %208 = vperm.xlu0 %207, %v195
    %v209 = vpop.permute.xlu0 %208
    %210 = vset.pattern.permute.xlu0 0
    %211 = vperm.xlu0 %210, %v196
    %v212 = vpop.permute.xlu0 %211
    %213 = vset.pattern.permute.xlu0 0
    %214 = vperm.xlu0 %213, %v197
    %v215 = vpop.permute.xlu0 %214
    %216 = vset.pattern.permute.xlu0 0
    %217 = vperm.xlu0 %216, %v198
    %v218 = vpop.permute.xlu0 %217
    %219 = vset.pattern.permute.xlu0 0
    %220 = vperm.xlu0 %219, %v199
    %v221 = vpop.permute.xlu0 %220
    %222 = vset.pattern.permute.xlu0 0
    %223 = vperm.xlu0 %222, %v200
    %v224 = vpop.permute.xlu0 %223
    %225 = vset.pattern.permute.xlu0 0
    %226 = vperm.xlu0 %225, %v201
    %v227 = vpop.permute.xlu0 %226
    %228 = vset.pattern.permute.xlu0 0
    %229 = vperm.xlu0 %228, %v202
    %v230 = vpop.permute.xlu0 %229
    %231 = vset.pattern.permute.xlu0 0
    %232 = vperm.xlu0 %231, %v203
    %v233 = vpop.permute.xlu0 %232
    %vm234 = vcmp.eq.s32.totalorder %v206, 1
    %vm235 = vcmp.eq.s32.totalorder %v209, 1
    %vm236 = vcmp.eq.s32.totalorder %v212, 1
    %vm237 = vcmp.eq.s32.totalorder %v215, 1
    %vm238 = vcmp.eq.s32.totalorder %v218, 1
    %vm239 = vcmp.eq.s32.totalorder %v221, 1
    %vm240 = vcmp.eq.s32.totalorder %v224, 1
    %vm241 = vcmp.eq.s32.totalorder %v227, 1
    %vm242 = vcmp.eq.s32.totalorder %v230, 1
    %vm243 = vcmp.eq.s32.totalorder %v233, 1
    %v244 = vsel %vm234, -inf, %v164
    %v245 = vsel %vm235, -inf, %v165
    %v246 = vsel %vm236, -inf, %v166
    %v247 = vsel %vm237, -inf, %v167
    %v248 = vsel %vm238, -inf, %v168
    %v249 = vsel %vm239, -inf, %v169
    %v250 = vsel %vm240, -inf, %v170
    %v251 = vsel %vm241, -inf, %v171
    %v252 = vsel %vm242, -inf, %v172
    %v253 = vsel %vm243, -inf, %v173
    %v254 = vsel %vm102, %v244, -inf
    %v255 = vsel %vm102, %v245, -inf
    %v256 = vsel %vm102, %v246, -inf
    %v257 = vsel %vm102, %v247, -inf
    %v258 = vsel %vm102, %v248, -inf
    %v259 = vmax.f32 %v254, %v258
    %v260 = vsel %vm102, %v249, -inf
    %v261 = vmax.f32 %v255, %v260
    %v262 = vsel %vm102, %v250, -inf
    %v263 = vmax.f32 %v256, %v262
    %v264 = vsel %vm102, %v251, -inf
    %v265 = vmax.f32 %v257, %v264
    %v266 = vsel %vm102, %v252, -inf
    %v267 = vmax.f32 %v259, %v266
    %v268 = vsel %vm102, %v253, -inf
    %v269 = vmax.f32 %v261, %v268
    %v270 = vmax.f32 %v267, %v269
    %v271 = vmax.f32 %v263, %v265
    %v272 = vmax.f32 %v270, %v271
    %v273 = vsel %vm234, 0.0, %v164
    %v274 = vsel %vm235, 0.0, %v165
    %v275 = vsel %vm236, 0.0, %v166
    %v276 = vsel %vm237, 0.0, %v167
    %v277 = vsel %vm238, 0.0, %v168
    %v278 = vsel %vm239, 0.0, %v169
    %v279 = vsel %vm240, 0.0, %v170
    %v280 = vsel %vm241, 0.0, %v171
    %v281 = vsel %vm242, 0.0, %v172
    %v282 = vsel %vm243, 0.0, %v173
    %v283 = vsel %vm102, %v273, 0.0
    %v284 = vsel %vm102, %v274, 0.0
    %v285 = vadd.f32 %v283, %v284
    %v286 = vsel %vm102, %v275, 0.0
    %v287 = vadd.f32 %v285, %v286
    %v288 = vsel %vm102, %v276, 0.0
    %v289 = vadd.f32 %v287, %v288
    %v290 = vsel %vm102, %v277, 0.0
    %v291 = vadd.f32 %v289, %v290
    %v292 = vsel %vm102, %v278, 0.0
    %v293 = vadd.f32 %v291, %v292
    %v294 = vsel %vm102, %v279, 0.0
    %v295 = vadd.f32 %v293, %v294
    %v296 = vsel %vm102, %v280, 0.0
    %v297 = vadd.f32 %v295, %v296
    %v298 = vsel %vm102, %v281, 0.0
    %v299 = vadd.f32 %v297, %v298
    %v300 = vsel %vm102, %v282, 0.0
    %v301 = vadd.f32 %v299, %v300
    %v302 = vsel %vm141, %v174, 0.0
    %v303 = vsel %vm141, %v175, 0.0
    %v304 = vadd.f32 %v302, %v303
    %v305 = vsel %vm141, %v176, 0.0
    %v306 = vadd.f32 %v304, %v305
    %v307 = vsel %vm141, %v177, 0.0
    %v308 = vadd.f32 %v306, %v307
    %v309 = vsel %vm141, %v178, 0.0
    %v310 = vadd.f32 %v308, %v309
    %v311 = vsel %vm141, %v179, 0.0
    %v312 = vadd.f32 %v310, %v311
    %v313 = vsel %vm141, %v180, 0.0
    %v314 = vadd.f32 %v312, %v313
    %v315 = vsel %vm141, %v181, 0.0
    %v316 = vadd.f32 %v314, %v315
    %v317 = vsel %vm141, %v182, 0.0
    %v318 = vadd.f32 %v316, %v317
    %v319 = vsel %vm141, %v183, 0.0
    %v320 = vadd.f32 %v318, %v319
    %322 = vset.pattern.permute.xlu0 0
    %323 = vperm.xlu0 %322, %v320
    %v324 = vpop.permute.xlu0 %323
    %v326 = vrcp.pop %v324
    %v327 = vmul.f32 %v301, %v326
    %v328 = vld [vmem:[%s4] sm:$0xff]
    %v329 = vld [vmem:[%s4 + $0x8] sm:$0xff]
    %v330 = vld [vmem:[%s4 + $0x10] sm:$0xff]
    %v331 = vld [vmem:[%s4 + $0x18] sm:$0xff]
    %v332 = vld [vmem:[%s4 + $0x20] sm:$0xff]
    %v333 = vld [vmem:[%s4 + $0x28] sm:$0xff]
    %v334 = vld [vmem:[%s4 + $0x30] sm:$0xff]
    %v335 = vld [vmem:[%s4 + $0x38] sm:$0xff]
    %v336 = vld [vmem:[%s4 + $0x40] sm:$0xff]
    %v337 = vld [vmem:[%s4 + $0x48] sm:$0xff]
    %v338 = vld [vmem:[%s4 + $0x50] sm:$0xff]
    %v339 = vld [vmem:[%s4 + $0x58] sm:$0xff]
    %v340 = vld [vmem:[%s4 + $0x60] sm:$0xff]
    %v341 = vld [vmem:[%s4 + $0x68] sm:$0xff]
    %v342 = vld [vmem:[%s4 + $0x70] sm:$0xff]
    %v343 = vld [vmem:[%s4 + $0x78] sm:$0xff]
    %vm344 = vcmask 261120
    %v346 = vsel %vm344, %v327, 0
    %348 = vmatprep.subr.mxu0 0.0
    %349 = vmatpush1.msra.mxu0 %v332
    %350 = vmatprep.subr.mxu0 0.0
    %351 = vmatpush1.msra.mxu0 %v333
    %352 = vmatprep.subr.mxu0 0.0
    %353 = vmatpush1.msra.mxu0 %v334
    %354 = vmatprep.subr.mxu0 0.0
    %355 = vmatpush1.msra.mxu0 %v335
    %356 = vmatprep.subr.mxu0 0.0
    %357 = vmatpush1.msra.mxu0 0.0
    %358 = vmatprep.subr.mxu0 0.0
    %359 = vmatpush1.msra.mxu0 0.0
    %360 = vmatprep.subr.mxu0 0.0
    %361 = vmatpush1.msra.mxu0 0.0
    %362 = vmatprep.subr.mxu0 0.0
    %363 = vmatpush1.msra.mxu0 0.0
    %364 = vmatprep.subr.mxu0 0.0
    %365 = vmatpush1.msra.mxu0 0.0
    %366 = vmatprep.subr.mxu0 0.0
    %367 = vmatpush1.msra.mxu0 0.0
    %368 = vmatprep.subr.mxu0 0.0
    %369 = vmatpush1.msra.mxu0 0.0
    %370 = vmatprep.subr.mxu0 0.0
    %371 = vmatpush1.msra.mxu0 0.0
    %372 = vmatprep.subr.mxu0 0.0
    %373 = vmatpush1.msra.mxu0 0.0
    %374 = vmatprep.subr.mxu0 0.0
    %375 = vmatpush1.msra.mxu0 0.0
    %376 = vmatprep.subr.mxu0 0.0
    %377 = vmatpush1.msra.mxu0 0.0
    %378 = vmatprep.subr.mxu0 0.0
    %379 = vmatpush1.msra.mxu0 0.0
    %380 = vmatprep.subr.mxu0 0.0
    %381 = vmatpush1.msra.mxu0 0.0
    %382 = vmatprep.subr.mxu0 0.0
    %383 = vmatpush1.msra.mxu0 0.0
    %384 = vmatprep.subr.mxu0 0.0
    %385 = vmatpush1.msra.mxu0 0.0
    %386 = vmatprep.subr.mxu0 0.0
    %387 = vmatpush1.msra.mxu0 0.0
    %388 = vmatprep.subr.mxu0 0.0
    %389 = vmatpush1.msra.mxu0 0.0
    %390 = vmatprep.subr.mxu0 0.0
    %391 = vmatpush1.msra.mxu0 0.0
    %392 = vmatprep.subr.mxu0 0.0
    %393 = vmatpush1.msra.mxu0 0.0
    %394 = vmatprep.subr.mxu0 0.0
    %395 = vmatpush1.msra.mxu0 0.0
    %396 = vmatprep.subr.mxu0 0.0
    %397 = vmatpush1.msra.mxu0 0.0
    %398 = vmatprep.subr.mxu0 0.0
    %399 = vmatpush1.msra.mxu0 0.0
    %400 = vmatprep.subr.mxu0 0.0
    %401 = vmatpush1.msra.mxu0 0.0
    %402 = vmatprep.subr.mxu0 0.0
    %403 = vmatpush1.msra.mxu0 0.0
    %404 = vmatprep.subr.mxu0 0.0
    %405 = vmatpush1.msra.mxu0 0.0
    %406 = vmatprep.subr.mxu0 0.0
    %407 = vmatpush1.msra.mxu0 0.0
    %408 = vmatprep.subr.mxu0 0.0
    %409 = vmatpush1.msra.mxu0 0.0
    %410 = vmatprep.subr.mxu0 0.0
    %411 = vmatpush1.msra.mxu0 0.0
    %412 = vmatprep.mubr.f32.mxu0 0.0
    %413 = vmatmul.mubr.f32.gmra.mrb[0].mxu0 %v346
    %v414 = vpop.f32.mrb[0].mxu0
    %v415 = vadd.f32 0.0, %v414
    %v416 = vpop.f32.mrb[0].mxu0
    %417 = vdwg.mxu0
    %v419 = vsel %vm344, %v163, 0
    %421 = vmatprep.subr.mxu0 0.0
    %422 = vmatpush1.msra.mxu0 %v328
    %423 = vmatprep.subr.mxu0 0.0
    %424 = vmatpush1.msra.mxu0 %v329
    %425 = vmatprep.subr.mxu0 0.0
    %426 = vmatpush1.msra.mxu0 %v330
    %427 = vmatprep.subr.mxu0 0.0
    %428 = vmatpush1.msra.mxu0 %v331
    %429 = vmatprep.subr.mxu0 0.0
    %430 = vmatpush1.msra.mxu0 0.0
    %431 = vmatprep.subr.mxu0 0.0
    %432 = vmatpush1.msra.mxu0 0.0
    %433 = vmatprep.subr.mxu0 0.0
    %434 = vmatpush1.msra.mxu0 0.0
    %435 = vmatprep.subr.mxu0 0.0
    %436 = vmatpush1.msra.mxu0 0.0
    %437 = vmatprep.subr.mxu0 0.0
    %438 = vmatpush1.msra.mxu0 0.0
    %439 = vmatprep.subr.mxu0 0.0
    %440 = vmatpush1.msra.mxu0 0.0
    %441 = vmatprep.subr.mxu0 0.0
    %442 = vmatpush1.msra.mxu0 0.0
    %443 = vmatprep.subr.mxu0 0.0
    %444 = vmatpush1.msra.mxu0 0.0
    %445 = vmatprep.subr.mxu0 0.0
    %446 = vmatpush1.msra.mxu0 0.0
    %447 = vmatprep.subr.mxu0 0.0
    %448 = vmatpush1.msra.mxu0 0.0
    %449 = vmatprep.subr.mxu0 0.0
    %450 = vmatpush1.msra.mxu0 0.0
    %451 = vmatprep.subr.mxu0 0.0
    %452 = vmatpush1.msra.mxu0 0.0
    %453 = vmatprep.subr.mxu0 0.0
    %454 = vmatpush1.msra.mxu0 0.0
    %455 = vmatprep.subr.mxu0 0.0
    %456 = vmatpush1.msra.mxu0 0.0
    %457 = vmatprep.subr.mxu0 0.0
    %458 = vmatpush1.msra.mxu0 0.0
    %459 = vmatprep.subr.mxu0 0.0
    %460 = vmatpush1.msra.mxu0 0.0
    %461 = vmatprep.subr.mxu0 0.0
    %462 = vmatpush1.msra.mxu0 0.0
    %463 = vmatprep.subr.mxu0 0.0
    %464 = vmatpush1.msra.mxu0 0.0
    %465 = vmatprep.subr.mxu0 0.0
    %466 = vmatpush1.msra.mxu0 0.0
    %467 = vmatprep.subr.mxu0 0.0
    %468 = vmatpush1.msra.mxu0 0.0
    %469 = vmatprep.subr.mxu0 0.0
    %470 = vmatpush1.msra.mxu0 0.0
    %471 = vmatprep.subr.mxu0 0.0
    %472 = vmatpush1.msra.mxu0 0.0
    %473 = vmatprep.subr.mxu0 0.0
    %474 = vmatpush1.msra.mxu0 0.0
    %475 = vmatprep.subr.mxu0 0.0
    %476 = vmatpush1.msra.mxu0 0.0
    %477 = vmatprep.subr.mxu0 0.0
    %478 = vmatpush1.msra.mxu0 0.0
    %479 = vmatprep.subr.mxu0 0.0
    %480 = vmatpush1.msra.mxu0 0.0
    %481 = vmatprep.subr.mxu0 0.0
    %482 = vmatpush1.msra.mxu0 0.0
    %483 = vmatprep.subr.mxu0 0.0
    %484 = vmatpush1.msra.mxu0 0.0
    %485 = vmatprep.mubr.f32.mxu0 0.0
    %486 = vmatmul.mubr.f32.gmra.mrb[0].mxu0 %v419
    %v487 = vpop.f32.mrb[0].mxu0
    %v488 = vadd.f32 %v415, %v487
    %v489 = vpop.f32.mrb[0].mxu0
    %490 = vdwg.mxu0
    %v492 = vsel %vm344, %v117, 0
    %494 = vmatprep.subr.mxu0 0.0
    %495 = vmatpush1.msra.mxu0 %v336
    %496 = vmatprep.subr.mxu0 0.0
    %497 = vmatpush1.msra.mxu0 %v337
    %498 = vmatprep.subr.mxu0 0.0
    %499 = vmatpush1.msra.mxu0 %v338
    %500 = vmatprep.subr.mxu0 0.0
    %501 = vmatpush1.msra.mxu0 %v339
    %502 = vmatprep.subr.mxu0 0.0
    %503 = vmatpush1.msra.mxu0 0.0
    %504 = vmatprep.subr.mxu0 0.0
    %505 = vmatpush1.msra.mxu0 0.0
    %506 = vmatprep.subr.mxu0 0.0
    %507 = vmatpush1.msra.mxu0 0.0
    %508 = vmatprep.subr.mxu0 0.0
    %509 = vmatpush1.msra.mxu0 0.0
    %510 = vmatprep.subr.mxu0 0.0
    %511 = vmatpush1.msra.mxu0 0.0
    %512 = vmatprep.subr.mxu0 0.0
    %513 = vmatpush1.msra.mxu0 0.0
    %514 = vmatprep.subr.mxu0 0.0
    %515 = vmatpush1.msra.mxu0 0.0
    %516 = vmatprep.subr.mxu0 0.0
    %517 = vmatpush1.msra.mxu0 0.0
    %518 = vmatprep.subr.mxu0 0.0
    %519 = vmatpush1.msra.mxu0 0.0
    %520 = vmatprep.subr.mxu0 0.0
    %521 = vmatpush1.msra.mxu0 0.0
    %522 = vmatprep.subr.mxu0 0.0
    %523 = vmatpush1.msra.mxu0 0.0
    %524 = vmatprep.subr.mxu0 0.0
    %525 = vmatpush1.msra.mxu0 0.0
    %526 = vmatprep.subr.mxu0 0.0
    %527 = vmatpush1.msra.mxu0 0.0
    %528 = vmatprep.subr.mxu0 0.0
    %529 = vmatpush1.msra.mxu0 0.0
    %530 = vmatprep.subr.mxu0 0.0
    %531 = vmatpush1.msra.mxu0 0.0
    %532 = vmatprep.subr.mxu0 0.0
    %533 = vmatpush1.msra.mxu0 0.0
    %534 = vmatprep.subr.mxu0 0.0
    %535 = vmatpush1.msra.mxu0 0.0
    %536 = vmatprep.subr.mxu0 0.0
    %537 = vmatpush1.msra.mxu0 0.0
    %538 = vmatprep.subr.mxu0 0.0
    %539 = vmatpush1.msra.mxu0 0.0
    %540 = vmatprep.subr.mxu0 0.0
    %541 = vmatpush1.msra.mxu0 0.0
    %542 = vmatprep.subr.mxu0 0.0
    %543 = vmatpush1.msra.mxu0 0.0
    %544 = vmatprep.subr.mxu0 0.0
    %545 = vmatpush1.msra.mxu0 0.0
    %546 = vmatprep.subr.mxu0 0.0
    %547 = vmatpush1.msra.mxu0 0.0
    %548 = vmatprep.subr.mxu0 0.0
    %549 = vmatpush1.msra.mxu0 0.0
    %550 = vmatprep.subr.mxu0 0.0
    %551 = vmatpush1.msra.mxu0 0.0
    %552 = vmatprep.subr.mxu0 0.0
    %553 = vmatpush1.msra.mxu0 0.0
    %554 = vmatprep.subr.mxu0 0.0
    %555 = vmatpush1.msra.mxu0 0.0
    %556 = vmatprep.subr.mxu0 0.0
    %557 = vmatpush1.msra.mxu0 0.0
    %558 = vmatprep.mubr.f32.mxu0 0.0
    %559 = vmatmul.mubr.f32.gmra.mrb[0].mxu0 %v492
    %v560 = vpop.f32.mrb[0].mxu0
    %v561 = vadd.f32 0.0, %v560
    %v562 = vpop.f32.mrb[0].mxu0
    %563 = vdwg.mxu0
    %v564 = vadd.f32 %v488, %v561
    %v566 = vsel %vm344, %v272, 0
    %568 = vmatprep.subr.mxu0 0.0
    %569 = vmatpush1.msra.mxu0 %v340
    %570 = vmatprep.subr.mxu0 0.0
    %571 = vmatpush1.msra.mxu0 %v341
    %572 = vmatprep.subr.mxu0 0.0
    %573 = vmatpush1.msra.mxu0 %v342
    %574 = vmatprep.subr.mxu0 0.0
    %575 = vmatpush1.msra.mxu0 %v343
    %576 = vmatprep.subr.mxu0 0.0
    %577 = vmatpush1.msra.mxu0 0.0
    %578 = vmatprep.subr.mxu0 0.0
    %579 = vmatpush1.msra.mxu0 0.0
    %580 = vmatprep.subr.mxu0 0.0
    %581 = vmatpush1.msra.mxu0 0.0
    %582 = vmatprep.subr.mxu0 0.0
    %583 = vmatpush1.msra.mxu0 0.0
    %584 = vmatprep.subr.mxu0 0.0
    %585 = vmatpush1.msra.mxu0 0.0
    %586 = vmatprep.subr.mxu0 0.0
    %587 = vmatpush1.msra.mxu0 0.0
    %588 = vmatprep.subr.mxu0 0.0
    %589 = vmatpush1.msra.mxu0 0.0
    %590 = vmatprep.subr.mxu0 0.0
    %591 = vmatpush1.msra.mxu0 0.0
    %592 = vmatprep.subr.mxu0 0.0
    %593 = vmatpush1.msra.mxu0 0.0
    %594 = vmatprep.subr.mxu0 0.0
    %595 = vmatpush1.msra.mxu0 0.0
    %596 = vmatprep.subr.mxu0 0.0
    %597 = vmatpush1.msra.mxu0 0.0
    %598 = vmatprep.subr.mxu0 0.0
    %599 = vmatpush1.msra.mxu0 0.0
    %600 = vmatprep.subr.mxu0 0.0
    %601 = vmatpush1.msra.mxu0 0.0
    %602 = vmatprep.subr.mxu0 0.0
    %603 = vmatpush1.msra.mxu0 0.0
    %604 = vmatprep.subr.mxu0 0.0
    %605 = vmatpush1.msra.mxu0 0.0
    %606 = vmatprep.subr.mxu0 0.0
    %607 = vmatpush1.msra.mxu0 0.0
    %608 = vmatprep.subr.mxu0 0.0
    %609 = vmatpush1.msra.mxu0 0.0
    %610 = vmatprep.subr.mxu0 0.0
    %611 = vmatpush1.msra.mxu0 0.0
    %612 = vmatprep.subr.mxu0 0.0
    %613 = vmatpush1.msra.mxu0 0.0
    %614 = vmatprep.subr.mxu0 0.0
    %615 = vmatpush1.msra.mxu0 0.0
    %616 = vmatprep.subr.mxu0 0.0
    %617 = vmatpush1.msra.mxu0 0.0
    %618 = vmatprep.subr.mxu0 0.0
    %619 = vmatpush1.msra.mxu0 0.0
    %620 = vmatprep.subr.mxu0 0.0
    %621 = vmatpush1.msra.mxu0 0.0
    %622 = vmatprep.subr.mxu0 0.0
    %623 = vmatpush1.msra.mxu0 0.0
    %624 = vmatprep.subr.mxu0 0.0
    %625 = vmatpush1.msra.mxu0 0.0
    %626 = vmatprep.subr.mxu0 0.0
    %627 = vmatpush1.msra.mxu0 0.0
    %628 = vmatprep.subr.mxu0 0.0
    %629 = vmatpush1.msra.mxu0 0.0
    %630 = vmatprep.subr.mxu0 0.0
    %631 = vmatpush1.msra.mxu0 0.0
    %632 = vmatprep.mubr.f32.mxu0 0.0
    %633 = vmatmul.mubr.f32.gmra.mrb[0].mxu0 %v566
    %v634 = vpop.f32.mrb[0].mxu0
    %v635 = vadd.f32 0.0, %v634
    %v636 = vpop.f32.mrb[0].mxu0
    %637 = vdwg.mxu0
    %v638 = vadd.f32 %v564, %v635
    %v639 = vld [vmem:[%s5] sm:$0x1]
    %v641 = vlaneseq
    %v642 = vshrl.u32 %v641, 7
    %v643 = vsub.s32 0, %v642
    %v644 = vrot.slane %v639, %v643
    %v646 = vadd.f32 %v638, %v644
    %v647 = vmul.f32 %v646, %v646
    %v648 = vmul.f32 %v646, %v647
    %v649 = vmul.f32 %v648, 0.044715
    %v650 = vadd.f32 %v646, %v649
    %v651 = vmul.f32 %v650, 0.7978846
    %v652 = vtanh.pop %v651
    %v653 = vadd.f32 %v652, 1.0
    %v654 = vmul.f32 %v653, 0.5
    %v655 = vmul.f32 %v646, %v654
    %v656 = vld [vmem:[%s6] sm:$0xff]
    %v657 = vld [vmem:[%s6 + $0x8] sm:$0xff]
    %v658 = vld [vmem:[%s6 + $0x10] sm:$0xff]
    %v659 = vld [vmem:[%s6 + $0x18] sm:$0xff]
    %v660 = vld [vmem:[%s7] sm:$0x1]
    %v662 = vlaneseq
    %v663 = vshrl.u32 %v662, 7
    %v664 = vsub.s32 0, %v663
    %v665 = vrot.slane %v660, %v664
    %v668 = vsel %vm344, %v655, 0
    %670 = vmatprep.subr.mxu0 0.0
    %671 = vmatpush1.msra.mxu0 %v656
    %672 = vmatprep.subr.mxu0 0.0
    %673 = vmatpush1.msra.mxu0 %v657
    %674 = vmatprep.subr.mxu0 0.0
    %675 = vmatpush1.msra.mxu0 %v658
    %676 = vmatprep.subr.mxu0 0.0
    %677 = vmatpush1.msra.mxu0 %v659
    %678 = vmatprep.subr.mxu0 0.0
    %679 = vmatpush1.msra.mxu0 0.0
    %680 = vmatprep.subr.mxu0 0.0
    %681 = vmatpush1.msra.mxu0 0.0
    %682 = vmatprep.subr.mxu0 0.0
    %683 = vmatpush1.msra.mxu0 0.0
    %684 = vmatprep.subr.mxu0 0.0
    %685 = vmatpush1.msra.mxu0 0.0
    %686 = vmatprep.subr.mxu0 0.0
    %687 = vmatpush1.msra.mxu0 0.0
    %688 = vmatprep.subr.mxu0 0.0
    %689 = vmatpush1.msra.mxu0 0.0
    %690 = vmatprep.subr.mxu0 0.0
    %691 = vmatpush1.msra.mxu0 0.0
    %692 = vmatprep.subr.mxu0 0.0
    %693 = vmatpush1.msra.mxu0 0.0
    %694 = vmatprep.subr.mxu0 0.0
    %695 = vmatpush1.msra.mxu0 0.0
    %696 = vmatprep.subr.mxu0 0.0
    %697 = vmatpush1.msra.mxu0 0.0
    %698 = vmatprep.subr.mxu0 0.0
    %699 = vmatpush1.msra.mxu0 0.0
    %700 = vmatprep.subr.mxu0 0.0
    %701 = vmatpush1.msra.mxu0 0.0
    %702 = vmatprep.subr.mxu0 0.0
    %703 = vmatpush1.msra.mxu0 0.0
    %704 = vmatprep.subr.mxu0 0.0
    %705 = vmatpush1.msra.mxu0 0.0
    %706 = vmatprep.subr.mxu0 0.0
    %707 = vmatpush1.msra.mxu0 0.0
    %708 = vmatprep.subr.mxu0 0.0
    %709 = vmatpush1.msra.mxu0 0.0
    %710 = vmatprep.subr.mxu0 0.0
    %711 = vmatpush1.msra.mxu0 0.0
    %712 = vmatprep.subr.mxu0 0.0
    %713 = vmatpush1.msra.mxu0 0.0
    %714 = vmatprep.subr.mxu0 0.0
    %715 = vmatpush1.msra.mxu0 0.0
    %716 = vmatprep.subr.mxu0 0.0
    %717 = vmatpush1.msra.mxu0 0.0
    %718 = vmatprep.subr.mxu0 0.0
    %719 = vmatpush1.msra.mxu0 0.0
    %720 = vmatprep.subr.mxu0 0.0
    %721 = vmatpush1.msra.mxu0 0.0
    %722 = vmatprep.subr.mxu0 0.0
    %723 = vmatpush1.msra.mxu0 0.0
    %724 = vmatprep.subr.mxu0 0.0
    %725 = vmatpush1.msra.mxu0 0.0
    %726 = vmatprep.subr.mxu0 0.0
    %727 = vmatpush1.msra.mxu0 0.0
    %728 = vmatprep.subr.mxu0 0.0
    %729 = vmatpush1.msra.mxu0 0.0
    %730 = vmatprep.subr.mxu0 0.0
    %731 = vmatpush1.msra.mxu0 0.0
    %732 = vmatprep.subr.mxu0 0.0
    %733 = vmatpush1.msra.mxu0 0.0
    %734 = vmatprep.mubr.f32.mxu0 0.0
    %735 = vmatmul.mubr.f32.gmra.mrb[0].mxu0 %v668
    %v736 = vpop.f32.mrb[0].mxu0
    %v737 = vadd.f32 %v665, %v736
    %v738 = vpop.f32.mrb[0].mxu0
    %739 = vdwg.mxu0
    %vm740 = vcmask 9216
    %741 = vst.msk [vmem:[#allocation2] sm:$0x3] %vm740, %v737
    // Predicated region
    $region34: #{esim_forward.13} parent=1 // pred_check
      _
    $region35: #{esim_forward.13} parent=1 // pred_check_branch
      %743 = sbr.rel (0) target = $region37
    $region36: #{esim_forward.13} parent=1 // pred_region
      %s745 = ssub.s32 32, 32
      %746 = vsyncadd [#allocation3], %s745
      %s748 = sshll.u32 [#allocation2], 4
      %s749 = int_to_ptr.vmem [resolvable:$true] %s748
      %751 = dma.vmem_to_hbm [thread:$0]  %s749, 32, %s8, [#allocation3]
    $region37: #{esim_forward.13} parent=1 // pred_fallthru
      _
    // Predicated region
    $region38: #{esim_forward.13} parent=1 // pred_check
      _
    $region39: #{esim_forward.13} parent=1 // pred_check_branch
      %753 = sbr.rel (0) target = $region41
    $region40: #{esim_forward.13} parent=1 // pred_region
      %754 = dma.done [#allocation3], 32
    $region41: #{esim_forward.13} parent=1 // pred_fallthru
      _
    %755 = vsyncpa [#allocation3], 1

</llo_original>
